<compile_context>
chip_gen: v7x
topology: tpu7x:2x2x1
jax: 0.10.0
libtpu: 0.0.40
codegen_flags: <defaults>
</compile_context>

<pallas_src>
import math

import jax
import jax.numpy as jnp
from jax.experimental import pallas as pl
from jax.experimental.pallas import tpu as pltpu

# ----------------------------- model dims ------------------------------------
B = 2          # batch
S = 8          # sequence length
H = 128        # hidden_dim
NH = 4         # num_attention_heads
HD = H // NH   # head dim
FF = 4 * H     # feed_forward_hidden
V = 32         # vocab_size
VPAD = 128     # lane-dense padded vocab for the LM-head output
NLAYERS = 2    # num_layers
MAXPOS = 64
EPS = 1e-5
SEQSTART = 0   # ChromBERTLM.seqstart
NVEC = 8       # packed (1,H) vectors per layer (6 used, padded to 8 rows)


# --------------------------- kernel helpers -----------------------------------
def _layernorm(x, g, b):
    mu = jnp.mean(x, axis=-1, keepdims=True)
    var = jnp.mean(jnp.square(x - mu), axis=-1, keepdims=True)
    return (x - mu) * jax.lax.rsqrt(var + EPS) * g + b


# --------------------------- fused Pallas kernel -------------------------------
def fused_forward_kernel(x_ref, mask_ref,
                         wqkv_ref, bqkv_ref, wo_ref,
                         w1_ref, w2_ref, vecs_ref, b1_ref,
                         wdec_ref, bdec_ref, o_ref):
    """Full ChromBERTLM forward: NLAYERS encoder blocks + LM head, one launch.

    x_ref    : (B*S, H)        f32 embeddings
    mask_ref : (B*S, B*S)      f32 additive bias (0 / -1e9), block-diag over
                               batch AND key-padding folded in
    wqkv_ref : (L, H, 3H)      bf16 fused [Q|K|V] projection (Q pre-scaled)
    bqkv_ref : (L, 1, 3H)      f32 fused bias (Q part pre-scaled)
    wo_ref   : (L, NH, HD, H)  bf16 per-head output projection
    w1_ref   : (L, H, FF) bf16 ; w2_ref: (L, FF, H) bf16
    vecs_ref : (L, NVEC, H) f32  rows: bo, ln1g, ln1b, ln2g, ln2b, b2, pad...
    b1_ref   : (L, 1, FF) f32
    wdec_ref : (H, VPAD) bf16 ; bdec_ref: (1, VPAD) f32 (vocab zero-padded)
    o_ref    : (B*S, VPAD) f32 lane-dense logits
    """
    x = x_ref[...].astype(jnp.float32)           # (B*S, H)
    mask = mask_ref[...]                         # (B*S, B*S)

    for l in range(NLAYERS):                     # static unroll over layers
        vecs = vecs_ref[l]                       # (NVEC, H) f32
        bo = vecs[0:1]
        ln1g, ln1b = vecs[1:2], vecs[2:3]
        ln2g, ln2b = vecs[3:4], vecs[4:5]
        b2 = vecs[5:6]
        b1 = b1_ref[l]                           # (1, FF) f32
        bqkv = bqkv_ref[l]                       # (1, 3H) f32

        x_bf = x.astype(jnp.bfloat16)

        # ---- fused QKV projection: one (B*S,H)@(H,3H) matmul
        qkv = jnp.dot(x_bf, wqkv_ref[l],
                      preferred_element_type=jnp.float32) + bqkv   # (B*S, 3H)

        # ---- multi-head self-attention, batch fused via block-diagonal mask
        attn = jnp.zeros((B * S, H), jnp.float32)
        for h in range(NH):                      # static unroll over heads
            lo = h * HD
            qh = qkv[:, lo:lo + HD]              # (B*S, HD), already scaled
            kh = qkv[:, H + lo:H + lo + HD]
            vh = qkv[:, 2 * H + lo:2 * H + lo + HD]

            s = jnp.einsum('qd,kd->qk', qh, kh,
                           preferred_element_type=jnp.float32) + mask
            s = s - jnp.max(s, axis=-1, keepdims=True)
            p = jnp.exp(s)
            p = p * pl.reciprocal(jnp.sum(p, axis=-1, keepdims=True),
                                  approx=True)
            oh = jnp.dot(p, vh, preferred_element_type=jnp.float32)  # (B*S,HD)
            attn = attn + jnp.dot(oh.astype(jnp.bfloat16), wo_ref[l, h],
                                  preferred_element_type=jnp.float32)
        attn = attn + bo

        # ---- add & norm, FFN, add & norm (post-LN)
        h1 = _layernorm(x + attn, ln1g, ln1b)
        ff = jnp.dot(h1.astype(jnp.bfloat16), w1_ref[l],
                     preferred_element_type=jnp.float32) + b1
        ff = jax.nn.gelu(ff, approximate=True)
        ff = jnp.dot(ff.astype(jnp.bfloat16), w2_ref[l],
                     preferred_element_type=jnp.float32) + b2
        x = _layernorm(h1 + ff, ln2g, ln2b)

    # ---- LM head (lane-dense 128-wide output slab)
    logits = jnp.dot(x.astype(jnp.bfloat16), wdec_ref[...],
                     preferred_element_type=jnp.float32) + bdec_ref[...]
    o_ref[...] = logits.astype(o_ref.dtype)


# --------------------------- wrapper ------------------------------------------
def run_fused_forward(x2d, mask_bias, p):
    """x2d: (B*S, H) f32, mask_bias: (B*S, B*S) f32 -> (B*S, VPAD) f32 logits."""
    vmem = pltpu.MemorySpace.VMEM
    args = (x2d, mask_bias, p["wqkv"], p["bqkv"], p["wo"],
            p["w1"], p["w2"], p["vecs"], p["b1"], p["wdec"], p["bdec"])
    return pl.pallas_call(
        fused_forward_kernel,
        out_shape=jax.ShapeDtypeStruct((B * S, VPAD), jnp.float32),
        in_specs=[pl.BlockSpec(memory_space=vmem)] * len(args),
        out_specs=pl.BlockSpec(memory_space=vmem),
    )(*args)


# --------------------------- parameter init / packing --------------------------
def init_params(key):
    std = 0.02

    def dense(k, shape):
        return jax.random.normal(k, shape, jnp.float32) * std

    keys = jax.random.split(key, 4 + NLAYERS)
    params = {
        "tok_emb": dense(keys[0], (V, H)),
        "pos_emb": dense(keys[1], (MAXPOS, H)),
        "w_dec": dense(keys[2], (H, V)),
        "b_dec": jnp.zeros((1, V), jnp.float32),
        "blocks": [],
    }
    for li in range(NLAYERS):
        bk = jax.random.split(keys[4 + li], 8)
        blk = {
            "wq": dense(bk[0], (H, H)), "bq": jnp.zeros((1, H), jnp.float32),
            "wk": dense(bk[1], (H, H)), "bk": jnp.zeros((1, H), jnp.float32),
            "wv": dense(bk[2], (H, H)), "bv": jnp.zeros((1, H), jnp.float32),
            "wo": dense(bk[3], (H, H)), "bo": jnp.zeros((1, H), jnp.float32),
            "ln1g": jnp.ones((1, H), jnp.float32), "ln1b": jnp.zeros((1, H), jnp.float32),
            "w1": dense(bk[4], (H, FF)), "b1": jnp.zeros((1, FF), jnp.float32),
            "w2": dense(bk[5], (FF, H)), "b2": jnp.zeros((1, H), jnp.float32),
            "ln2g": jnp.ones((1, H), jnp.float32), "ln2b": jnp.zeros((1, H), jnp.float32),
        }
        params["blocks"].append(blk)
    return params


def pack_params(params):
    """Fuse Q/K/V weights (with the attention scale folded into Q), stack
    per-layer weights with a leading layer dim, reshape Wo per head, pack
    bias/LN vectors, zero-pad the LM head to 128 lanes, cast matmul weights
    to bf16 (elementwise math stays f32)."""
    blocks = params["blocks"]
    scale = 1.0 / math.sqrt(HD)

    def stack(name):
        return jnp.stack([blk[name] for blk in blocks])            # (L, ...)

    # NOTE: weights are stored (in, out) and applied as x @ W (torch nn.Linear
    # checkpoints would need a transpose).
    wqkv = jnp.concatenate([stack("wq") * scale, stack("wk"), stack("wv")],
                           axis=-1)                                 # (L, H, 3H)
    bqkv = jnp.concatenate([stack("bq") * scale, stack("bk"), stack("bv")],
                           axis=-1)                                 # (L, 1, 3H)
    wo = stack("wo").reshape(NLAYERS, NH, HD, H)                    # rows -> heads

    vecs = jnp.zeros((NLAYERS, NVEC, H), jnp.float32)
    for i, name in enumerate(("bo", "ln1g", "ln1b", "ln2g", "ln2b", "b2")):
        vecs = vecs.at[:, i, :].set(stack(name)[:, 0, :])

    wdec = jnp.zeros((H, VPAD), jnp.float32).at[:, :V].set(params["w_dec"])
    bdec = jnp.zeros((1, VPAD), jnp.float32).at[:, :V].set(params["b_dec"])

    return {
        "wqkv": wqkv.astype(jnp.bfloat16),        # (L, H, 3H)
        "bqkv": bqkv,                             # (L, 1, 3H) f32
        "wo": wo.astype(jnp.bfloat16),            # (L, NH, HD, H)
        "w1": stack("w1").astype(jnp.bfloat16),   # (L, H, FF)
        "w2": stack("w2").astype(jnp.bfloat16),   # (L, FF, H)
        "vecs": vecs,                             # (L, NVEC, H) f32
        "b1": stack("b1"),                        # (L, 1, FF) f32
        "wdec": wdec.astype(jnp.bfloat16),        # (H, VPAD)
        "bdec": bdec,                             # (1, VPAD) f32
    }


# --------------------------- full forward --------------------------------------
@jax.jit
def chrombert_lm_forward(packed, tok_emb, pos_emb, x_ids, position_ids,
                         key_padding_mask=None):
    """ChromBERTLM.forward (eval mode, attn_weight=False).

    x_ids            : (B, S) int32 token ids
    position_ids     : (B, S) int32
    key_padding_mask : (B, S) bool, True == padded key (or None)
    returns logits   : (B, S - seqstart, V)
    """
    # BERTEmbedding: token + position embedding (dropout is a no-op in eval).
    emb = tok_emb[x_ids] + pos_emb[position_ids]                   # (B, S, H)
    emb = emb.astype(jnp.float32).reshape(B * S, H)

    # Block-diagonal additive mask over the flattened (B*S) token axis:
    # cross-batch pairs and padded keys get -1e9, everything else 0.
    batch_ids = jnp.repeat(jnp.arange(B, dtype=jnp.int32), S)      # (B*S,)
    same_batch = batch_ids[:, None] == batch_ids[None, :]
    if key_padding_mask is None:
        key_ok = jnp.ones((B * S,), dtype=bool)
    else:
        key_ok = ~key_padding_mask.reshape(B * S)
    allowed = same_batch & key_ok[None, :]
    mask_bias = jnp.where(allowed, 0.0, -1e9).astype(jnp.float32)  # (B*S, B*S)

    logits_pad = run_fused_forward(emb, mask_bias, packed)         # (B*S, VPAD)
    logits = logits_pad[:, :V].reshape(B, S, V)
    # seqstart == 0 in ChromBERTLM; slice applied post-head (per-token linear,
    # so pre/post slicing is equivalent).
    return logits[:, SEQSTART:, :]


# --------------------------- main ----------------------------------------------
if __name__ == "__main__":
    key = jax.random.PRNGKey(0)
    pkey, xkey = jax.random.split(key)
    params = init_params(pkey)
    packed = pack_params(params)

    x_ids = jax.random.randint(xkey, (B, S), 0, V, dtype=jnp.int32)
    position_ids = jnp.broadcast_to(jnp.arange(S, dtype=jnp.int32), (B, S))
    # batch 1 has its last token padded, batch 0 has no padding
    key_padding_mask = jnp.array(
        [[False] * S,
         [False] * (S - 1) + [True]], dtype=bool)

    out = chrombert_lm_forward(packed, params["tok_emb"], params["pos_emb"],
                               x_ids, position_ids, key_padding_mask)
    out = jax.block_until_ready(out)

    assert out.shape == (B, S - SEQSTART, V), out.shape
    assert bool(jnp.all(jnp.isfinite(out)))
    print("KERNEL_OK")
</pallas_src>

<mosaic_0001>
module attributes {stable_mosaic.version = 11 : i64} {
  func.func @fused_forward_kernel(%arg0: memref<16x128xf32, #tpu.memory_space<vmem>>, %arg1: memref<16x16xf32, #tpu.memory_space<vmem>>, %arg2: memref<2x128x384xbf16, #tpu.memory_space<vmem>>, %arg3: memref<2x1x384xf32, #tpu.memory_space<vmem>>, %arg4: memref<2x4x32x128xbf16, #tpu.memory_space<vmem>>, %arg5: memref<2x128x512xbf16, #tpu.memory_space<vmem>>, %arg6: memref<2x512x128xbf16, #tpu.memory_space<vmem>>, %arg7: memref<2x8x128xf32, #tpu.memory_space<vmem>>, %arg8: memref<2x1x512xf32, #tpu.memory_space<vmem>>, %arg9: memref<128x128xbf16, #tpu.memory_space<vmem>>, %arg10: memref<1x128xf32, #tpu.memory_space<vmem>>, %arg11: memref<16x128xf32, #tpu.memory_space<vmem>>) attributes {dimension_semantics = [], scalar_prefetch = 0 : i64, scratch_operands = 0 : i64, tpu.core_type = #tpu.core_type<tc>} {
    %c0 = arith.constant 0 : index
    %c0_0 = arith.constant 0 : index
    %0 = vector.load %arg0[%c0, %c0_0] : memref<16x128xf32, #tpu.memory_space<vmem>>, vector<16x128xf32>
    %c0_1 = arith.constant 0 : index
    %c0_2 = arith.constant 0 : index
    %1 = vector.load %arg1[%c0_1, %c0_2] : memref<16x16xf32, #tpu.memory_space<vmem>>, vector<16x16xf32>
    %c0_3 = arith.constant 0 : index
    %c0_4 = arith.constant 0 : index
    %c0_5 = arith.constant 0 : index
    %2 = vector.load %arg7[%c0_3, %c0_4, %c0_5] : memref<2x8x128xf32, #tpu.memory_space<vmem>>, vector<1x8x128xf32>
    %3 = vector.shape_cast %2 : vector<1x8x128xf32> to vector<8x128xf32>
    %4 = vector.extract_strided_slice %3 {offsets = [0, 0], sizes = [1, 128], strides = [1, 1]} : vector<8x128xf32> to vector<1x128xf32>
    %5 = vector.extract_strided_slice %3 {offsets = [1, 0], sizes = [1, 128], strides = [1, 1]} : vector<8x128xf32> to vector<1x128xf32>
    %6 = vector.extract_strided_slice %3 {offsets = [2, 0], sizes = [1, 128], strides = [1, 1]} : vector<8x128xf32> to vector<1x128xf32>
    %7 = vector.extract_strided_slice %3 {offsets = [3, 0], sizes = [1, 128], strides = [1, 1]} : vector<8x128xf32> to vector<1x128xf32>
    %8 = vector.extract_strided_slice %3 {offsets = [4, 0], sizes = [1, 128], strides = [1, 1]} : vector<8x128xf32> to vector<1x128xf32>
    %9 = vector.extract_strided_slice %3 {offsets = [5, 0], sizes = [1, 128], strides = [1, 1]} : vector<8x128xf32> to vector<1x128xf32>
    %c0_6 = arith.constant 0 : index
    %c0_7 = arith.constant 0 : index
    %c0_8 = arith.constant 0 : index
    %10 = vector.load %arg8[%c0_6, %c0_7, %c0_8] : memref<2x1x512xf32, #tpu.memory_space<vmem>>, vector<1x1x512xf32>
    %11 = vector.shape_cast %10 : vector<1x1x512xf32> to vector<1x512xf32>
    %c0_9 = arith.constant 0 : index
    %c0_10 = arith.constant 0 : index
    %c0_11 = arith.constant 0 : index
    %12 = vector.load %arg3[%c0_9, %c0_10, %c0_11] : memref<2x1x384xf32, #tpu.memory_space<vmem>>, vector<1x1x384xf32>
    %13 = vector.shape_cast %12 : vector<1x1x384xf32> to vector<1x384xf32>
    %14 = arith.truncf %0 : vector<16x128xf32> to vector<16x128xbf16>
    %c0_12 = arith.constant 0 : index
    %c0_13 = arith.constant 0 : index
    %c0_14 = arith.constant 0 : index
    %15 = vector.load %arg2[%c0_12, %c0_13, %c0_14] : memref<2x128x384xbf16, #tpu.memory_space<vmem>>, vector<1x128x384xbf16>
    %16 = vector.shape_cast %15 : vector<1x128x384xbf16> to vector<128x384xbf16>
    %cst = arith.constant dense<0.000000e+00> : vector<16x384xf32>
    %17 = tpu.matmul %14, %16, %cst {dimension_numbers = #tpu.dot_dimension_numbers<[1], [0], [0], [1], [0, 0, 1, 1], [], []>} : vector<16x128xbf16>, vector<128x384xbf16>, vector<16x384xf32> -> vector<16x384xf32>
    %18 = vector.broadcast %13 : vector<1x384xf32> to vector<16x384xf32>
    %19 = arith.addf %17, %18 : vector<16x384xf32>
    %cst_15 = arith.constant 0.000000e+00 : f32
    %20 = vector.broadcast %cst_15 : f32 to vector<16x128xf32>
    %21 = vector.extract_strided_slice %19 {offsets = [0, 0], sizes = [16, 32], strides = [1, 1]} : vector<16x384xf32> to vector<16x32xf32>
    %22 = vector.extract_strided_slice %19 {offsets = [0, 128], sizes = [16, 32], strides = [1, 1]} : vector<16x384xf32> to vector<16x32xf32>
    %23 = vector.extract_strided_slice %19 {offsets = [0, 256], sizes = [16, 32], strides = [1, 1]} : vector<16x384xf32> to vector<16x32xf32>
    "tpu.trace_start"() <{level = 10 : i32, message = "qd,kd->qk"}> : () -> ()
    %cst_16 = arith.constant dense<0.000000e+00> : vector<16x16xf32>
    %24 = tpu.matmul %21, %22, %cst_16 {dimension_numbers = #tpu.dot_dimension_numbers<[1], [1], [0], [0], [0, 0, 1, 0], [], []>} : vector<16x32xf32>, vector<16x32xf32>, vector<16x16xf32> -> vector<16x16xf32>
    "tpu.trace_stop"() : () -> ()
    %25 = arith.addf %24, %1 : vector<16x16xf32>
    %cst_17 = arith.constant dense<0xFF800000> : vector<16xf32>
    %26 = vector.multi_reduction <maximumf>, %25, %cst_17 [1] : vector<16x16xf32> to vector<16xf32>
    %27 = vector.shape_cast %26 : vector<16xf32> to vector<16x1xf32>
    %28 = vector.broadcast %27 : vector<16x1xf32> to vector<16x16xf32>
    %29 = arith.subf %25, %28 : vector<16x16xf32>
    %30 = math.exp %29 : vector<16x16xf32>
    %cst_18 = arith.constant dense<0.000000e+00> : vector<16xf32>
    %31 = vector.multi_reduction <add>, %30, %cst_18 [1] : vector<16x16xf32> to vector<16xf32>
    %32 = vector.shape_cast %31 : vector<16xf32> to vector<16x1xf32>
    %33 = tpu.reciprocal %32 {approx = true} : vector<16x1xf32> -> vector<16x1xf32>
    %34 = vector.broadcast %33 : vector<16x1xf32> to vector<16x16xf32>
    %35 = arith.mulf %30, %34 : vector<16x16xf32>
    %cst_19 = arith.constant dense<0.000000e+00> : vector<16x32xf32>
    %36 = tpu.matmul %35, %23, %cst_19 {dimension_numbers = #tpu.dot_dimension_numbers<[1], [0], [0], [1], [0, 0, 1, 1], [], []>} : vector<16x16xf32>, vector<16x32xf32>, vector<16x32xf32> -> vector<16x32xf32>
    %37 = arith.truncf %36 : vector<16x32xf32> to vector<16x32xbf16>
    %c0_20 = arith.constant 0 : index
    %c0_21 = arith.constant 0 : index
    %c0_22 = arith.constant 0 : index
    %c0_23 = arith.constant 0 : index
    %38 = vector.load %arg4[%c0_20, %c0_21, %c0_22, %c0_23] : memref<2x4x32x128xbf16, #tpu.memory_space<vmem>>, vector<1x1x32x128xbf16>
    %39 = vector.shape_cast %38 : vector<1x1x32x128xbf16> to vector<32x128xbf16>
    %cst_24 = arith.constant dense<0.000000e+00> : vector<16x128xf32>
    %40 = tpu.matmul %37, %39, %cst_24 {dimension_numbers = #tpu.dot_dimension_numbers<[1], [0], [0], [1], [0, 0, 1, 1], [], []>} : vector<16x32xbf16>, vector<32x128xbf16>, vector<16x128xf32> -> vector<16x128xf32>
    %41 = arith.addf %20, %40 : vector<16x128xf32>
    %42 = vector.extract_strided_slice %19 {offsets = [0, 32], sizes = [16, 32], strides = [1, 1]} : vector<16x384xf32> to vector<16x32xf32>
    %43 = vector.extract_strided_slice %19 {offsets = [0, 160], sizes = [16, 32], strides = [1, 1]} : vector<16x384xf32> to vector<16x32xf32>
    %44 = vector.extract_strided_slice %19 {offsets = [0, 288], sizes = [16, 32], strides = [1, 1]} : vector<16x384xf32> to vector<16x32xf32>
    "tpu.trace_start"() <{level = 10 : i32, message = "qd,kd->qk"}> : () -> ()
    %cst_25 = arith.constant dense<0.000000e+00> : vector<16x16xf32>
    %45 = tpu.matmul %42, %43, %cst_25 {dimension_numbers = #tpu.dot_dimension_numbers<[1], [1], [0], [0], [0, 0, 1, 0], [], []>} : vector<16x32xf32>, vector<16x32xf32>, vector<16x16xf32> -> vector<16x16xf32>
    "tpu.trace_stop"() : () -> ()
    %46 = arith.addf %45, %1 : vector<16x16xf32>
    %cst_26 = arith.constant dense<0xFF800000> : vector<16xf32>
    %47 = vector.multi_reduction <maximumf>, %46, %cst_26 [1] : vector<16x16xf32> to vector<16xf32>
    %48 = vector.shape_cast %47 : vector<16xf32> to vector<16x1xf32>
    %49 = vector.broadcast %48 : vector<16x1xf32> to vector<16x16xf32>
    %50 = arith.subf %46, %49 : vector<16x16xf32>
    %51 = math.exp %50 : vector<16x16xf32>
    %cst_27 = arith.constant dense<0.000000e+00> : vector<16xf32>
    %52 = vector.multi_reduction <add>, %51, %cst_27 [1] : vector<16x16xf32> to vector<16xf32>
    %53 = vector.shape_cast %52 : vector<16xf32> to vector<16x1xf32>
    %54 = tpu.reciprocal %53 {approx = true} : vector<16x1xf32> -> vector<16x1xf32>
    %55 = vector.broadcast %54 : vector<16x1xf32> to vector<16x16xf32>
    %56 = arith.mulf %51, %55 : vector<16x16xf32>
    %cst_28 = arith.constant dense<0.000000e+00> : vector<16x32xf32>
    %57 = tpu.matmul %56, %44, %cst_28 {dimension_numbers = #tpu.dot_dimension_numbers<[1], [0], [0], [1], [0, 0, 1, 1], [], []>} : vector<16x16xf32>, vector<16x32xf32>, vector<16x32xf32> -> vector<16x32xf32>
    %58 = arith.truncf %57 : vector<16x32xf32> to vector<16x32xbf16>
    %c0_29 = arith.constant 0 : index
    %c1 = arith.constant 1 : index
    %c0_30 = arith.constant 0 : index
    %c0_31 = arith.constant 0 : index
    %59 = vector.load %arg4[%c0_29, %c1, %c0_30, %c0_31] : memref<2x4x32x128xbf16, #tpu.memory_space<vmem>>, vector<1x1x32x128xbf16>
    %60 = vector.shape_cast %59 : vector<1x1x32x128xbf16> to vector<32x128xbf16>
    %cst_32 = arith.constant dense<0.000000e+00> : vector<16x128xf32>
    %61 = tpu.matmul %58, %60, %cst_32 {dimension_numbers = #tpu.dot_dimension_numbers<[1], [0], [0], [1], [0, 0, 1, 1], [], []>} : vector<16x32xbf16>, vector<32x128xbf16>, vector<16x128xf32> -> vector<16x128xf32>
    %62 = arith.addf %41, %61 : vector<16x128xf32>
    %63 = vector.extract_strided_slice %19 {offsets = [0, 64], sizes = [16, 32], strides = [1, 1]} : vector<16x384xf32> to vector<16x32xf32>
    %64 = vector.extract_strided_slice %19 {offsets = [0, 192], sizes = [16, 32], strides = [1, 1]} : vector<16x384xf32> to vector<16x32xf32>
    %65 = vector.extract_strided_slice %19 {offsets = [0, 320], sizes = [16, 32], strides = [1, 1]} : vector<16x384xf32> to vector<16x32xf32>
    "tpu.trace_start"() <{level = 10 : i32, message = "qd,kd->qk"}> : () -> ()
    %cst_33 = arith.constant dense<0.000000e+00> : vector<16x16xf32>
    %66 = tpu.matmul %63, %64, %cst_33 {dimension_numbers = #tpu.dot_dimension_numbers<[1], [1], [0], [0], [0, 0, 1, 0], [], []>} : vector<16x32xf32>, vector<16x32xf32>, vector<16x16xf32> -> vector<16x16xf32>
    "tpu.trace_stop"() : () -> ()
    %67 = arith.addf %66, %1 : vector<16x16xf32>
    %cst_34 = arith.constant dense<0xFF800000> : vector<16xf32>
    %68 = vector.multi_reduction <maximumf>, %67, %cst_34 [1] : vector<16x16xf32> to vector<16xf32>
    %69 = vector.shape_cast %68 : vector<16xf32> to vector<16x1xf32>
    %70 = vector.broadcast %69 : vector<16x1xf32> to vector<16x16xf32>
    %71 = arith.subf %67, %70 : vector<16x16xf32>
    %72 = math.exp %71 : vector<16x16xf32>
    %cst_35 = arith.constant dense<0.000000e+00> : vector<16xf32>
    %73 = vector.multi_reduction <add>, %72, %cst_35 [1] : vector<16x16xf32> to vector<16xf32>
    %74 = vector.shape_cast %73 : vector<16xf32> to vector<16x1xf32>
    %75 = tpu.reciprocal %74 {approx = true} : vector<16x1xf32> -> vector<16x1xf32>
    %76 = vector.broadcast %75 : vector<16x1xf32> to vector<16x16xf32>
    %77 = arith.mulf %72, %76 : vector<16x16xf32>
    %cst_36 = arith.constant dense<0.000000e+00> : vector<16x32xf32>
    %78 = tpu.matmul %77, %65, %cst_36 {dimension_numbers = #tpu.dot_dimension_numbers<[1], [0], [0], [1], [0, 0, 1, 1], [], []>} : vector<16x16xf32>, vector<16x32xf32>, vector<16x32xf32> -> vector<16x32xf32>
    %79 = arith.truncf %78 : vector<16x32xf32> to vector<16x32xbf16>
    %c0_37 = arith.constant 0 : index
    %c2 = arith.constant 2 : index
    %c0_38 = arith.constant 0 : index
    %c0_39 = arith.constant 0 : index
    %80 = vector.load %arg4[%c0_37, %c2, %c0_38, %c0_39] : memref<2x4x32x128xbf16, #tpu.memory_space<vmem>>, vector<1x1x32x128xbf16>
    %81 = vector.shape_cast %80 : vector<1x1x32x128xbf16> to vector<32x128xbf16>
    %cst_40 = arith.constant dense<0.000000e+00> : vector<16x128xf32>
    %82 = tpu.matmul %79, %81, %cst_40 {dimension_numbers = #tpu.dot_dimension_numbers<[1], [0], [0], [1], [0, 0, 1, 1], [], []>} : vector<16x32xbf16>, vector<32x128xbf16>, vector<16x128xf32> -> vector<16x128xf32>
    %83 = arith.addf %62, %82 : vector<16x128xf32>
    %84 = vector.extract_strided_slice %19 {offsets = [0, 96], sizes = [16, 32], strides = [1, 1]} : vector<16x384xf32> to vector<16x32xf32>
    %85 = vector.extract_strided_slice %19 {offsets = [0, 224], sizes = [16, 32], strides = [1, 1]} : vector<16x384xf32> to vector<16x32xf32>
    %86 = vector.extract_strided_slice %19 {offsets = [0, 352], sizes = [16, 32], strides = [1, 1]} : vector<16x384xf32> to vector<16x32xf32>
    "tpu.trace_start"() <{level = 10 : i32, message = "qd,kd->qk"}> : () -> ()
    %cst_41 = arith.constant dense<0.000000e+00> : vector<16x16xf32>
    %87 = tpu.matmul %84, %85, %cst_41 {dimension_numbers = #tpu.dot_dimension_numbers<[1], [1], [0], [0], [0, 0, 1, 0], [], []>} : vector<16x32xf32>, vector<16x32xf32>, vector<16x16xf32> -> vector<16x16xf32>
    "tpu.trace_stop"() : () -> ()
    %88 = arith.addf %87, %1 : vector<16x16xf32>
    %cst_42 = arith.constant dense<0xFF800000> : vector<16xf32>
    %89 = vector.multi_reduction <maximumf>, %88, %cst_42 [1] : vector<16x16xf32> to vector<16xf32>
    %90 = vector.shape_cast %89 : vector<16xf32> to vector<16x1xf32>
    %91 = vector.broadcast %90 : vector<16x1xf32> to vector<16x16xf32>
    %92 = arith.subf %88, %91 : vector<16x16xf32>
    %93 = math.exp %92 : vector<16x16xf32>
    %cst_43 = arith.constant dense<0.000000e+00> : vector<16xf32>
    %94 = vector.multi_reduction <add>, %93, %cst_43 [1] : vector<16x16xf32> to vector<16xf32>
    %95 = vector.shape_cast %94 : vector<16xf32> to vector<16x1xf32>
    %96 = tpu.reciprocal %95 {approx = true} : vector<16x1xf32> -> vector<16x1xf32>
    %97 = vector.broadcast %96 : vector<16x1xf32> to vector<16x16xf32>
    %98 = arith.mulf %93, %97 : vector<16x16xf32>
    %cst_44 = arith.constant dense<0.000000e+00> : vector<16x32xf32>
    %99 = tpu.matmul %98, %86, %cst_44 {dimension_numbers = #tpu.dot_dimension_numbers<[1], [0], [0], [1], [0, 0, 1, 1], [], []>} : vector<16x16xf32>, vector<16x32xf32>, vector<16x32xf32> -> vector<16x32xf32>
    %100 = arith.truncf %99 : vector<16x32xf32> to vector<16x32xbf16>
    %c0_45 = arith.constant 0 : index
    %c3 = arith.constant 3 : index
    %c0_46 = arith.constant 0 : index
    %c0_47 = arith.constant 0 : index
    %101 = vector.load %arg4[%c0_45, %c3, %c0_46, %c0_47] : memref<2x4x32x128xbf16, #tpu.memory_space<vmem>>, vector<1x1x32x128xbf16>
    %102 = vector.shape_cast %101 : vector<1x1x32x128xbf16> to vector<32x128xbf16>
    %cst_48 = arith.constant dense<0.000000e+00> : vector<16x128xf32>
    %103 = tpu.matmul %100, %102, %cst_48 {dimension_numbers = #tpu.dot_dimension_numbers<[1], [0], [0], [1], [0, 0, 1, 1], [], []>} : vector<16x32xbf16>, vector<32x128xbf16>, vector<16x128xf32> -> vector<16x128xf32>
    %104 = arith.addf %83, %103 : vector<16x128xf32>
    %105 = vector.broadcast %4 : vector<1x128xf32> to vector<16x128xf32>
    %106 = arith.addf %104, %105 : vector<16x128xf32>
    %107 = arith.addf %0, %106 : vector<16x128xf32>
    %cst_49 = arith.constant dense<0.000000e+00> : vector<16xf32>
    %108 = vector.multi_reduction <add>, %107, %cst_49 [1] : vector<16x128xf32> to vector<16xf32>
    %109 = vector.shape_cast %108 : vector<16xf32> to vector<16x1xf32>
    %cst_50 = arith.constant 1.280000e+02 : f32
    %110 = vector.broadcast %cst_50 : f32 to vector<16x1xf32>
    %111 = arith.divf %109, %110 : vector<16x1xf32>
    %112 = vector.broadcast %111 : vector<16x1xf32> to vector<16x128xf32>
    %113 = arith.subf %107, %112 : vector<16x128xf32>
    %114 = arith.mulf %113, %113 : vector<16x128xf32>
    %cst_51 = arith.constant dense<0.000000e+00> : vector<16xf32>
    %115 = vector.multi_reduction <add>, %114, %cst_51 [1] : vector<16x128xf32> to vector<16xf32>
    %116 = vector.shape_cast %115 : vector<16xf32> to vector<16x1xf32>
    %cst_52 = arith.constant 1.280000e+02 : f32
    %117 = vector.broadcast %cst_52 : f32 to vector<16x1xf32>
    %118 = arith.divf %116, %117 : vector<16x1xf32>
    %119 = vector.broadcast %111 : vector<16x1xf32> to vector<16x128xf32>
    %120 = arith.subf %107, %119 : vector<16x128xf32>
    %cst_53 = arith.constant 9.99999974E-6 : f32
    %121 = vector.broadcast %cst_53 : f32 to vector<16x1xf32>
    %122 = arith.addf %118, %121 : vector<16x1xf32>
    %123 = math.rsqrt %122 : vector<16x1xf32>
    %124 = vector.broadcast %123 : vector<16x1xf32> to vector<16x128xf32>
    %125 = arith.mulf %120, %124 : vector<16x128xf32>
    %126 = vector.broadcast %5 : vector<1x128xf32> to vector<16x128xf32>
    %127 = arith.mulf %125, %126 : vector<16x128xf32>
    %128 = vector.broadcast %6 : vector<1x128xf32> to vector<16x128xf32>
    %129 = arith.addf %127, %128 : vector<16x128xf32>
    %130 = arith.truncf %129 : vector<16x128xf32> to vector<16x128xbf16>
    %c0_54 = arith.constant 0 : index
    %c0_55 = arith.constant 0 : index
    %c0_56 = arith.constant 0 : index
    %131 = vector.load %arg5[%c0_54, %c0_55, %c0_56] : memref<2x128x512xbf16, #tpu.memory_space<vmem>>, vector<1x128x512xbf16>
    %132 = vector.shape_cast %131 : vector<1x128x512xbf16> to vector<128x512xbf16>
    %cst_57 = arith.constant dense<0.000000e+00> : vector<16x512xf32>
    %133 = tpu.matmul %130, %132, %cst_57 {dimension_numbers = #tpu.dot_dimension_numbers<[1], [0], [0], [1], [0, 0, 1, 1], [], []>} : vector<16x128xbf16>, vector<128x512xbf16>, vector<16x512xf32> -> vector<16x512xf32>
    %134 = vector.broadcast %11 : vector<1x512xf32> to vector<16x512xf32>
    %135 = arith.addf %133, %134 : vector<16x512xf32>
    %136 = arith.mulf %135, %135 : vector<16x512xf32>
    %137 = arith.mulf %135, %136 : vector<16x512xf32>
    %cst_58 = arith.constant 4.471500e-02 : f32
    %138 = vector.broadcast %cst_58 : f32 to vector<16x512xf32>
    %139 = arith.mulf %138, %137 : vector<16x512xf32>
    %140 = arith.addf %135, %139 : vector<16x512xf32>
    %cst_59 = arith.constant 0.797884583 : f32
    %141 = vector.broadcast %cst_59 : f32 to vector<16x512xf32>
    %142 = arith.mulf %141, %140 : vector<16x512xf32>
    %143 = math.tanh %142 : vector<16x512xf32>
    %cst_60 = arith.constant 1.000000e+00 : f32
    %144 = vector.broadcast %cst_60 : f32 to vector<16x512xf32>
    %145 = arith.addf %144, %143 : vector<16x512xf32>
    %cst_61 = arith.constant 5.000000e-01 : f32
    %146 = vector.broadcast %cst_61 : f32 to vector<16x512xf32>
    %147 = arith.mulf %146, %145 : vector<16x512xf32>
    %148 = arith.mulf %135, %147 : vector<16x512xf32>
    %149 = arith.truncf %148 : vector<16x512xf32> to vector<16x512xbf16>
    %c0_62 = arith.constant 0 : index
    %c0_63 = arith.constant 0 : index
    %c0_64 = arith.constant 0 : index
    %150 = vector.load %arg6[%c0_62, %c0_63, %c0_64] : memref<2x512x128xbf16, #tpu.memory_space<vmem>>, vector<1x512x128xbf16>
    %151 = vector.shape_cast %150 : vector<1x512x128xbf16> to vector<512x128xbf16>
    %cst_65 = arith.constant dense<0.000000e+00> : vector<16x128xf32>
    %152 = tpu.matmul %149, %151, %cst_65 {dimension_numbers = #tpu.dot_dimension_numbers<[1], [0], [0], [1], [0, 0, 1, 1], [], []>} : vector<16x512xbf16>, vector<512x128xbf16>, vector<16x128xf32> -> vector<16x128xf32>
    %153 = vector.broadcast %9 : vector<1x128xf32> to vector<16x128xf32>
    %154 = arith.addf %152, %153 : vector<16x128xf32>
    %155 = arith.addf %129, %154 : vector<16x128xf32>
    %cst_66 = arith.constant dense<0.000000e+00> : vector<16xf32>
    %156 = vector.multi_reduction <add>, %155, %cst_66 [1] : vector<16x128xf32> to vector<16xf32>
    %157 = vector.shape_cast %156 : vector<16xf32> to vector<16x1xf32>
    %cst_67 = arith.constant 1.280000e+02 : f32
    %158 = vector.broadcast %cst_67 : f32 to vector<16x1xf32>
    %159 = arith.divf %157, %158 : vector<16x1xf32>
    %160 = vector.broadcast %159 : vector<16x1xf32> to vector<16x128xf32>
    %161 = arith.subf %155, %160 : vector<16x128xf32>
    %162 = arith.mulf %161, %161 : vector<16x128xf32>
    %cst_68 = arith.constant dense<0.000000e+00> : vector<16xf32>
    %163 = vector.multi_reduction <add>, %162, %cst_68 [1] : vector<16x128xf32> to vector<16xf32>
    %164 = vector.shape_cast %163 : vector<16xf32> to vector<16x1xf32>
    %cst_69 = arith.constant 1.280000e+02 : f32
    %165 = vector.broadcast %cst_69 : f32 to vector<16x1xf32>
    %166 = arith.divf %164, %165 : vector<16x1xf32>
    %167 = vector.broadcast %159 : vector<16x1xf32> to vector<16x128xf32>
    %168 = arith.subf %155, %167 : vector<16x128xf32>
    %cst_70 = arith.constant 9.99999974E-6 : f32
    %169 = vector.broadcast %cst_70 : f32 to vector<16x1xf32>
    %170 = arith.addf %166, %169 : vector<16x1xf32>
    %171 = math.rsqrt %170 : vector<16x1xf32>
    %172 = vector.broadcast %171 : vector<16x1xf32> to vector<16x128xf32>
    %173 = arith.mulf %168, %172 : vector<16x128xf32>
    %174 = vector.broadcast %7 : vector<1x128xf32> to vector<16x128xf32>
    %175 = arith.mulf %173, %174 : vector<16x128xf32>
    %176 = vector.broadcast %8 : vector<1x128xf32> to vector<16x128xf32>
    %177 = arith.addf %175, %176 : vector<16x128xf32>
    %c1_71 = arith.constant 1 : index
    %c0_72 = arith.constant 0 : index
    %c0_73 = arith.constant 0 : index
    %178 = vector.load %arg7[%c1_71, %c0_72, %c0_73] : memref<2x8x128xf32, #tpu.memory_space<vmem>>, vector<1x8x128xf32>
    %179 = vector.shape_cast %178 : vector<1x8x128xf32> to vector<8x128xf32>
    %180 = vector.extract_strided_slice %179 {offsets = [0, 0], sizes = [1, 128], strides = [1, 1]} : vector<8x128xf32> to vector<1x128xf32>
    %181 = vector.extract_strided_slice %179 {offsets = [1, 0], sizes = [1, 128], strides = [1, 1]} : vector<8x128xf32> to vector<1x128xf32>
    %182 = vector.extract_strided_slice %179 {offsets = [2, 0], sizes = [1, 128], strides = [1, 1]} : vector<8x128xf32> to vector<1x128xf32>
    %183 = vector.extract_strided_slice %179 {offsets = [3, 0], sizes = [1, 128], strides = [1, 1]} : vector<8x128xf32> to vector<1x128xf32>
    %184 = vector.extract_strided_slice %179 {offsets = [4, 0], sizes = [1, 128], strides = [1, 1]} : vector<8x128xf32> to vector<1x128xf32>
    %185 = vector.extract_strided_slice %179 {offsets = [5, 0], sizes = [1, 128], strides = [1, 1]} : vector<8x128xf32> to vector<1x128xf32>
    %c1_74 = arith.constant 1 : index
    %c0_75 = arith.constant 0 : index
    %c0_76 = arith.constant 0 : index
    %186 = vector.load %arg8[%c1_74, %c0_75, %c0_76] : memref<2x1x512xf32, #tpu.memory_space<vmem>>, vector<1x1x512xf32>
    %187 = vector.shape_cast %186 : vector<1x1x512xf32> to vector<1x512xf32>
    %c1_77 = arith.constant 1 : index
    %c0_78 = arith.constant 0 : index
    %c0_79 = arith.constant 0 : index
    %188 = vector.load %arg3[%c1_77, %c0_78, %c0_79] : memref<2x1x384xf32, #tpu.memory_space<vmem>>, vector<1x1x384xf32>
    %189 = vector.shape_cast %188 : vector<1x1x384xf32> to vector<1x384xf32>
    %190 = arith.truncf %177 : vector<16x128xf32> to vector<16x128xbf16>
    %c1_80 = arith.constant 1 : index
    %c0_81 = arith.constant 0 : index
    %c0_82 = arith.constant 0 : index
    %191 = vector.load %arg2[%c1_80, %c0_81, %c0_82] : memref<2x128x384xbf16, #tpu.memory_space<vmem>>, vector<1x128x384xbf16>
    %192 = vector.shape_cast %191 : vector<1x128x384xbf16> to vector<128x384xbf16>
    %cst_83 = arith.constant dense<0.000000e+00> : vector<16x384xf32>
    %193 = tpu.matmul %190, %192, %cst_83 {dimension_numbers = #tpu.dot_dimension_numbers<[1], [0], [0], [1], [0, 0, 1, 1], [], []>} : vector<16x128xbf16>, vector<128x384xbf16>, vector<16x384xf32> -> vector<16x384xf32>
    %194 = vector.broadcast %189 : vector<1x384xf32> to vector<16x384xf32>
    %195 = arith.addf %193, %194 : vector<16x384xf32>
    %cst_84 = arith.constant 0.000000e+00 : f32
    %196 = vector.broadcast %cst_84 : f32 to vector<16x128xf32>
    %197 = vector.extract_strided_slice %195 {offsets = [0, 0], sizes = [16, 32], strides = [1, 1]} : vector<16x384xf32> to vector<16x32xf32>
    %198 = vector.extract_strided_slice %195 {offsets = [0, 128], sizes = [16, 32], strides = [1, 1]} : vector<16x384xf32> to vector<16x32xf32>
    %199 = vector.extract_strided_slice %195 {offsets = [0, 256], sizes = [16, 32], strides = [1, 1]} : vector<16x384xf32> to vector<16x32xf32>
    "tpu.trace_start"() <{level = 10 : i32, message = "qd,kd->qk"}> : () -> ()
    %cst_85 = arith.constant dense<0.000000e+00> : vector<16x16xf32>
    %200 = tpu.matmul %197, %198, %cst_85 {dimension_numbers = #tpu.dot_dimension_numbers<[1], [1], [0], [0], [0, 0, 1, 0], [], []>} : vector<16x32xf32>, vector<16x32xf32>, vector<16x16xf32> -> vector<16x16xf32>
    "tpu.trace_stop"() : () -> ()
    %201 = arith.addf %200, %1 : vector<16x16xf32>
    %cst_86 = arith.constant dense<0xFF800000> : vector<16xf32>
    %202 = vector.multi_reduction <maximumf>, %201, %cst_86 [1] : vector<16x16xf32> to vector<16xf32>
    %203 = vector.shape_cast %202 : vector<16xf32> to vector<16x1xf32>
    %204 = vector.broadcast %203 : vector<16x1xf32> to vector<16x16xf32>
    %205 = arith.subf %201, %204 : vector<16x16xf32>
    %206 = math.exp %205 : vector<16x16xf32>
    %cst_87 = arith.constant dense<0.000000e+00> : vector<16xf32>
    %207 = vector.multi_reduction <add>, %206, %cst_87 [1] : vector<16x16xf32> to vector<16xf32>
    %208 = vector.shape_cast %207 : vector<16xf32> to vector<16x1xf32>
    %209 = tpu.reciprocal %208 {approx = true} : vector<16x1xf32> -> vector<16x1xf32>
    %210 = vector.broadcast %209 : vector<16x1xf32> to vector<16x16xf32>
    %211 = arith.mulf %206, %210 : vector<16x16xf32>
    %cst_88 = arith.constant dense<0.000000e+00> : vector<16x32xf32>
    %212 = tpu.matmul %211, %199, %cst_88 {dimension_numbers = #tpu.dot_dimension_numbers<[1], [0], [0], [1], [0, 0, 1, 1], [], []>} : vector<16x16xf32>, vector<16x32xf32>, vector<16x32xf32> -> vector<16x32xf32>
    %213 = arith.truncf %212 : vector<16x32xf32> to vector<16x32xbf16>
    %c1_89 = arith.constant 1 : index
    %c0_90 = arith.constant 0 : index
    %c0_91 = arith.constant 0 : index
    %c0_92 = arith.constant 0 : index
    %214 = vector.load %arg4[%c1_89, %c0_90, %c0_91, %c0_92] : memref<2x4x32x128xbf16, #tpu.memory_space<vmem>>, vector<1x1x32x128xbf16>
    %215 = vector.shape_cast %214 : vector<1x1x32x128xbf16> to vector<32x128xbf16>
    %cst_93 = arith.constant dense<0.000000e+00> : vector<16x128xf32>
    %216 = tpu.matmul %213, %215, %cst_93 {dimension_numbers = #tpu.dot_dimension_numbers<[1], [0], [0], [1], [0, 0, 1, 1], [], []>} : vector<16x32xbf16>, vector<32x128xbf16>, vector<16x128xf32> -> vector<16x128xf32>
    %217 = arith.addf %196, %216 : vector<16x128xf32>
    %218 = vector.extract_strided_slice %195 {offsets = [0, 32], sizes = [16, 32], strides = [1, 1]} : vector<16x384xf32> to vector<16x32xf32>
    %219 = vector.extract_strided_slice %195 {offsets = [0, 160], sizes = [16, 32], strides = [1, 1]} : vector<16x384xf32> to vector<16x32xf32>
    %220 = vector.extract_strided_slice %195 {offsets = [0, 288], sizes = [16, 32], strides = [1, 1]} : vector<16x384xf32> to vector<16x32xf32>
    "tpu.trace_start"() <{level = 10 : i32, message = "qd,kd->qk"}> : () -> ()
    %cst_94 = arith.constant dense<0.000000e+00> : vector<16x16xf32>
    %221 = tpu.matmul %218, %219, %cst_94 {dimension_numbers = #tpu.dot_dimension_numbers<[1], [1], [0], [0], [0, 0, 1, 0], [], []>} : vector<16x32xf32>, vector<16x32xf32>, vector<16x16xf32> -> vector<16x16xf32>
    "tpu.trace_stop"() : () -> ()
    %222 = arith.addf %221, %1 : vector<16x16xf32>
    %cst_95 = arith.constant dense<0xFF800000> : vector<16xf32>
    %223 = vector.multi_reduction <maximumf>, %222, %cst_95 [1] : vector<16x16xf32> to vector<16xf32>
    %224 = vector.shape_cast %223 : vector<16xf32> to vector<16x1xf32>
    %225 = vector.broadcast %224 : vector<16x1xf32> to vector<16x16xf32>
    %226 = arith.subf %222, %225 : vector<16x16xf32>
    %227 = math.exp %226 : vector<16x16xf32>
    %cst_96 = arith.constant dense<0.000000e+00> : vector<16xf32>
    %228 = vector.multi_reduction <add>, %227, %cst_96 [1] : vector<16x16xf32> to vector<16xf32>
    %229 = vector.shape_cast %228 : vector<16xf32> to vector<16x1xf32>
    %230 = tpu.reciprocal %229 {approx = true} : vector<16x1xf32> -> vector<16x1xf32>
    %231 = vector.broadcast %230 : vector<16x1xf32> to vector<16x16xf32>
    %232 = arith.mulf %227, %231 : vector<16x16xf32>
    %cst_97 = arith.constant dense<0.000000e+00> : vector<16x32xf32>
    %233 = tpu.matmul %232, %220, %cst_97 {dimension_numbers = #tpu.dot_dimension_numbers<[1], [0], [0], [1], [0, 0, 1, 1], [], []>} : vector<16x16xf32>, vector<16x32xf32>, vector<16x32xf32> -> vector<16x32xf32>
    %234 = arith.truncf %233 : vector<16x32xf32> to vector<16x32xbf16>
    %c1_98 = arith.constant 1 : index
    %c1_99 = arith.constant 1 : index
    %c0_100 = arith.constant 0 : index
    %c0_101 = arith.constant 0 : index
    %235 = vector.load %arg4[%c1_98, %c1_99, %c0_100, %c0_101] : memref<2x4x32x128xbf16, #tpu.memory_space<vmem>>, vector<1x1x32x128xbf16>
    %236 = vector.shape_cast %235 : vector<1x1x32x128xbf16> to vector<32x128xbf16>
    %cst_102 = arith.constant dense<0.000000e+00> : vector<16x128xf32>
    %237 = tpu.matmul %234, %236, %cst_102 {dimension_numbers = #tpu.dot_dimension_numbers<[1], [0], [0], [1], [0, 0, 1, 1], [], []>} : vector<16x32xbf16>, vector<32x128xbf16>, vector<16x128xf32> -> vector<16x128xf32>
    %238 = arith.addf %217, %237 : vector<16x128xf32>
    %239 = vector.extract_strided_slice %195 {offsets = [0, 64], sizes = [16, 32], strides = [1, 1]} : vector<16x384xf32> to vector<16x32xf32>
    %240 = vector.extract_strided_slice %195 {offsets = [0, 192], sizes = [16, 32], strides = [1, 1]} : vector<16x384xf32> to vector<16x32xf32>
    %241 = vector.extract_strided_slice %195 {offsets = [0, 320], sizes = [16, 32], strides = [1, 1]} : vector<16x384xf32> to vector<16x32xf32>
    "tpu.trace_start"() <{level = 10 : i32, message = "qd,kd->qk"}> : () -> ()
    %cst_103 = arith.constant dense<0.000000e+00> : vector<16x16xf32>
    %242 = tpu.matmul %239, %240, %cst_103 {dimension_numbers = #tpu.dot_dimension_numbers<[1], [1], [0], [0], [0, 0, 1, 0], [], []>} : vector<16x32xf32>, vector<16x32xf32>, vector<16x16xf32> -> vector<16x16xf32>
    "tpu.trace_stop"() : () -> ()
    %243 = arith.addf %242, %1 : vector<16x16xf32>
    %cst_104 = arith.constant dense<0xFF800000> : vector<16xf32>
    %244 = vector.multi_reduction <maximumf>, %243, %cst_104 [1] : vector<16x16xf32> to vector<16xf32>
    %245 = vector.shape_cast %244 : vector<16xf32> to vector<16x1xf32>
    %246 = vector.broadcast %245 : vector<16x1xf32> to vector<16x16xf32>
    %247 = arith.subf %243, %246 : vector<16x16xf32>
    %248 = math.exp %247 : vector<16x16xf32>
    %cst_105 = arith.constant dense<0.000000e+00> : vector<16xf32>
    %249 = vector.multi_reduction <add>, %248, %cst_105 [1] : vector<16x16xf32> to vector<16xf32>
    %250 = vector.shape_cast %249 : vector<16xf32> to vector<16x1xf32>
    %251 = tpu.reciprocal %250 {approx = true} : vector<16x1xf32> -> vector<16x1xf32>
    %252 = vector.broadcast %251 : vector<16x1xf32> to vector<16x16xf32>
    %253 = arith.mulf %248, %252 : vector<16x16xf32>
    %cst_106 = arith.constant dense<0.000000e+00> : vector<16x32xf32>
    %254 = tpu.matmul %253, %241, %cst_106 {dimension_numbers = #tpu.dot_dimension_numbers<[1], [0], [0], [1], [0, 0, 1, 1], [], []>} : vector<16x16xf32>, vector<16x32xf32>, vector<16x32xf32> -> vector<16x32xf32>
    %255 = arith.truncf %254 : vector<16x32xf32> to vector<16x32xbf16>
    %c1_107 = arith.constant 1 : index
    %c2_108 = arith.constant 2 : index
    %c0_109 = arith.constant 0 : index
    %c0_110 = arith.constant 0 : index
    %256 = vector.load %arg4[%c1_107, %c2_108, %c0_109, %c0_110] : memref<2x4x32x128xbf16, #tpu.memory_space<vmem>>, vector<1x1x32x128xbf16>
    %257 = vector.shape_cast %256 : vector<1x1x32x128xbf16> to vector<32x128xbf16>
    %cst_111 = arith.constant dense<0.000000e+00> : vector<16x128xf32>
    %258 = tpu.matmul %255, %257, %cst_111 {dimension_numbers = #tpu.dot_dimension_numbers<[1], [0], [0], [1], [0, 0, 1, 1], [], []>} : vector<16x32xbf16>, vector<32x128xbf16>, vector<16x128xf32> -> vector<16x128xf32>
    %259 = arith.addf %238, %258 : vector<16x128xf32>
    %260 = vector.extract_strided_slice %195 {offsets = [0, 96], sizes = [16, 32], strides = [1, 1]} : vector<16x384xf32> to vector<16x32xf32>
    %261 = vector.extract_strided_slice %195 {offsets = [0, 224], sizes = [16, 32], strides = [1, 1]} : vector<16x384xf32> to vector<16x32xf32>
    %262 = vector.extract_strided_slice %195 {offsets = [0, 352], sizes = [16, 32], strides = [1, 1]} : vector<16x384xf32> to vector<16x32xf32>
    "tpu.trace_start"() <{level = 10 : i32, message = "qd,kd->qk"}> : () -> ()
    %cst_112 = arith.constant dense<0.000000e+00> : vector<16x16xf32>
    %263 = tpu.matmul %260, %261, %cst_112 {dimension_numbers = #tpu.dot_dimension_numbers<[1], [1], [0], [0], [0, 0, 1, 0], [], []>} : vector<16x32xf32>, vector<16x32xf32>, vector<16x16xf32> -> vector<16x16xf32>
    "tpu.trace_stop"() : () -> ()
    %264 = arith.addf %263, %1 : vector<16x16xf32>
    %cst_113 = arith.constant dense<0xFF800000> : vector<16xf32>
    %265 = vector.multi_reduction <maximumf>, %264, %cst_113 [1] : vector<16x16xf32> to vector<16xf32>
    %266 = vector.shape_cast %265 : vector<16xf32> to vector<16x1xf32>
    %267 = vector.broadcast %266 : vector<16x1xf32> to vector<16x16xf32>
    %268 = arith.subf %264, %267 : vector<16x16xf32>
    %269 = math.exp %268 : vector<16x16xf32>
    %cst_114 = arith.constant dense<0.000000e+00> : vector<16xf32>
    %270 = vector.multi_reduction <add>, %269, %cst_114 [1] : vector<16x16xf32> to vector<16xf32>
    %271 = vector.shape_cast %270 : vector<16xf32> to vector<16x1xf32>
    %272 = tpu.reciprocal %271 {approx = true} : vector<16x1xf32> -> vector<16x1xf32>
    %273 = vector.broadcast %272 : vector<16x1xf32> to vector<16x16xf32>
    %274 = arith.mulf %269, %273 : vector<16x16xf32>
    %cst_115 = arith.constant dense<0.000000e+00> : vector<16x32xf32>
    %275 = tpu.matmul %274, %262, %cst_115 {dimension_numbers = #tpu.dot_dimension_numbers<[1], [0], [0], [1], [0, 0, 1, 1], [], []>} : vector<16x16xf32>, vector<16x32xf32>, vector<16x32xf32> -> vector<16x32xf32>
    %276 = arith.truncf %275 : vector<16x32xf32> to vector<16x32xbf16>
    %c1_116 = arith.constant 1 : index
    %c3_117 = arith.constant 3 : index
    %c0_118 = arith.constant 0 : index
    %c0_119 = arith.constant 0 : index
    %277 = vector.load %arg4[%c1_116, %c3_117, %c0_118, %c0_119] : memref<2x4x32x128xbf16, #tpu.memory_space<vmem>>, vector<1x1x32x128xbf16>
    %278 = vector.shape_cast %277 : vector<1x1x32x128xbf16> to vector<32x128xbf16>
    %cst_120 = arith.constant dense<0.000000e+00> : vector<16x128xf32>
    %279 = tpu.matmul %276, %278, %cst_120 {dimension_numbers = #tpu.dot_dimension_numbers<[1], [0], [0], [1], [0, 0, 1, 1], [], []>} : vector<16x32xbf16>, vector<32x128xbf16>, vector<16x128xf32> -> vector<16x128xf32>
    %280 = arith.addf %259, %279 : vector<16x128xf32>
    %281 = vector.broadcast %180 : vector<1x128xf32> to vector<16x128xf32>
    %282 = arith.addf %280, %281 : vector<16x128xf32>
    %283 = arith.addf %177, %282 : vector<16x128xf32>
    %cst_121 = arith.constant dense<0.000000e+00> : vector<16xf32>
    %284 = vector.multi_reduction <add>, %283, %cst_121 [1] : vector<16x128xf32> to vector<16xf32>
    %285 = vector.shape_cast %284 : vector<16xf32> to vector<16x1xf32>
    %cst_122 = arith.constant 1.280000e+02 : f32
    %286 = vector.broadcast %cst_122 : f32 to vector<16x1xf32>
    %287 = arith.divf %285, %286 : vector<16x1xf32>
    %288 = vector.broadcast %287 : vector<16x1xf32> to vector<16x128xf32>
    %289 = arith.subf %283, %288 : vector<16x128xf32>
    %290 = arith.mulf %289, %289 : vector<16x128xf32>
    %cst_123 = arith.constant dense<0.000000e+00> : vector<16xf32>
    %291 = vector.multi_reduction <add>, %290, %cst_123 [1] : vector<16x128xf32> to vector<16xf32>
    %292 = vector.shape_cast %291 : vector<16xf32> to vector<16x1xf32>
    %cst_124 = arith.constant 1.280000e+02 : f32
    %293 = vector.broadcast %cst_124 : f32 to vector<16x1xf32>
    %294 = arith.divf %292, %293 : vector<16x1xf32>
    %295 = vector.broadcast %287 : vector<16x1xf32> to vector<16x128xf32>
    %296 = arith.subf %283, %295 : vector<16x128xf32>
    %cst_125 = arith.constant 9.99999974E-6 : f32
    %297 = vector.broadcast %cst_125 : f32 to vector<16x1xf32>
    %298 = arith.addf %294, %297 : vector<16x1xf32>
    %299 = math.rsqrt %298 : vector<16x1xf32>
    %300 = vector.broadcast %299 : vector<16x1xf32> to vector<16x128xf32>
    %301 = arith.mulf %296, %300 : vector<16x128xf32>
    %302 = vector.broadcast %181 : vector<1x128xf32> to vector<16x128xf32>
    %303 = arith.mulf %301, %302 : vector<16x128xf32>
    %304 = vector.broadcast %182 : vector<1x128xf32> to vector<16x128xf32>
    %305 = arith.addf %303, %304 : vector<16x128xf32>
    %306 = arith.truncf %305 : vector<16x128xf32> to vector<16x128xbf16>
    %c1_126 = arith.constant 1 : index
    %c0_127 = arith.constant 0 : index
    %c0_128 = arith.constant 0 : index
    %307 = vector.load %arg5[%c1_126, %c0_127, %c0_128] : memref<2x128x512xbf16, #tpu.memory_space<vmem>>, vector<1x128x512xbf16>
    %308 = vector.shape_cast %307 : vector<1x128x512xbf16> to vector<128x512xbf16>
    %cst_129 = arith.constant dense<0.000000e+00> : vector<16x512xf32>
    %309 = tpu.matmul %306, %308, %cst_129 {dimension_numbers = #tpu.dot_dimension_numbers<[1], [0], [0], [1], [0, 0, 1, 1], [], []>} : vector<16x128xbf16>, vector<128x512xbf16>, vector<16x512xf32> -> vector<16x512xf32>
    %310 = vector.broadcast %187 : vector<1x512xf32> to vector<16x512xf32>
    %311 = arith.addf %309, %310 : vector<16x512xf32>
    %312 = arith.mulf %311, %311 : vector<16x512xf32>
    %313 = arith.mulf %311, %312 : vector<16x512xf32>
    %cst_130 = arith.constant 4.471500e-02 : f32
    %314 = vector.broadcast %cst_130 : f32 to vector<16x512xf32>
    %315 = arith.mulf %314, %313 : vector<16x512xf32>
    %316 = arith.addf %311, %315 : vector<16x512xf32>
    %cst_131 = arith.constant 0.797884583 : f32
    %317 = vector.broadcast %cst_131 : f32 to vector<16x512xf32>
    %318 = arith.mulf %317, %316 : vector<16x512xf32>
    %319 = math.tanh %318 : vector<16x512xf32>
    %cst_132 = arith.constant 1.000000e+00 : f32
    %320 = vector.broadcast %cst_132 : f32 to vector<16x512xf32>
    %321 = arith.addf %320, %319 : vector<16x512xf32>
    %cst_133 = arith.constant 5.000000e-01 : f32
    %322 = vector.broadcast %cst_133 : f32 to vector<16x512xf32>
    %323 = arith.mulf %322, %321 : vector<16x512xf32>
    %324 = arith.mulf %311, %323 : vector<16x512xf32>
    %325 = arith.truncf %324 : vector<16x512xf32> to vector<16x512xbf16>
    %c1_134 = arith.constant 1 : index
    %c0_135 = arith.constant 0 : index
    %c0_136 = arith.constant 0 : index
    %326 = vector.load %arg6[%c1_134, %c0_135, %c0_136] : memref<2x512x128xbf16, #tpu.memory_space<vmem>>, vector<1x512x128xbf16>
    %327 = vector.shape_cast %326 : vector<1x512x128xbf16> to vector<512x128xbf16>
    %cst_137 = arith.constant dense<0.000000e+00> : vector<16x128xf32>
    %328 = tpu.matmul %325, %327, %cst_137 {dimension_numbers = #tpu.dot_dimension_numbers<[1], [0], [0], [1], [0, 0, 1, 1], [], []>} : vector<16x512xbf16>, vector<512x128xbf16>, vector<16x128xf32> -> vector<16x128xf32>
    %329 = vector.broadcast %185 : vector<1x128xf32> to vector<16x128xf32>
    %330 = arith.addf %328, %329 : vector<16x128xf32>
    %331 = arith.addf %305, %330 : vector<16x128xf32>
    %cst_138 = arith.constant dense<0.000000e+00> : vector<16xf32>
    %332 = vector.multi_reduction <add>, %331, %cst_138 [1] : vector<16x128xf32> to vector<16xf32>
    %333 = vector.shape_cast %332 : vector<16xf32> to vector<16x1xf32>
    %cst_139 = arith.constant 1.280000e+02 : f32
    %334 = vector.broadcast %cst_139 : f32 to vector<16x1xf32>
    %335 = arith.divf %333, %334 : vector<16x1xf32>
    %336 = vector.broadcast %335 : vector<16x1xf32> to vector<16x128xf32>
    %337 = arith.subf %331, %336 : vector<16x128xf32>
    %338 = arith.mulf %337, %337 : vector<16x128xf32>
    %cst_140 = arith.constant dense<0.000000e+00> : vector<16xf32>
    %339 = vector.multi_reduction <add>, %338, %cst_140 [1] : vector<16x128xf32> to vector<16xf32>
    %340 = vector.shape_cast %339 : vector<16xf32> to vector<16x1xf32>
    %cst_141 = arith.constant 1.280000e+02 : f32
    %341 = vector.broadcast %cst_141 : f32 to vector<16x1xf32>
    %342 = arith.divf %340, %341 : vector<16x1xf32>
    %343 = vector.broadcast %335 : vector<16x1xf32> to vector<16x128xf32>
    %344 = arith.subf %331, %343 : vector<16x128xf32>
    %cst_142 = arith.constant 9.99999974E-6 : f32
    %345 = vector.broadcast %cst_142 : f32 to vector<16x1xf32>
    %346 = arith.addf %342, %345 : vector<16x1xf32>
    %347 = math.rsqrt %346 : vector<16x1xf32>
    %348 = vector.broadcast %347 : vector<16x1xf32> to vector<16x128xf32>
    %349 = arith.mulf %344, %348 : vector<16x128xf32>
    %350 = vector.broadcast %183 : vector<1x128xf32> to vector<16x128xf32>
    %351 = arith.mulf %349, %350 : vector<16x128xf32>
    %352 = vector.broadcast %184 : vector<1x128xf32> to vector<16x128xf32>
    %353 = arith.addf %351, %352 : vector<16x128xf32>
    %354 = arith.truncf %353 : vector<16x128xf32> to vector<16x128xbf16>
    %c0_143 = arith.constant 0 : index
    %c0_144 = arith.constant 0 : index
    %355 = vector.load %arg9[%c0_143, %c0_144] : memref<128x128xbf16, #tpu.memory_space<vmem>>, vector<128x128xbf16>
    %cst_145 = arith.constant dense<0.000000e+00> : vector<16x128xf32>
    %356 = tpu.matmul %354, %355, %cst_145 {dimension_numbers = #tpu.dot_dimension_numbers<[1], [0], [0], [1], [0, 0, 1, 1], [], []>} : vector<16x128xbf16>, vector<128x128xbf16>, vector<16x128xf32> -> vector<16x128xf32>
    %c0_146 = arith.constant 0 : index
    %c0_147 = arith.constant 0 : index
    %357 = vector.load %arg10[%c0_146, %c0_147] : memref<1x128xf32, #tpu.memory_space<vmem>>, vector<1x128xf32>
    %358 = vector.broadcast %357 : vector<1x128xf32> to vector<16x128xf32>
    %359 = arith.addf %356, %358 : vector<16x128xf32>
    %c0_148 = arith.constant 0 : index
    %c0_149 = arith.constant 0 : index
    %360 = vector.load %arg11[%c0_148, %c0_149] : memref<16x128xf32, #tpu.memory_space<vmem>>, vector<16x128xf32>
    tpu.vector_store %arg11[%c0_148, %c0_149], %359 {strides = array<i32>} : memref<16x128xf32, #tpu.memory_space<vmem>>, vector<16x128xf32>,
    return
  }
}

</mosaic_0001>

<llo_original>
// kernel: chrombert_lm_forward.1
$region0: #{chrombert_lm_forward.1}
  #allocation0 [shape = 'u32[]', space=smem, size = 0x4, offset = 0x4, fixed_abs, tag = 'smem constant byte address 0x4 - core index']
  #allocation1 [shape = 'u32[144,128]{1,0:T(1,128)}', space=vmem, size = 0x12000, scoped, tag = 'internal scratch']
  %s0 = inlined_call_operand.vmem [shape: f32[16,128], index: 0, kind: input, shape index: {}]
  %s1 = inlined_call_operand.vmem [shape: f32[16,16], index: 1, kind: input, shape index: {}]
  %s2 = inlined_call_operand.vmem [shape: bf16[2,128,384], index: 2, kind: input, shape index: {}]
  %s3 = inlined_call_operand.vmem [shape: f32[2,1,384], index: 3, kind: input, shape index: {}]
  %s4 = inlined_call_operand.hbm [shape: bf16[2,4,32,128], index: 4, kind: input, shape index: {}]
  %s5 = inlined_call_operand.hbm [shape: bf16[2,128,512], index: 5, kind: input, shape index: {}]
  %s6 = inlined_call_operand.hbm [shape: bf16[2,512,128], index: 6, kind: input, shape index: {}]
  %s7 = inlined_call_operand.hbm [shape: f32[2,8,128], index: 7, kind: input, shape index: {}]
  %s8 = inlined_call_operand.hbm [shape: f32[2,1,512], index: 8, kind: input, shape index: {}]
  %s9 = inlined_call_operand.hbm [shape: bf16[128,128], index: 9, kind: input, shape index: {}]
  %s10 = inlined_call_operand.hbm [shape: f32[1,128], index: 10, kind: input, shape index: {}]
  %s11 = inlined_call_operand.vmem [shape: f32[16,128], index: 11, kind: output, shape index: {}]
  %s12 = sld [smem:[#allocation0]]
  $region82: #{chrombert_lm_forward.1} parent=0
    _
  %s14 = ssub.s32 1, %s12
  %s15 = scalar_select 0, %s14, %s12
  $region1: #{chrombert_lm_forward.1} parent=0
    #allocation2 [shape = 'u8[65536]{0}', space=vmem, size = 0x10000, scoped, tag = 'input window, operand 4, single buffered']
    #allocation3 [shape = 's32[1]{0}', space=sflag, size = 0x4, scoped, tag = 'scoped memory for chrombert_lm_forward.1']
    #allocation4 [shape = 'u8[262144]{0}', space=vmem, size = 0x40000, scoped, tag = 'input window, operand 5, single buffered']
    #allocation5 [shape = 's32[1]{0}', space=sflag, size = 0x4, scoped, tag = 'scoped memory for chrombert_lm_forward.1']
    #allocation6 [shape = 'u8[262144]{0}', space=vmem, size = 0x40000, scoped, tag = 'input window, operand 6, single buffered']
    #allocation7 [shape = 'u8[8192]{0}', space=vmem, size = 0x2000, scoped, tag = 'input window, operand 7, single buffered']
    #allocation8 [shape = 's32[1]{0}', space=sflag, size = 0x4, scoped, tag = 'scoped memory for chrombert_lm_forward.1']
    #allocation9 [shape = 'u8[4096]{0}', space=vmem, size = 0x1000, scoped, tag = 'input window, operand 8, single buffered']
    #allocation10 [shape = 'u8[32768]{0}', space=vmem, size = 0x8000, scoped, tag = 'input window, operand 9, single buffered']
    #allocation11 [shape = 's32[1]{0}', space=sflag, size = 0x4, scoped, tag = 'scoped memory for chrombert_lm_forward.1']
    #allocation12 [shape = 'u8[512]{0}', space=vmem, size = 0x400, scoped, tag = 'input window, operand 10, single buffered']
    %16 = vsyncpa [#allocation3], 0
    %17 = vsyncpa [#allocation5], 0
    %18 = vsyncpa [#allocation8], 0
    %19 = vsyncpa [#allocation11], 0
    // Predicated region
    $region2: #{chrombert_lm_forward.1} parent=1 // pred_check
      _
    $region3: #{chrombert_lm_forward.1} parent=1 // pred_check_branch
      %21 = sbr.rel (0) target = $region5
    $region4: #{chrombert_lm_forward.1} parent=1 // pred_region
      _
    $region5: #{chrombert_lm_forward.1} parent=1 // pred_fallthru
      _
    // Predicated region
    $region6: #{chrombert_lm_forward.1} parent=1 // pred_check
      _
    $region7: #{chrombert_lm_forward.1} parent=1 // pred_check_branch
      %23 = sbr.rel (0) target = $region9
    $region8: #{chrombert_lm_forward.1} parent=1 // pred_region
      _
    $region9: #{chrombert_lm_forward.1} parent=1 // pred_fallthru
      _
    // Predicated region
    $region10: #{chrombert_lm_forward.1} parent=1 // pred_check
      _
    $region11: #{chrombert_lm_forward.1} parent=1 // pred_check_branch
      %25 = sbr.rel (0) target = $region13
    $region12: #{chrombert_lm_forward.1} parent=1 // pred_region
      _
    $region13: #{chrombert_lm_forward.1} parent=1 // pred_fallthru
      _
    // Predicated region
    $region14: #{chrombert_lm_forward.1} parent=1 // pred_check
      _
    $region15: #{chrombert_lm_forward.1} parent=1 // pred_check_branch
      %27 = sbr.rel (0) target = $region17
    $region16: #{chrombert_lm_forward.1} parent=1 // pred_region
      _
    $region17: #{chrombert_lm_forward.1} parent=1 // pred_fallthru
      _
    // Predicated region
    $region18: #{chrombert_lm_forward.1} parent=1 // pred_check
      _
    $region19: #{chrombert_lm_forward.1} parent=1 // pred_check_branch
      %29 = sbr.rel (0) target = $region21
    $region20: #{chrombert_lm_forward.1} parent=1 // pred_region
      %s31 = ssub.s32 2048, 2048
      %32 = vsyncadd [#allocation3], %s31
      %s33 = sshll.u32 [#allocation2], 4
      %s34 = int_to_ptr.vmem [resolvable:$true] %s33
      %39 = dma.hbm_to_vmem [thread:$0]  %s4, 2048, %s34, [#allocation3], 64, 64, 4
    $region21: #{chrombert_lm_forward.1} parent=1 // pred_fallthru
      _
    // Predicated region
    $region22: #{chrombert_lm_forward.1} parent=1 // pred_check
      _
    $region23: #{chrombert_lm_forward.1} parent=1 // pred_check_branch
      %41 = sbr.rel (0) target = $region25
    $region24: #{chrombert_lm_forward.1} parent=1 // pred_region
      %s43 = ssub.s32 8192, 8192
      %44 = vsyncadd [#allocation5], %s43
      %s45 = sshll.u32 [#allocation4], 4
      %s46 = int_to_ptr.vmem [resolvable:$true] %s45
      %51 = dma.hbm_to_vmem [thread:$0]  %s5, 8192, %s46, [#allocation5], 256, 256, 16
    $region25: #{chrombert_lm_forward.1} parent=1 // pred_fallthru
      _
    // Predicated region
    $region26: #{chrombert_lm_forward.1} parent=1 // pred_check
      _
    $region27: #{chrombert_lm_forward.1} parent=1 // pred_check_branch
      %53 = sbr.rel (0) target = $region29
    $region28: #{chrombert_lm_forward.1} parent=1 // pred_region
      %s55 = ssub.s32 8192, 8192
      %56 = vsyncadd [#allocation5], %s55
      %s57 = sshll.u32 [#allocation6], 4
      %s58 = int_to_ptr.vmem [resolvable:$true] %s57
      %63 = dma.hbm_to_vmem [thread:$0]  %s6, 8192, %s58, [#allocation5], 64, 64, 4
    $region29: #{chrombert_lm_forward.1} parent=1 // pred_fallthru
      _
    // Predicated region
    $region30: #{chrombert_lm_forward.1} parent=1 // pred_check
      _
    $region31: #{chrombert_lm_forward.1} parent=1 // pred_check_branch
      %65 = sbr.rel (0) target = $region33
    $region32: #{chrombert_lm_forward.1} parent=1 // pred_region
      %s67 = ssub.s32 256, 256
      %68 = vsyncadd [#allocation8], %s67
      %s69 = sshll.u32 [#allocation7], 4
      %s70 = int_to_ptr.vmem [resolvable:$true] %s69
      %75 = dma.hbm_to_vmem [thread:$0]  %s7, 256, %s70, [#allocation8], 128, 128, 8
    $region33: #{chrombert_lm_forward.1} parent=1 // pred_fallthru
      _
    // Predicated region
    $region34: #{chrombert_lm_forward.1} parent=1 // pred_check
      _
    $region35: #{chrombert_lm_forward.1} parent=1 // pred_check_branch
      %77 = sbr.rel (0) target = $region37
    $region36: #{chrombert_lm_forward.1} parent=1 // pred_region
      %s79 = ssub.s32 128, 128
      %80 = vsyncadd [#allocation8], %s79
      %s81 = sshll.u32 [#allocation9], 4
      %s82 = int_to_ptr.vmem [resolvable:$true] %s81
      %87 = dma.hbm_to_vmem [thread:$0]  %s8, 128, %s82, [#allocation8], 64, 64, 4
    $region37: #{chrombert_lm_forward.1} parent=1 // pred_fallthru
      _
    // Predicated region
    $region38: #{chrombert_lm_forward.1} parent=1 // pred_check
      _
    $region39: #{chrombert_lm_forward.1} parent=1 // pred_check_branch
      %89 = sbr.rel (0) target = $region41
    $region40: #{chrombert_lm_forward.1} parent=1 // pred_region
      %s91 = ssub.s32 1024, 1024
      %92 = vsyncadd [#allocation11], %s91
      %s93 = sshll.u32 [#allocation10], 4
      %s94 = int_to_ptr.vmem [resolvable:$true] %s93
      %99 = dma.hbm_to_vmem [thread:$0]  %s9, 1024, %s94, [#allocation11], 64, 64, 4
    $region41: #{chrombert_lm_forward.1} parent=1 // pred_fallthru
      _
    // Predicated region
    $region42: #{chrombert_lm_forward.1} parent=1 // pred_check
      _
    $region43: #{chrombert_lm_forward.1} parent=1 // pred_check_branch
      %101 = sbr.rel (0) target = $region45
    $region44: #{chrombert_lm_forward.1} parent=1 // pred_region
      %s103 = ssub.s32 16, 16
      %104 = vsyncadd [#allocation11], %s103
      %s106 = sshll.u32 [#allocation12], 4
      %s107 = int_to_ptr.vmem [resolvable:$true] %s106
      %109 = dma.hbm_to_vmem [thread:$0]  %s10, 16, %s107, [#allocation11]
    $region45: #{chrombert_lm_forward.1} parent=1 // pred_fallthru
      _
    // Predicated region
    $region46: #{chrombert_lm_forward.1} parent=1 // pred_check
      _
    $region47: #{chrombert_lm_forward.1} parent=1 // pred_check_branch
      %111 = sbr.rel (0) target = $region49
    $region48: #{chrombert_lm_forward.1} parent=1 // pred_region
      %112 = dma.done [#allocation3], 2048
    $region49: #{chrombert_lm_forward.1} parent=1 // pred_fallthru
      _
    // Predicated region
    $region50: #{chrombert_lm_forward.1} parent=1 // pred_check
      _
    $region51: #{chrombert_lm_forward.1} parent=1 // pred_check_branch
      %114 = sbr.rel (0) target = $region53
    $region52: #{chrombert_lm_forward.1} parent=1 // pred_region
      %115 = dma.done [#allocation5], 8192
    $region53: #{chrombert_lm_forward.1} parent=1 // pred_fallthru
      _
    // Predicated region
    $region54: #{chrombert_lm_forward.1} parent=1 // pred_check
      _
    $region55: #{chrombert_lm_forward.1} parent=1 // pred_check_branch
      %117 = sbr.rel (0) target = $region57
    $region56: #{chrombert_lm_forward.1} parent=1 // pred_region
      %118 = dma.done [#allocation5], 8192
    $region57: #{chrombert_lm_forward.1} parent=1 // pred_fallthru
      _
    // Predicated region
    $region58: #{chrombert_lm_forward.1} parent=1 // pred_check
      _
    $region59: #{chrombert_lm_forward.1} parent=1 // pred_check_branch
      %120 = sbr.rel (0) target = $region61
    $region60: #{chrombert_lm_forward.1} parent=1 // pred_region
      %121 = dma.done [#allocation8], 256
    $region61: #{chrombert_lm_forward.1} parent=1 // pred_fallthru
      _
    // Predicated region
    $region62: #{chrombert_lm_forward.1} parent=1 // pred_check
      _
    $region63: #{chrombert_lm_forward.1} parent=1 // pred_check_branch
      %123 = sbr.rel (0) target = $region65
    $region64: #{chrombert_lm_forward.1} parent=1 // pred_region
      %124 = dma.done [#allocation8], 128
    $region65: #{chrombert_lm_forward.1} parent=1 // pred_fallthru
      _
    // Predicated region
    $region66: #{chrombert_lm_forward.1} parent=1 // pred_check
      _
    $region67: #{chrombert_lm_forward.1} parent=1 // pred_check_branch
      %126 = sbr.rel (0) target = $region69
    $region68: #{chrombert_lm_forward.1} parent=1 // pred_region
      %127 = dma.done [#allocation11], 1024
    $region69: #{chrombert_lm_forward.1} parent=1 // pred_fallthru
      _
    // Predicated region
    $region70: #{chrombert_lm_forward.1} parent=1 // pred_check
      _
    $region71: #{chrombert_lm_forward.1} parent=1 // pred_check_branch
      %129 = sbr.rel (0) target = $region73
    $region72: #{chrombert_lm_forward.1} parent=1 // pred_region
      %130 = dma.done [#allocation11], 16
    $region73: #{chrombert_lm_forward.1} parent=1 // pred_fallthru
      _
    %v132 = vld [vmem:[%s0] sm:$0xff]
    %v133 = vld [vmem:[%s0 + $0x8] sm:$0xff]
    %v134 = vld [vmem:[%s1] sm:$0xff]
    %v135 = vld [vmem:[%s1 + $0x8] sm:$0xff]
    %v136 = vld [vmem:[#allocation7] sm:$0xff]
    %v137 = vld [vmem:[#allocation9] sm:$0xf]
    %v138 = vld [vmem:[%s3] sm:$0x7]
    %v139 = vpack.c.bf16 %v133, %v132
    %v140 = vld [vmem:[%s2] sm:$0xff]
    %v141 = vld [vmem:[%s2 + $0x8] sm:$0xf]
    %v142 = vld [vmem:[%s2 + $0xc] sm:$0xff]
    %v143 = vld [vmem:[%s2 + $0x14] sm:$0xf]
    %v144 = vld [vmem:[%s2 + $0x18] sm:$0xff]
    %v145 = vld [vmem:[%s2 + $0x20] sm:$0xf]
    %v146 = vld [vmem:[%s2 + $0x24] sm:$0xff]
    %v147 = vld [vmem:[%s2 + $0x2c] sm:$0xf]
    %v148 = vld [vmem:[%s2 + $0x30] sm:$0xff]
    %v149 = vld [vmem:[%s2 + $0x38] sm:$0xf]
    %v150 = vld [vmem:[%s2 + $0x3c] sm:$0xff]
    %v151 = vld [vmem:[%s2 + $0x44] sm:$0xf]
    %v152 = vld [vmem:[%s2 + $0x48] sm:$0xff]
    %v153 = vld [vmem:[%s2 + $0x50] sm:$0xf]
    %v154 = vld [vmem:[%s2 + $0x54] sm:$0xff]
    %v155 = vld [vmem:[%s2 + $0x5c] sm:$0xf]
    %v156 = vld [vmem:[%s2 + $0x60] sm:$0xff]
    %v157 = vld [vmem:[%s2 + $0x68] sm:$0xf]
    %v158 = vld [vmem:[%s2 + $0x6c] sm:$0xff]
    %v159 = vld [vmem:[%s2 + $0x74] sm:$0xf]
    %v160 = vld [vmem:[%s2 + $0x78] sm:$0xff]
    %v161 = vld [vmem:[%s2 + $0x80] sm:$0xf]
    %v162 = vld [vmem:[%s2 + $0x84] sm:$0xff]
    %v163 = vld [vmem:[%s2 + $0x8c] sm:$0xf]
    %v164 = vld [vmem:[%s2 + $0x90] sm:$0xff]
    %v165 = vld [vmem:[%s2 + $0x98] sm:$0xf]
    %v166 = vld [vmem:[%s2 + $0x9c] sm:$0xff]
    %v167 = vld [vmem:[%s2 + $0xa4] sm:$0xf]
    %v168 = vld [vmem:[%s2 + $0xa8] sm:$0xff]
    %v169 = vld [vmem:[%s2 + $0xb0] sm:$0xf]
    %v170 = vld [vmem:[%s2 + $0xb4] sm:$0xff]
    %v171 = vld [vmem:[%s2 + $0xbc] sm:$0xf]
    %v173 = vlaneseq
    %v174 = vshrl.u32 %v173, 7
    %v175 = vsub.s32 0, %v174
    %v176 = vrot.slane %v138, %v175
    %v177 = vlaneseq
    %v178 = vshrl.u32 %v177, 7
    %v179 = vsub.s32 1, %v178
    %v180 = vrot.slane %v138, %v179
    %v181 = vlaneseq
    %v182 = vshrl.u32 %v181, 7
    %v183 = vsub.s32 2, %v182
    %v184 = vrot.slane %v138, %v183
    %v220 = vunpack.c.l.b16 %v140
    %v221 = vunpack.c.h.b16 %v140
    %v222 = vunpack.c.l.b16 %v141
    %v223 = vunpack.c.l.b16 %v142
    %v224 = vunpack.c.h.b16 %v142
    %v225 = vunpack.c.l.b16 %v143
    %v226 = vunpack.c.l.b16 %v144
    %v227 = vunpack.c.h.b16 %v144
    %v228 = vunpack.c.l.b16 %v145
    %v229 = vunpack.c.l.b16 %v146
    %v230 = vunpack.c.h.b16 %v146
    %v231 = vunpack.c.l.b16 %v147
    %v232 = vunpack.c.l.b16 %v148
    %v233 = vunpack.c.h.b16 %v148
    %v234 = vunpack.c.l.b16 %v149
    %v235 = vunpack.c.l.b16 %v150
    %v236 = vunpack.c.h.b16 %v150
    %v237 = vunpack.c.l.b16 %v151
    %v238 = vunpack.c.l.b16 %v152
    %v239 = vunpack.c.h.b16 %v152
    %v240 = vunpack.c.l.b16 %v153
    %v241 = vunpack.c.l.b16 %v154
    %v242 = vunpack.c.h.b16 %v154
    %v243 = vunpack.c.l.b16 %v155
    %v244 = vunpack.c.l.b16 %v156
    %v245 = vunpack.c.h.b16 %v156
    %v246 = vunpack.c.l.b16 %v157
    %v247 = vunpack.c.l.b16 %v158
    %v248 = vunpack.c.h.b16 %v158
    %v249 = vunpack.c.l.b16 %v159
    %v250 = vunpack.c.l.b16 %v160
    %v251 = vunpack.c.h.b16 %v160
    %v252 = vunpack.c.l.b16 %v161
    %v253 = vunpack.c.l.b16 %v162
    %v254 = vunpack.c.h.b16 %v162
    %v255 = vunpack.c.l.b16 %v163
    %v256 = vunpack.c.l.b16 %v164
    %v257 = vunpack.c.h.b16 %v164
    %v258 = vunpack.c.l.b16 %v165
    %v259 = vunpack.c.l.b16 %v166
    %v260 = vunpack.c.h.b16 %v166
    %v261 = vunpack.c.l.b16 %v167
    %v262 = vunpack.c.l.b16 %v168
    %v263 = vunpack.c.h.b16 %v168
    %v264 = vunpack.c.l.b16 %v169
    %v265 = vunpack.c.l.b16 %v170
    %v266 = vunpack.c.h.b16 %v170
    %v267 = vunpack.c.l.b16 %v171
    %v268 = vpack.c.b16 %v223, %v220
    %v269 = vpack.c.b16 %v224, %v221
    %v270 = vpack.c.b16 %v225, %v222
    %v271 = vpack.c.b16 %v229, %v226
    %v272 = vpack.c.b16 %v230, %v227
    %v273 = vpack.c.b16 %v231, %v228
    %v274 = vpack.c.b16 %v235, %v232
    %v275 = vpack.c.b16 %v236, %v233
    %v276 = vpack.c.b16 %v237, %v234
    %v277 = vpack.c.b16 %v241, %v238
    %v278 = vpack.c.b16 %v242, %v239
    %v279 = vpack.c.b16 %v243, %v240
    %v280 = vpack.c.b16 %v247, %v244
    %v281 = vpack.c.b16 %v248, %v245
    %v282 = vpack.c.b16 %v249, %v246
    %v283 = vpack.c.b16 %v253, %v250
    %v284 = vpack.c.b16 %v254, %v251
    %v285 = vpack.c.b16 %v255, %v252
    %v286 = vpack.c.b16 %v259, %v256
    %v287 = vpack.c.b16 %v260, %v257
    %v288 = vpack.c.b16 %v261, %v258
    %v289 = vpack.c.b16 %v265, %v262
    %v290 = vpack.c.b16 %v266, %v263
    %v291 = vpack.c.b16 %v267, %v264
    %316 = vmatprep.subr.bf16.mxu0 %v269
    %317 = vmatpush1.bf16.msra.mxu0 %v268
    %318 = vmatprep.subr.bf16.mxu0 %v272
    %319 = vmatpush1.bf16.msra.mxu0 %v271
    %320 = vmatprep.subr.bf16.mxu0 %v275
    %321 = vmatpush1.bf16.msra.mxu0 %v274
    %322 = vmatprep.subr.bf16.mxu0 %v278
    %323 = vmatpush1.bf16.msra.mxu0 %v277
    %324 = vmatprep.subr.bf16.mxu0 %v281
    %325 = vmatpush1.bf16.msra.mxu0 %v280
    %326 = vmatprep.subr.bf16.mxu0 %v284
    %327 = vmatpush1.bf16.msra.mxu0 %v283
    %328 = vmatprep.subr.bf16.mxu0 %v287
    %329 = vmatpush1.bf16.msra.mxu0 %v286
    %330 = vmatprep.subr.bf16.mxu0 %v290
    %331 = vmatpush1.bf16.msra.mxu0 %v289
    %332 = vmatprep.subr.bf16.mxu0 0
    %333 = vmatpush1.bf16.msra.mxu0 0
    %334 = vmatprep.subr.bf16.mxu0 0
    %335 = vmatpush1.bf16.msra.mxu0 0
    %336 = vmatprep.subr.bf16.mxu0 0
    %337 = vmatpush1.bf16.msra.mxu0 0
    %338 = vmatprep.subr.bf16.mxu0 0
    %339 = vmatpush1.bf16.msra.mxu0 0
    %340 = vmatprep.subr.bf16.mxu0 0
    %341 = vmatpush1.bf16.msra.mxu0 0
    %342 = vmatprep.subr.bf16.mxu0 0
    %343 = vmatpush1.bf16.msra.mxu0 0
    %344 = vmatprep.subr.bf16.mxu0 0
    %345 = vmatpush1.bf16.msra.mxu0 0
    %346 = vmatprep.subr.bf16.mxu0 0
    %347 = vmatpush1.bf16.msra.mxu0 0
    %348 = vmatprep.mubr.bf16.mxu0 0
    %349 = vmatmul.mubr.bf16.gmra.mrb[0].mxu0 %v139
    %v350 = vpop.f32.mrb[0].mxu0
    %v351 = vadd.f32 %v176, %v350
    %v352 = vpop.f32.mrb[0].mxu0
    %v353 = vadd.f32 %v180, %v352
    %v354 = vpop.f32.mrb[0].mxu0
    %v355 = vadd.f32 %v176, %v354
    %v356 = vpop.f32.mrb[0].mxu0
    %v357 = vadd.f32 %v180, %v356
    %358 = vdwg.mxu0
    %359 = vmatprep.subr.bf16.mxu0 0
    %360 = vmatpush1.bf16.msra.mxu0 %v270
    %361 = vmatprep.subr.bf16.mxu0 0
    %362 = vmatpush1.bf16.msra.mxu0 %v273
    %363 = vmatprep.subr.bf16.mxu0 0
    %364 = vmatpush1.bf16.msra.mxu0 %v276
    %365 = vmatprep.subr.bf16.mxu0 0
    %366 = vmatpush1.bf16.msra.mxu0 %v279
    %367 = vmatprep.subr.bf16.mxu0 0
    %368 = vmatpush1.bf16.msra.mxu0 %v282
    %369 = vmatprep.subr.bf16.mxu0 0
    %370 = vmatpush1.bf16.msra.mxu0 %v285
    %371 = vmatprep.subr.bf16.mxu0 0
    %372 = vmatpush1.bf16.msra.mxu0 %v288
    %373 = vmatprep.subr.bf16.mxu0 0
    %374 = vmatpush1.bf16.msra.mxu0 %v291
    %375 = vmatprep.subr.bf16.mxu0 0
    %376 = vmatpush1.bf16.msra.mxu0 0
    %377 = vmatprep.subr.bf16.mxu0 0
    %378 = vmatpush1.bf16.msra.mxu0 0
    %379 = vmatprep.subr.bf16.mxu0 0
    %380 = vmatpush1.bf16.msra.mxu0 0
    %381 = vmatprep.subr.bf16.mxu0 0
    %382 = vmatpush1.bf16.msra.mxu0 0
    %383 = vmatprep.subr.bf16.mxu0 0
    %384 = vmatpush1.bf16.msra.mxu0 0
    %385 = vmatprep.subr.bf16.mxu0 0
    %386 = vmatpush1.bf16.msra.mxu0 0
    %387 = vmatprep.subr.bf16.mxu0 0
    %388 = vmatpush1.bf16.msra.mxu0 0
    %389 = vmatprep.subr.bf16.mxu0 0
    %390 = vmatpush1.bf16.msra.mxu0 0
    %391 = vmatprep.mubr.bf16.mxu0 0
    %392 = vmatmul.mubr.bf16.gmra.mrb[0].mxu0 %v139
    %v393 = vpop.f32.mrb[0].mxu0
    %v394 = vadd.f32 %v184, %v393
    %v395 = vpop.f32.mrb[0].mxu0
    %v396 = vpop.f32.mrb[0].mxu0
    %v397 = vadd.f32 %v184, %v396
    %v398 = vpop.f32.mrb[0].mxu0
    %399 = vdwg.mxu0
    %vm400 = vcmask 261120
    %v402 = vsel %vm400, %v351, 0
    %v405 = vsel %vm400, %v355, 0
    %v408 = vsel %vm400, %v353, 0
    %v411 = vsel %vm400, %v357, 0
    %413 = vmatprep.subr.mxu0 0.0
    %414 = vmatpush1.xpose.msra.mxu0 %v408
    %415 = vmatprep.subr.mxu0 0.0
    %416 = vmatpush1.xpose.msra.mxu0 %v411
    %417 = vmatprep.subr.mxu0 0.0
    %418 = vmatpush1.xpose.msra.mxu0 0.0
    %419 = vmatprep.subr.mxu0 0.0
    %420 = vmatpush1.xpose.msra.mxu0 0.0
    %421 = vmatprep.subr.mxu0 0.0
    %422 = vmatpush1.xpose.msra.mxu0 0.0
    %423 = vmatprep.subr.mxu0 0.0
    %424 = vmatpush1.xpose.msra.mxu0 0.0
    %425 = vmatprep.subr.mxu0 0.0
    %426 = vmatpush1.xpose.msra.mxu0 0.0
    %427 = vmatprep.subr.mxu0 0.0
    %428 = vmatpush1.xpose.msra.mxu0 0.0
    %429 = vmatprep.subr.mxu0 0.0
    %430 = vmatpush1.xpose.msra.mxu0 0.0
    %431 = vmatprep.subr.mxu0 0.0
    %432 = vmatpush1.xpose.msra.mxu0 0.0
    %433 = vmatprep.subr.mxu0 0.0
    %434 = vmatpush1.xpose.msra.mxu0 0.0
    %435 = vmatprep.subr.mxu0 0.0
    %436 = vmatpush1.xpose.msra.mxu0 0.0
    %437 = vmatprep.subr.mxu0 0.0
    %438 = vmatpush1.xpose.msra.mxu0 0.0
    %439 = vmatprep.subr.mxu0 0.0
    %440 = vmatpush1.xpose.msra.mxu0 0.0
    %441 = vmatprep.subr.mxu0 0.0
    %442 = vmatpush1.xpose.msra.mxu0 0.0
    %443 = vmatprep.subr.mxu0 0.0
    %444 = vmatpush1.xpose.msra.mxu0 0.0
    %445 = vmatprep.subr.mxu0 0.0
    %446 = vmatpush1.xpose.msra.mxu0 0.0
    %447 = vmatprep.subr.mxu0 0.0
    %448 = vmatpush1.xpose.msra.mxu0 0.0
    %449 = vmatprep.subr.mxu0 0.0
    %450 = vmatpush1.xpose.msra.mxu0 0.0
    %451 = vmatprep.subr.mxu0 0.0
    %452 = vmatpush1.xpose.msra.mxu0 0.0
    %453 = vmatprep.subr.mxu0 0.0
    %454 = vmatpush1.xpose.msra.mxu0 0.0
    %455 = vmatprep.subr.mxu0 0.0
    %456 = vmatpush1.xpose.msra.mxu0 0.0
    %457 = vmatprep.subr.mxu0 0.0
    %458 = vmatpush1.xpose.msra.mxu0 0.0
    %459 = vmatprep.subr.mxu0 0.0
    %460 = vmatpush1.xpose.msra.mxu0 0.0
    %461 = vmatprep.subr.mxu0 0.0
    %462 = vmatpush1.xpose.msra.mxu0 0.0
    %463 = vmatprep.subr.mxu0 0.0
    %464 = vmatpush1.xpose.msra.mxu0 0.0
    %465 = vmatprep.subr.mxu0 0.0
    %466 = vmatpush1.xpose.msra.mxu0 0.0
    %467 = vmatprep.subr.mxu0 0.0
    %468 = vmatpush1.xpose.msra.mxu0 0.0
    %469 = vmatprep.subr.mxu0 0.0
    %470 = vmatpush1.xpose.msra.mxu0 0.0
    %471 = vmatprep.subr.mxu0 0.0
    %472 = vmatpush1.xpose.msra.mxu0 0.0
    %473 = vmatprep.subr.mxu0 0.0
    %474 = vmatpush1.xpose.msra.mxu0 0.0
    %475 = vmatprep.subr.mxu0 0.0
    %476 = vmatpush1.xpose.msra.mxu0 0.0
    %477 = vmatprep.mubr.f32.mxu0 0.0
    %478 = vmatmul.mubr.f32.gmra.mrb[0].mxu0 %v402
    %v479 = vpop.f32.mrb[0].mxu0
    %v480 = vadd.f32 %v134, %v479
    %v481 = vpop.f32.mrb[0].mxu0
    %482 = vmatprep.mubr.f32.mxu0 0.0
    %483 = vmatmul.mubr.f32.gmra.mrb[0].mxu0 %v405
    %v484 = vpop.f32.mrb[0].mxu0
    %v485 = vadd.f32 %v135, %v484
    %v486 = vpop.f32.mrb[0].mxu0
    %487 = vdwg.mxu0
    %vm488 = vcmask 130048
    %v489 = vsel %vm488, %v480, -inf
    %490 = vmax.xlane.f32.xlu0 %v489
    %v491 = vpop.xlane.xlu0 %490
    %v492 = vsel %vm488, %v485, -inf
    %493 = vmax.xlane.f32.xlu0 %v492
    %v494 = vpop.xlane.xlu0 %493
    %v495 = vsub.f32 %v480, %v491
    %v496 = vsub.f32 %v485, %v494
    %v497 = vmul.f32 %v495, 1.442695
    %v498 = vpow.pop %v497
    %v499 = vmul.f32 %v496, 1.442695
    %v500 = vpow.pop %v499
    %v501 = vsel %vm488, %v498, 0.0
    %502 = vadd.xlane.f32.xlu0 %v501
    %v503 = vpop.xlane.xlu0 %502
    %v504 = vsel %vm488, %v500, 0.0
    %505 = vadd.xlane.f32.xlu0 %v504
    %v506 = vpop.xlane.xlu0 %505
    %v507 = vrcp.pop %v503
    %v508 = vrcp.pop %v506
    %v509 = vmul.f32 %v498, %v507
    %v510 = vmul.f32 %v500, %v508
    %v512 = vsel %vm488, %v509, 0
    %v515 = vsel %vm488, %v510, 0
    %517 = vmatprep.subr.mxu0 0.0
    %518 = vmatpush1.msra.mxu0 %v394
    %519 = vmatprep.subr.mxu0 0.0
    %520 = vmatpush1.msra.mxu0 %v397
    %521 = vmatprep.subr.mxu0 0.0
    %522 = vmatpush1.msra.mxu0 0.0
    %523 = vmatprep.subr.mxu0 0.0
    %524 = vmatpush1.msra.mxu0 0.0
    %525 = vmatprep.subr.mxu0 0.0
    %526 = vmatpush1.msra.mxu0 0.0
    %527 = vmatprep.subr.mxu0 0.0
    %528 = vmatpush1.msra.mxu0 0.0
    %529 = vmatprep.subr.mxu0 0.0
    %530 = vmatpush1.msra.mxu0 0.0
    %531 = vmatprep.subr.mxu0 0.0
    %532 = vmatpush1.msra.mxu0 0.0
    %533 = vmatprep.subr.mxu0 0.0
    %534 = vmatpush1.msra.mxu0 0.0
    %535 = vmatprep.subr.mxu0 0.0
    %536 = vmatpush1.msra.mxu0 0.0
    %537 = vmatprep.subr.mxu0 0.0
    %538 = vmatpush1.msra.mxu0 0.0
    %539 = vmatprep.subr.mxu0 0.0
    %540 = vmatpush1.msra.mxu0 0.0
    %541 = vmatprep.subr.mxu0 0.0
    %542 = vmatpush1.msra.mxu0 0.0
    %543 = vmatprep.subr.mxu0 0.0
    %544 = vmatpush1.msra.mxu0 0.0
    %545 = vmatprep.subr.mxu0 0.0
    %546 = vmatpush1.msra.mxu0 0.0
    %547 = vmatprep.subr.mxu0 0.0
    %548 = vmatpush1.msra.mxu0 0.0
    %549 = vmatprep.subr.mxu0 0.0
    %550 = vmatpush1.msra.mxu0 0.0
    %551 = vmatprep.subr.mxu0 0.0
    %552 = vmatpush1.msra.mxu0 0.0
    %553 = vmatprep.subr.mxu0 0.0
    %554 = vmatpush1.msra.mxu0 0.0
    %555 = vmatprep.subr.mxu0 0.0
    %556 = vmatpush1.msra.mxu0 0.0
    %557 = vmatprep.subr.mxu0 0.0
    %558 = vmatpush1.msra.mxu0 0.0
    %559 = vmatprep.subr.mxu0 0.0
    %560 = vmatpush1.msra.mxu0 0.0
    %561 = vmatprep.subr.mxu0 0.0
    %562 = vmatpush1.msra.mxu0 0.0
    %563 = vmatprep.subr.mxu0 0.0
    %564 = vmatpush1.msra.mxu0 0.0
    %565 = vmatprep.subr.mxu0 0.0
    %566 = vmatpush1.msra.mxu0 0.0
    %567 = vmatprep.subr.mxu0 0.0
    %568 = vmatpush1.msra.mxu0 0.0
    %569 = vmatprep.subr.mxu0 0.0
    %570 = vmatpush1.msra.mxu0 0.0
    %571 = vmatprep.subr.mxu0 0.0
    %572 = vmatpush1.msra.mxu0 0.0
    %573 = vmatprep.subr.mxu0 0.0
    %574 = vmatpush1.msra.mxu0 0.0
    %575 = vmatprep.subr.mxu0 0.0
    %576 = vmatpush1.msra.mxu0 0.0
    %577 = vmatprep.subr.mxu0 0.0
    %578 = vmatpush1.msra.mxu0 0.0
    %579 = vmatprep.subr.mxu0 0.0
    %580 = vmatpush1.msra.mxu0 0.0
    %581 = vmatprep.mubr.f32.mxu0 0.0
    %582 = vmatmul.mubr.f32.gmra.mrb[0].mxu0 %v512
    %v583 = vpop.f32.mrb[0].mxu0
    %v584 = vadd.f32 0.0, %v583
    %v585 = vpop.f32.mrb[0].mxu0
    %586 = vmatprep.mubr.f32.mxu0 0.0
    %587 = vmatmul.mubr.f32.gmra.mrb[0].mxu0 %v515
    %v588 = vpop.f32.mrb[0].mxu0
    %v589 = vadd.f32 0.0, %v588
    %v590 = vpop.f32.mrb[0].mxu0
    %591 = vdwg.mxu0
    %v592 = vpack.c.bf16 %v589, %v584
    %v593 = vld [vmem:[#allocation2] sm:$0xf]
    %v594 = vld [vmem:[#allocation2 + $0x4] sm:$0xf]
    %v595 = vld [vmem:[#allocation2 + $0x8] sm:$0xf]
    %v596 = vld [vmem:[#allocation2 + $0xc] sm:$0xf]
    %597 = vrot.lane.b32.xlu0 %v351, 96
    %v598 = vpop.permute.xlu0 %597
    %599 = vrot.lane.b32.xlu0 %v355, 96
    %v600 = vpop.permute.xlu0 %599
    %601 = vrot.lane.b32.xlu0 %v353, 96
    %v602 = vpop.permute.xlu0 %601
    %603 = vrot.lane.b32.xlu0 %v357, 96
    %v604 = vpop.permute.xlu0 %603
    %v605 = vsel %vm400, %v598, 0
    %v607 = vsel %vm400, %v600, 0
    %v609 = vsel %vm400, %v602, 0
    %v611 = vsel %vm400, %v604, 0
    %613 = vmatprep.subr.mxu0 0.0
    %614 = vmatpush1.xpose.msra.mxu0 %v609
    %615 = vmatprep.subr.mxu0 0.0
    %616 = vmatpush1.xpose.msra.mxu0 %v611
    %617 = vmatprep.subr.mxu0 0.0
    %618 = vmatpush1.xpose.msra.mxu0 0.0
    %619 = vmatprep.subr.mxu0 0.0
    %620 = vmatpush1.xpose.msra.mxu0 0.0
    %621 = vmatprep.subr.mxu0 0.0
    %622 = vmatpush1.xpose.msra.mxu0 0.0
    %623 = vmatprep.subr.mxu0 0.0
    %624 = vmatpush1.xpose.msra.mxu0 0.0
    %625 = vmatprep.subr.mxu0 0.0
    %626 = vmatpush1.xpose.msra.mxu0 0.0
    %627 = vmatprep.subr.mxu0 0.0
    %628 = vmatpush1.xpose.msra.mxu0 0.0
    %629 = vmatprep.subr.mxu0 0.0
    %630 = vmatpush1.xpose.msra.mxu0 0.0
    %631 = vmatprep.subr.mxu0 0.0
    %632 = vmatpush1.xpose.msra.mxu0 0.0
    %633 = vmatprep.subr.mxu0 0.0
    %634 = vmatpush1.xpose.msra.mxu0 0.0
    %635 = vmatprep.subr.mxu0 0.0
    %636 = vmatpush1.xpose.msra.mxu0 0.0
    %637 = vmatprep.subr.mxu0 0.0
    %638 = vmatpush1.xpose.msra.mxu0 0.0
    %639 = vmatprep.subr.mxu0 0.0
    %640 = vmatpush1.xpose.msra.mxu0 0.0
    %641 = vmatprep.subr.mxu0 0.0
    %642 = vmatpush1.xpose.msra.mxu0 0.0
    %643 = vmatprep.subr.mxu0 0.0
    %644 = vmatpush1.xpose.msra.mxu0 0.0
    %645 = vmatprep.subr.mxu0 0.0
    %646 = vmatpush1.xpose.msra.mxu0 0.0
    %647 = vmatprep.subr.mxu0 0.0
    %648 = vmatpush1.xpose.msra.mxu0 0.0
    %649 = vmatprep.subr.mxu0 0.0
    %650 = vmatpush1.xpose.msra.mxu0 0.0
    %651 = vmatprep.subr.mxu0 0.0
    %652 = vmatpush1.xpose.msra.mxu0 0.0
    %653 = vmatprep.subr.mxu0 0.0
    %654 = vmatpush1.xpose.msra.mxu0 0.0
    %655 = vmatprep.subr.mxu0 0.0
    %656 = vmatpush1.xpose.msra.mxu0 0.0
    %657 = vmatprep.subr.mxu0 0.0
    %658 = vmatpush1.xpose.msra.mxu0 0.0
    %659 = vmatprep.subr.mxu0 0.0
    %660 = vmatpush1.xpose.msra.mxu0 0.0
    %661 = vmatprep.subr.mxu0 0.0
    %662 = vmatpush1.xpose.msra.mxu0 0.0
    %663 = vmatprep.subr.mxu0 0.0
    %664 = vmatpush1.xpose.msra.mxu0 0.0
    %665 = vmatprep.subr.mxu0 0.0
    %666 = vmatpush1.xpose.msra.mxu0 0.0
    %667 = vmatprep.subr.mxu0 0.0
    %668 = vmatpush1.xpose.msra.mxu0 0.0
    %669 = vmatprep.subr.mxu0 0.0
    %670 = vmatpush1.xpose.msra.mxu0 0.0
    %671 = vmatprep.subr.mxu0 0.0
    %672 = vmatpush1.xpose.msra.mxu0 0.0
    %673 = vmatprep.subr.mxu0 0.0
    %674 = vmatpush1.xpose.msra.mxu0 0.0
    %675 = vmatprep.subr.mxu0 0.0
    %676 = vmatpush1.xpose.msra.mxu0 0.0
    %677 = vmatprep.mubr.f32.mxu0 0.0
    %678 = vmatmul.mubr.f32.gmra.mrb[0].mxu0 %v605
    %v679 = vpop.f32.mrb[0].mxu0
    %v680 = vadd.f32 %v134, %v679
    %v681 = vpop.f32.mrb[0].mxu0
    %682 = vmatprep.mubr.f32.mxu0 0.0
    %683 = vmatmul.mubr.f32.gmra.mrb[0].mxu0 %v607
    %v684 = vpop.f32.mrb[0].mxu0
    %v685 = vadd.f32 %v135, %v684
    %v686 = vpop.f32.mrb[0].mxu0
    %687 = vdwg.mxu0
    %v688 = vsel %vm488, %v680, -inf
    %689 = vmax.xlane.f32.xlu0 %v688
    %v690 = vpop.xlane.xlu0 %689
    %v691 = vsel %vm488, %v685, -inf
    %692 = vmax.xlane.f32.xlu0 %v691
    %v693 = vpop.xlane.xlu0 %692
    %v694 = vsub.f32 %v680, %v690
    %v695 = vsub.f32 %v685, %v693
    %v696 = vmul.f32 %v694, 1.442695
    %v697 = vpow.pop %v696
    %v698 = vmul.f32 %v695, 1.442695
    %v699 = vpow.pop %v698
    %v700 = vsel %vm488, %v697, 0.0
    %701 = vadd.xlane.f32.xlu0 %v700
    %v702 = vpop.xlane.xlu0 %701
    %v703 = vsel %vm488, %v699, 0.0
    %704 = vadd.xlane.f32.xlu0 %v703
    %v705 = vpop.xlane.xlu0 %704
    %v706 = vrcp.pop %v702
    %v707 = vrcp.pop %v705
    %v708 = vmul.f32 %v697, %v706
    %v709 = vmul.f32 %v699, %v707
    %712 = vrot.lane.b32.xlu0 %v394, 96
    %v713 = vpop.permute.xlu0 %712
    %714 = vrot.lane.b32.xlu0 %v397, 96
    %v715 = vpop.permute.xlu0 %714
    %v719 = vsel %vm488, %v708, 0
    %v722 = vsel %vm488, %v709, 0
    %724 = vmatprep.subr.mxu0 0.0
    %725 = vmatpush1.msra.mxu0 %v713
    %726 = vmatprep.subr.mxu0 0.0
    %727 = vmatpush1.msra.mxu0 %v715
    %728 = vmatprep.subr.mxu0 0.0
    %729 = vmatpush1.msra.mxu0 0.0
    %730 = vmatprep.subr.mxu0 0.0
    %731 = vmatpush1.msra.mxu0 0.0
    %732 = vmatprep.subr.mxu0 0.0
    %733 = vmatpush1.msra.mxu0 0.0
    %734 = vmatprep.subr.mxu0 0.0
    %735 = vmatpush1.msra.mxu0 0.0
    %736 = vmatprep.subr.mxu0 0.0
    %737 = vmatpush1.msra.mxu0 0.0
    %738 = vmatprep.subr.mxu0 0.0
    %739 = vmatpush1.msra.mxu0 0.0
    %740 = vmatprep.subr.mxu0 0.0
    %741 = vmatpush1.msra.mxu0 0.0
    %742 = vmatprep.subr.mxu0 0.0
    %743 = vmatpush1.msra.mxu0 0.0
    %744 = vmatprep.subr.mxu0 0.0
    %745 = vmatpush1.msra.mxu0 0.0
    %746 = vmatprep.subr.mxu0 0.0
    %747 = vmatpush1.msra.mxu0 0.0
    %748 = vmatprep.subr.mxu0 0.0
    %749 = vmatpush1.msra.mxu0 0.0
    %750 = vmatprep.subr.mxu0 0.0
    %751 = vmatpush1.msra.mxu0 0.0
    %752 = vmatprep.subr.mxu0 0.0
    %753 = vmatpush1.msra.mxu0 0.0
    %754 = vmatprep.subr.mxu0 0.0
    %755 = vmatpush1.msra.mxu0 0.0
    %756 = vmatprep.subr.mxu0 0.0
    %757 = vmatpush1.msra.mxu0 0.0
    %758 = vmatprep.subr.mxu0 0.0
    %759 = vmatpush1.msra.mxu0 0.0
    %760 = vmatprep.subr.mxu0 0.0
    %761 = vmatpush1.msra.mxu0 0.0
    %762 = vmatprep.subr.mxu0 0.0
    %763 = vmatpush1.msra.mxu0 0.0
    %764 = vmatprep.subr.mxu0 0.0
    %765 = vmatpush1.msra.mxu0 0.0
    %766 = vmatprep.subr.mxu0 0.0
    %767 = vmatpush1.msra.mxu0 0.0
    %768 = vmatprep.subr.mxu0 0.0
    %769 = vmatpush1.msra.mxu0 0.0
    %770 = vmatprep.subr.mxu0 0.0
    %771 = vmatpush1.msra.mxu0 0.0
    %772 = vmatprep.subr.mxu0 0.0
    %773 = vmatpush1.msra.mxu0 0.0
    %774 = vmatprep.subr.mxu0 0.0
    %775 = vmatpush1.msra.mxu0 0.0
    %776 = vmatprep.subr.mxu0 0.0
    %777 = vmatpush1.msra.mxu0 0.0
    %778 = vmatprep.subr.mxu0 0.0
    %779 = vmatpush1.msra.mxu0 0.0
    %780 = vmatprep.subr.mxu0 0.0
    %781 = vmatpush1.msra.mxu0 0.0
    %782 = vmatprep.subr.mxu0 0.0
    %783 = vmatpush1.msra.mxu0 0.0
    %784 = vmatprep.subr.mxu0 0.0
    %785 = vmatpush1.msra.mxu0 0.0
    %786 = vmatprep.subr.mxu0 0.0
    %787 = vmatpush1.msra.mxu0 0.0
    %788 = vmatprep.mubr.f32.mxu0 0.0
    %789 = vmatmul.mubr.f32.gmra.mrb[0].mxu0 %v719
    %v790 = vpop.f32.mrb[0].mxu0
    %v791 = vadd.f32 0.0, %v790
    %v792 = vpop.f32.mrb[0].mxu0
    %793 = vmatprep.mubr.f32.mxu0 0.0
    %794 = vmatmul.mubr.f32.gmra.mrb[0].mxu0 %v722
    %v795 = vpop.f32.mrb[0].mxu0
    %v796 = vadd.f32 0.0, %v795
    %v797 = vpop.f32.mrb[0].mxu0
    %798 = vdwg.mxu0
    %v799 = vpack.c.bf16 %v796, %v791
    %s800 = scalar_lea.vmem [#allocation2], 16
    %v801 = vld [vmem:[%s800] sm:$0xf]
    %v802 = vld [vmem:[%s800 + $0x4] sm:$0xf]
    %v803 = vld [vmem:[%s800 + $0x8] sm:$0xf]
    %v804 = vld [vmem:[%s800 + $0xc] sm:$0xf]
    %v809 = vunpack.c.l.b16 %v801
    %v810 = vunpack.c.l.b16 %v802
    %v811 = vunpack.c.l.b16 %v803
    %v812 = vunpack.c.l.b16 %v804
    %v813 = vpack.c.b16 %v810, %v809
    %v814 = vpack.c.b16 %v812, %v811
    %v818 = vsel %vm400, %v799, 0
    %820 = vmatprep.subr.bf16.mxu0 0
    %821 = vmatpush1.bf16.msra.mxu0 %v813
    %822 = vmatprep.subr.bf16.mxu0 0
    %823 = vmatpush1.bf16.msra.mxu0 %v814
    %824 = vmatprep.subr.bf16.mxu0 0
    %825 = vmatpush1.bf16.msra.mxu0 0
    %826 = vmatprep.subr.bf16.mxu0 0
    %827 = vmatpush1.bf16.msra.mxu0 0
    %828 = vmatprep.subr.bf16.mxu0 0
    %829 = vmatpush1.bf16.msra.mxu0 0
    %830 = vmatprep.subr.bf16.mxu0 0
    %831 = vmatpush1.bf16.msra.mxu0 0
    %832 = vmatprep.subr.bf16.mxu0 0
    %833 = vmatpush1.bf16.msra.mxu0 0
    %834 = vmatprep.subr.bf16.mxu0 0
    %835 = vmatpush1.bf16.msra.mxu0 0
    %836 = vmatprep.subr.bf16.mxu0 0
    %837 = vmatpush1.bf16.msra.mxu0 0
    %838 = vmatprep.subr.bf16.mxu0 0
    %839 = vmatpush1.bf16.msra.mxu0 0
    %840 = vmatprep.subr.bf16.mxu0 0
    %841 = vmatpush1.bf16.msra.mxu0 0
    %842 = vmatprep.subr.bf16.mxu0 0
    %843 = vmatpush1.bf16.msra.mxu0 0
    %844 = vmatprep.subr.bf16.mxu0 0
    %845 = vmatpush1.bf16.msra.mxu0 0
    %846 = vmatprep.subr.bf16.mxu0 0
    %847 = vmatpush1.bf16.msra.mxu0 0
    %848 = vmatprep.subr.bf16.mxu0 0
    %849 = vmatpush1.bf16.msra.mxu0 0
    %850 = vmatprep.subr.bf16.mxu0 0
    %851 = vmatpush1.bf16.msra.mxu0 0
    %852 = vmatprep.mubr.bf16.mxu0 0
    %853 = vmatmul.mubr.bf16.gmra.mrb[0].mxu0 %v818
    %v854 = vpop.f32.mrb[0].mxu0
    %v855 = vadd.f32 0.0, %v854
    %v856 = vpop.f32.mrb[0].mxu0
    %v857 = vpop.f32.mrb[0].mxu0
    %v858 = vadd.f32 0.0, %v857
    %v859 = vpop.f32.mrb[0].mxu0
    %860 = vdwg.mxu0
    %v865 = vunpack.c.l.b16 %v593
    %v866 = vunpack.c.l.b16 %v594
    %v867 = vunpack.c.l.b16 %v595
    %v868 = vunpack.c.l.b16 %v596
    %v869 = vpack.c.b16 %v866, %v865
    %v870 = vpack.c.b16 %v868, %v867
    %v874 = vsel %vm400, %v592, 0
    %876 = vmatprep.subr.bf16.mxu0 0
    %877 = vmatpush1.bf16.msra.mxu0 %v869
    %878 = vmatprep.subr.bf16.mxu0 0
    %879 = vmatpush1.bf16.msra.mxu0 %v870
    %880 = vmatprep.subr.bf16.mxu0 0
    %881 = vmatpush1.bf16.msra.mxu0 0
    %882 = vmatprep.subr.bf16.mxu0 0
    %883 = vmatpush1.bf16.msra.mxu0 0
    %884 = vmatprep.subr.bf16.mxu0 0
    %885 = vmatpush1.bf16.msra.mxu0 0
    %886 = vmatprep.subr.bf16.mxu0 0
    %887 = vmatpush1.bf16.msra.mxu0 0
    %888 = vmatprep.subr.bf16.mxu0 0
    %889 = vmatpush1.bf16.msra.mxu0 0
    %890 = vmatprep.subr.bf16.mxu0 0
    %891 = vmatpush1.bf16.msra.mxu0 0
    %892 = vmatprep.subr.bf16.mxu0 0
    %893 = vmatpush1.bf16.msra.mxu0 0
    %894 = vmatprep.subr.bf16.mxu0 0
    %895 = vmatpush1.bf16.msra.mxu0 0
    %896 = vmatprep.subr.bf16.mxu0 0
    %897 = vmatpush1.bf16.msra.mxu0 0
    %898 = vmatprep.subr.bf16.mxu0 0
    %899 = vmatpush1.bf16.msra.mxu0 0
    %900 = vmatprep.subr.bf16.mxu0 0
    %901 = vmatpush1.bf16.msra.mxu0 0
    %902 = vmatprep.subr.bf16.mxu0 0
    %903 = vmatpush1.bf16.msra.mxu0 0
    %904 = vmatprep.subr.bf16.mxu0 0
    %905 = vmatpush1.bf16.msra.mxu0 0
    %906 = vmatprep.subr.bf16.mxu0 0
    %907 = vmatpush1.bf16.msra.mxu0 0
    %908 = vmatprep.mubr.bf16.mxu0 0
    %909 = vmatmul.mubr.bf16.gmra.mrb[0].mxu0 %v874
    %v910 = vpop.f32.mrb[0].mxu0
    %v911 = vadd.f32 %v855, %v910
    %v912 = vpop.f32.mrb[0].mxu0
    %v913 = vpop.f32.mrb[0].mxu0
    %v914 = vadd.f32 %v858, %v913
    %v915 = vpop.f32.mrb[0].mxu0
    %916 = vdwg.mxu0
    %917 = vrot.lane.b32.xlu0 %v351, 64
    %v918 = vpop.permute.xlu0 %917
    %919 = vrot.lane.b32.xlu0 %v355, 64
    %v920 = vpop.permute.xlu0 %919
    %921 = vrot.lane.b32.xlu0 %v353, 64
    %v922 = vpop.permute.xlu0 %921
    %923 = vrot.lane.b32.xlu0 %v357, 64
    %v924 = vpop.permute.xlu0 %923
    %v925 = vsel %vm400, %v918, 0
    %v927 = vsel %vm400, %v920, 0
    %v929 = vsel %vm400, %v922, 0
    %v931 = vsel %vm400, %v924, 0
    %933 = vmatprep.subr.mxu0 0.0
    %934 = vmatpush1.xpose.msra.mxu0 %v929
    %935 = vmatprep.subr.mxu0 0.0
    %936 = vmatpush1.xpose.msra.mxu0 %v931
    %937 = vmatprep.subr.mxu0 0.0
    %938 = vmatpush1.xpose.msra.mxu0 0.0
    %939 = vmatprep.subr.mxu0 0.0
    %940 = vmatpush1.xpose.msra.mxu0 0.0
    %941 = vmatprep.subr.mxu0 0.0
    %942 = vmatpush1.xpose.msra.mxu0 0.0
    %943 = vmatprep.subr.mxu0 0.0
    %944 = vmatpush1.xpose.msra.mxu0 0.0
    %945 = vmatprep.subr.mxu0 0.0
    %946 = vmatpush1.xpose.msra.mxu0 0.0
    %947 = vmatprep.subr.mxu0 0.0
    %948 = vmatpush1.xpose.msra.mxu0 0.0
    %949 = vmatprep.subr.mxu0 0.0
    %950 = vmatpush1.xpose.msra.mxu0 0.0
    %951 = vmatprep.subr.mxu0 0.0
    %952 = vmatpush1.xpose.msra.mxu0 0.0
    %953 = vmatprep.subr.mxu0 0.0
    %954 = vmatpush1.xpose.msra.mxu0 0.0
    %955 = vmatprep.subr.mxu0 0.0
    %956 = vmatpush1.xpose.msra.mxu0 0.0
    %957 = vmatprep.subr.mxu0 0.0
    %958 = vmatpush1.xpose.msra.mxu0 0.0
    %959 = vmatprep.subr.mxu0 0.0
    %960 = vmatpush1.xpose.msra.mxu0 0.0
    %961 = vmatprep.subr.mxu0 0.0
    %962 = vmatpush1.xpose.msra.mxu0 0.0
    %963 = vmatprep.subr.mxu0 0.0
    %964 = vmatpush1.xpose.msra.mxu0 0.0
    %965 = vmatprep.subr.mxu0 0.0
    %966 = vmatpush1.xpose.msra.mxu0 0.0
    %967 = vmatprep.subr.mxu0 0.0
    %968 = vmatpush1.xpose.msra.mxu0 0.0
    %969 = vmatprep.subr.mxu0 0.0
    %970 = vmatpush1.xpose.msra.mxu0 0.0
    %971 = vmatprep.subr.mxu0 0.0
    %972 = vmatpush1.xpose.msra.mxu0 0.0
    %973 = vmatprep.subr.mxu0 0.0
    %974 = vmatpush1.xpose.msra.mxu0 0.0
    %975 = vmatprep.subr.mxu0 0.0
    %976 = vmatpush1.xpose.msra.mxu0 0.0
    %977 = vmatprep.subr.mxu0 0.0
    %978 = vmatpush1.xpose.msra.mxu0 0.0
    %979 = vmatprep.subr.mxu0 0.0
    %980 = vmatpush1.xpose.msra.mxu0 0.0
    %981 = vmatprep.subr.mxu0 0.0
    %982 = vmatpush1.xpose.msra.mxu0 0.0
    %983 = vmatprep.subr.mxu0 0.0
    %984 = vmatpush1.xpose.msra.mxu0 0.0
    %985 = vmatprep.subr.mxu0 0.0
    %986 = vmatpush1.xpose.msra.mxu0 0.0
    %987 = vmatprep.subr.mxu0 0.0
    %988 = vmatpush1.xpose.msra.mxu0 0.0
    %989 = vmatprep.subr.mxu0 0.0
    %990 = vmatpush1.xpose.msra.mxu0 0.0
    %991 = vmatprep.subr.mxu0 0.0
    %992 = vmatpush1.xpose.msra.mxu0 0.0
    %993 = vmatprep.subr.mxu0 0.0
    %994 = vmatpush1.xpose.msra.mxu0 0.0
    %995 = vmatprep.subr.mxu0 0.0
    %996 = vmatpush1.xpose.msra.mxu0 0.0
    %997 = vmatprep.mubr.f32.mxu0 0.0
    %998 = vmatmul.mubr.f32.gmra.mrb[0].mxu0 %v925
    %v999 = vpop.f32.mrb[0].mxu0
    %v1000 = vadd.f32 %v134, %v999
    %v1001 = vpop.f32.mrb[0].mxu0
    %1002 = vmatprep.mubr.f32.mxu0 0.0
    %1003 = vmatmul.mubr.f32.gmra.mrb[0].mxu0 %v927
    %v1004 = vpop.f32.mrb[0].mxu0
    %v1005 = vadd.f32 %v135, %v1004
    %v1006 = vpop.f32.mrb[0].mxu0
    %1007 = vdwg.mxu0
    %v1008 = vsel %vm488, %v1000, -inf
    %1009 = vmax.xlane.f32.xlu0 %v1008
    %v1010 = vpop.xlane.xlu0 %1009
    %v1011 = vsel %vm488, %v1005, -inf
    %1012 = vmax.xlane.f32.xlu0 %v1011
    %v1013 = vpop.xlane.xlu0 %1012
    %v1014 = vsub.f32 %v1000, %v1010
    %v1015 = vsub.f32 %v1005, %v1013
    %v1016 = vmul.f32 %v1014, 1.442695
    %v1017 = vpow.pop %v1016
    %v1018 = vmul.f32 %v1015, 1.442695
    %v1019 = vpow.pop %v1018
    %v1020 = vsel %vm488, %v1017, 0.0
    %1021 = vadd.xlane.f32.xlu0 %v1020
    %v1022 = vpop.xlane.xlu0 %1021
    %v1023 = vsel %vm488, %v1019, 0.0
    %1024 = vadd.xlane.f32.xlu0 %v1023
    %v1025 = vpop.xlane.xlu0 %1024
    %v1026 = vrcp.pop %v1022
    %v1027 = vrcp.pop %v1025
    %v1028 = vmul.f32 %v1017, %v1026
    %v1029 = vmul.f32 %v1019, %v1027
    %1030 = vrot.lane.b32.xlu0 %v394, 64
    %v1031 = vpop.permute.xlu0 %1030
    %1032 = vrot.lane.b32.xlu0 %v397, 64
    %v1033 = vpop.permute.xlu0 %1032
    %v1037 = vsel %vm488, %v1028, 0
    %v1040 = vsel %vm488, %v1029, 0
    %1042 = vmatprep.subr.mxu0 0.0
    %1043 = vmatpush1.msra.mxu0 %v1031
    %1044 = vmatprep.subr.mxu0 0.0
    %1045 = vmatpush1.msra.mxu0 %v1033
    %1046 = vmatprep.subr.mxu0 0.0
    %1047 = vmatpush1.msra.mxu0 0.0
    %1048 = vmatprep.subr.mxu0 0.0
    %1049 = vmatpush1.msra.mxu0 0.0
    %1050 = vmatprep.subr.mxu0 0.0
    %1051 = vmatpush1.msra.mxu0 0.0
    %1052 = vmatprep.subr.mxu0 0.0
    %1053 = vmatpush1.msra.mxu0 0.0
    %1054 = vmatprep.subr.mxu0 0.0
    %1055 = vmatpush1.msra.mxu0 0.0
    %1056 = vmatprep.subr.mxu0 0.0
    %1057 = vmatpush1.msra.mxu0 0.0
    %1058 = vmatprep.subr.mxu0 0.0
    %1059 = vmatpush1.msra.mxu0 0.0
    %1060 = vmatprep.subr.mxu0 0.0
    %1061 = vmatpush1.msra.mxu0 0.0
    %1062 = vmatprep.subr.mxu0 0.0
    %1063 = vmatpush1.msra.mxu0 0.0
    %1064 = vmatprep.subr.mxu0 0.0
    %1065 = vmatpush1.msra.mxu0 0.0
    %1066 = vmatprep.subr.mxu0 0.0
    %1067 = vmatpush1.msra.mxu0 0.0
    %1068 = vmatprep.subr.mxu0 0.0
    %1069 = vmatpush1.msra.mxu0 0.0
    %1070 = vmatprep.subr.mxu0 0.0
    %1071 = vmatpush1.msra.mxu0 0.0
    %1072 = vmatprep.subr.mxu0 0.0
    %1073 = vmatpush1.msra.mxu0 0.0
    %1074 = vmatprep.subr.mxu0 0.0
    %1075 = vmatpush1.msra.mxu0 0.0
    %1076 = vmatprep.subr.mxu0 0.0
    %1077 = vmatpush1.msra.mxu0 0.0
    %1078 = vmatprep.subr.mxu0 0.0
    %1079 = vmatpush1.msra.mxu0 0.0
    %1080 = vmatprep.subr.mxu0 0.0
    %1081 = vmatpush1.msra.mxu0 0.0
    %1082 = vmatprep.subr.mxu0 0.0
    %1083 = vmatpush1.msra.mxu0 0.0
    %1084 = vmatprep.subr.mxu0 0.0
    %1085 = vmatpush1.msra.mxu0 0.0
    %1086 = vmatprep.subr.mxu0 0.0
    %1087 = vmatpush1.msra.mxu0 0.0
    %1088 = vmatprep.subr.mxu0 0.0
    %1089 = vmatpush1.msra.mxu0 0.0
    %1090 = vmatprep.subr.mxu0 0.0
    %1091 = vmatpush1.msra.mxu0 0.0
    %1092 = vmatprep.subr.mxu0 0.0
    %1093 = vmatpush1.msra.mxu0 0.0
    %1094 = vmatprep.subr.mxu0 0.0
    %1095 = vmatpush1.msra.mxu0 0.0
    %1096 = vmatprep.subr.mxu0 0.0
    %1097 = vmatpush1.msra.mxu0 0.0
    %1098 = vmatprep.subr.mxu0 0.0
    %1099 = vmatpush1.msra.mxu0 0.0
    %1100 = vmatprep.subr.mxu0 0.0
    %1101 = vmatpush1.msra.mxu0 0.0
    %1102 = vmatprep.subr.mxu0 0.0
    %1103 = vmatpush1.msra.mxu0 0.0
    %1104 = vmatprep.subr.mxu0 0.0
    %1105 = vmatpush1.msra.mxu0 0.0
    %1106 = vmatprep.mubr.f32.mxu0 0.0
    %1107 = vmatmul.mubr.f32.gmra.mrb[0].mxu0 %v1037
    %v1108 = vpop.f32.mrb[0].mxu0
    %v1109 = vadd.f32 0.0, %v1108
    %v1110 = vpop.f32.mrb[0].mxu0
    %1111 = vmatprep.mubr.f32.mxu0 0.0
    %1112 = vmatmul.mubr.f32.gmra.mrb[0].mxu0 %v1040
    %v1113 = vpop.f32.mrb[0].mxu0
    %v1114 = vadd.f32 0.0, %v1113
    %v1115 = vpop.f32.mrb[0].mxu0
    %1116 = vdwg.mxu0
    %v1117 = vpack.c.bf16 %v1114, %v1109
    %s1118 = scalar_lea.vmem [#allocation2], 32
    %v1119 = vld [vmem:[%s1118] sm:$0xf]
    %v1120 = vld [vmem:[%s1118 + $0x4] sm:$0xf]
    %v1121 = vld [vmem:[%s1118 + $0x8] sm:$0xf]
    %v1122 = vld [vmem:[%s1118 + $0xc] sm:$0xf]
    %v1127 = vunpack.c.l.b16 %v1119
    %v1128 = vunpack.c.l.b16 %v1120
    %v1129 = vunpack.c.l.b16 %v1121
    %v1130 = vunpack.c.l.b16 %v1122
    %v1131 = vpack.c.b16 %v1128, %v1127
    %v1132 = vpack.c.b16 %v1130, %v1129
    %v1136 = vsel %vm400, %v1117, 0
    %1138 = vmatprep.subr.bf16.mxu0 0
    %1139 = vmatpush1.bf16.msra.mxu0 %v1131
    %1140 = vmatprep.subr.bf16.mxu0 0
    %1141 = vmatpush1.bf16.msra.mxu0 %v1132
    %1142 = vmatprep.subr.bf16.mxu0 0
    %1143 = vmatpush1.bf16.msra.mxu0 0
    %1144 = vmatprep.subr.bf16.mxu0 0
    %1145 = vmatpush1.bf16.msra.mxu0 0
    %1146 = vmatprep.subr.bf16.mxu0 0
    %1147 = vmatpush1.bf16.msra.mxu0 0
    %1148 = vmatprep.subr.bf16.mxu0 0
    %1149 = vmatpush1.bf16.msra.mxu0 0
    %1150 = vmatprep.subr.bf16.mxu0 0
    %1151 = vmatpush1.bf16.msra.mxu0 0
    %1152 = vmatprep.subr.bf16.mxu0 0
    %1153 = vmatpush1.bf16.msra.mxu0 0
    %1154 = vmatprep.subr.bf16.mxu0 0
    %1155 = vmatpush1.bf16.msra.mxu0 0
    %1156 = vmatprep.subr.bf16.mxu0 0
    %1157 = vmatpush1.bf16.msra.mxu0 0
    %1158 = vmatprep.subr.bf16.mxu0 0
    %1159 = vmatpush1.bf16.msra.mxu0 0
    %1160 = vmatprep.subr.bf16.mxu0 0
    %1161 = vmatpush1.bf16.msra.mxu0 0
    %1162 = vmatprep.subr.bf16.mxu0 0
    %1163 = vmatpush1.bf16.msra.mxu0 0
    %1164 = vmatprep.subr.bf16.mxu0 0
    %1165 = vmatpush1.bf16.msra.mxu0 0
    %1166 = vmatprep.subr.bf16.mxu0 0
    %1167 = vmatpush1.bf16.msra.mxu0 0
    %1168 = vmatprep.subr.bf16.mxu0 0
    %1169 = vmatpush1.bf16.msra.mxu0 0
    %1170 = vmatprep.mubr.bf16.mxu0 0
    %1171 = vmatmul.mubr.bf16.gmra.mrb[0].mxu0 %v1136
    %v1172 = vpop.f32.mrb[0].mxu0
    %v1173 = vadd.f32 0.0, %v1172
    %v1174 = vpop.f32.mrb[0].mxu0
    %v1175 = vpop.f32.mrb[0].mxu0
    %v1176 = vadd.f32 0.0, %v1175
    %v1177 = vpop.f32.mrb[0].mxu0
    %1178 = vdwg.mxu0
    %v1179 = vadd.f32 %v911, %v1173
    %v1180 = vadd.f32 %v914, %v1176
    %1181 = vrot.lane.b32.xlu0 %v351, 32
    %v1182 = vpop.permute.xlu0 %1181
    %1183 = vrot.lane.b32.xlu0 %v355, 32
    %v1184 = vpop.permute.xlu0 %1183
    %1185 = vrot.lane.b32.xlu0 %v353, 32
    %v1186 = vpop.permute.xlu0 %1185
    %1187 = vrot.lane.b32.xlu0 %v357, 32
    %v1188 = vpop.permute.xlu0 %1187
    %v1189 = vsel %vm400, %v1182, 0
    %v1191 = vsel %vm400, %v1184, 0
    %v1193 = vsel %vm400, %v1186, 0
    %v1195 = vsel %vm400, %v1188, 0
    %1197 = vmatprep.subr.mxu0 0.0
    %1198 = vmatpush1.xpose.msra.mxu0 %v1193
    %1199 = vmatprep.subr.mxu0 0.0
    %1200 = vmatpush1.xpose.msra.mxu0 %v1195
    %1201 = vmatprep.subr.mxu0 0.0
    %1202 = vmatpush1.xpose.msra.mxu0 0.0
    %1203 = vmatprep.subr.mxu0 0.0
    %1204 = vmatpush1.xpose.msra.mxu0 0.0
    %1205 = vmatprep.subr.mxu0 0.0
    %1206 = vmatpush1.xpose.msra.mxu0 0.0
    %1207 = vmatprep.subr.mxu0 0.0
    %1208 = vmatpush1.xpose.msra.mxu0 0.0
    %1209 = vmatprep.subr.mxu0 0.0
    %1210 = vmatpush1.xpose.msra.mxu0 0.0
    %1211 = vmatprep.subr.mxu0 0.0
    %1212 = vmatpush1.xpose.msra.mxu0 0.0
    %1213 = vmatprep.subr.mxu0 0.0
    %1214 = vmatpush1.xpose.msra.mxu0 0.0
    %1215 = vmatprep.subr.mxu0 0.0
    %1216 = vmatpush1.xpose.msra.mxu0 0.0
    %1217 = vmatprep.subr.mxu0 0.0
    %1218 = vmatpush1.xpose.msra.mxu0 0.0
    %1219 = vmatprep.subr.mxu0 0.0
    %1220 = vmatpush1.xpose.msra.mxu0 0.0
    %1221 = vmatprep.subr.mxu0 0.0
    %1222 = vmatpush1.xpose.msra.mxu0 0.0
    %1223 = vmatprep.subr.mxu0 0.0
    %1224 = vmatpush1.xpose.msra.mxu0 0.0
    %1225 = vmatprep.subr.mxu0 0.0
    %1226 = vmatpush1.xpose.msra.mxu0 0.0
    %1227 = vmatprep.subr.mxu0 0.0
    %1228 = vmatpush1.xpose.msra.mxu0 0.0
    %1229 = vmatprep.subr.mxu0 0.0
    %1230 = vmatpush1.xpose.msra.mxu0 0.0
    %1231 = vmatprep.subr.mxu0 0.0
    %1232 = vmatpush1.xpose.msra.mxu0 0.0
    %1233 = vmatprep.subr.mxu0 0.0
    %1234 = vmatpush1.xpose.msra.mxu0 0.0
    %1235 = vmatprep.subr.mxu0 0.0
    %1236 = vmatpush1.xpose.msra.mxu0 0.0
    %1237 = vmatprep.subr.mxu0 0.0
    %1238 = vmatpush1.xpose.msra.mxu0 0.0
    %1239 = vmatprep.subr.mxu0 0.0
    %1240 = vmatpush1.xpose.msra.mxu0 0.0
    %1241 = vmatprep.subr.mxu0 0.0
    %1242 = vmatpush1.xpose.msra.mxu0 0.0
    %1243 = vmatprep.subr.mxu0 0.0
    %1244 = vmatpush1.xpose.msra.mxu0 0.0
    %1245 = vmatprep.subr.mxu0 0.0
    %1246 = vmatpush1.xpose.msra.mxu0 0.0
    %1247 = vmatprep.subr.mxu0 0.0
    %1248 = vmatpush1.xpose.msra.mxu0 0.0
    %1249 = vmatprep.subr.mxu0 0.0
    %1250 = vmatpush1.xpose.msra.mxu0 0.0
    %1251 = vmatprep.subr.mxu0 0.0
    %1252 = vmatpush1.xpose.msra.mxu0 0.0
    %1253 = vmatprep.subr.mxu0 0.0
    %1254 = vmatpush1.xpose.msra.mxu0 0.0
    %1255 = vmatprep.subr.mxu0 0.0
    %1256 = vmatpush1.xpose.msra.mxu0 0.0
    %1257 = vmatprep.subr.mxu0 0.0
    %1258 = vmatpush1.xpose.msra.mxu0 0.0
    %1259 = vmatprep.subr.mxu0 0.0
    %1260 = vmatpush1.xpose.msra.mxu0 0.0
    %1261 = vmatprep.mubr.f32.mxu0 0.0
    %1262 = vmatmul.mubr.f32.gmra.mrb[0].mxu0 %v1189
    %v1263 = vpop.f32.mrb[0].mxu0
    %v1264 = vadd.f32 %v134, %v1263
    %v1265 = vpop.f32.mrb[0].mxu0
    %1266 = vmatprep.mubr.f32.mxu0 0.0
    %1267 = vmatmul.mubr.f32.gmra.mrb[0].mxu0 %v1191
    %v1268 = vpop.f32.mrb[0].mxu0
    %v1269 = vadd.f32 %v135, %v1268
    %v1270 = vpop.f32.mrb[0].mxu0
    %1271 = vdwg.mxu0
    %v1272 = vsel %vm488, %v1264, -inf
    %1273 = vmax.xlane.f32.xlu0 %v1272
    %v1274 = vpop.xlane.xlu0 %1273
    %v1275 = vsel %vm488, %v1269, -inf
    %1276 = vmax.xlane.f32.xlu0 %v1275
    %v1277 = vpop.xlane.xlu0 %1276
    %v1278 = vsub.f32 %v1264, %v1274
    %v1279 = vsub.f32 %v1269, %v1277
    %v1280 = vmul.f32 %v1278, 1.442695
    %v1281 = vpow.pop %v1280
    %v1282 = vmul.f32 %v1279, 1.442695
    %v1283 = vpow.pop %v1282
    %v1284 = vsel %vm488, %v1281, 0.0
    %1285 = vadd.xlane.f32.xlu0 %v1284
    %v1286 = vpop.xlane.xlu0 %1285
    %v1287 = vsel %vm488, %v1283, 0.0
    %1288 = vadd.xlane.f32.xlu0 %v1287
    %v1289 = vpop.xlane.xlu0 %1288
    %v1290 = vrcp.pop %v1286
    %v1291 = vrcp.pop %v1289
    %v1292 = vmul.f32 %v1281, %v1290
    %v1293 = vmul.f32 %v1283, %v1291
    %1294 = vrot.lane.b32.xlu0 %v394, 32
    %v1295 = vpop.permute.xlu0 %1294
    %1296 = vrot.lane.b32.xlu0 %v397, 32
    %v1297 = vpop.permute.xlu0 %1296
    %v1301 = vsel %vm488, %v1292, 0
    %v1304 = vsel %vm488, %v1293, 0
    %1306 = vmatprep.subr.mxu0 0.0
    %1307 = vmatpush1.msra.mxu0 %v1295
    %1308 = vmatprep.subr.mxu0 0.0
    %1309 = vmatpush1.msra.mxu0 %v1297
    %1310 = vmatprep.subr.mxu0 0.0
    %1311 = vmatpush1.msra.mxu0 0.0
    %1312 = vmatprep.subr.mxu0 0.0
    %1313 = vmatpush1.msra.mxu0 0.0
    %1314 = vmatprep.subr.mxu0 0.0
    %1315 = vmatpush1.msra.mxu0 0.0
    %1316 = vmatprep.subr.mxu0 0.0
    %1317 = vmatpush1.msra.mxu0 0.0
    %1318 = vmatprep.subr.mxu0 0.0
    %1319 = vmatpush1.msra.mxu0 0.0
    %1320 = vmatprep.subr.mxu0 0.0
    %1321 = vmatpush1.msra.mxu0 0.0
    %1322 = vmatprep.subr.mxu0 0.0
    %1323 = vmatpush1.msra.mxu0 0.0
    %1324 = vmatprep.subr.mxu0 0.0
    %1325 = vmatpush1.msra.mxu0 0.0
    %1326 = vmatprep.subr.mxu0 0.0
    %1327 = vmatpush1.msra.mxu0 0.0
    %1328 = vmatprep.subr.mxu0 0.0
    %1329 = vmatpush1.msra.mxu0 0.0
    %1330 = vmatprep.subr.mxu0 0.0
    %1331 = vmatpush1.msra.mxu0 0.0
    %1332 = vmatprep.subr.mxu0 0.0
    %1333 = vmatpush1.msra.mxu0 0.0
    %1334 = vmatprep.subr.mxu0 0.0
    %1335 = vmatpush1.msra.mxu0 0.0
    %1336 = vmatprep.subr.mxu0 0.0
    %1337 = vmatpush1.msra.mxu0 0.0
    %1338 = vmatprep.subr.mxu0 0.0
    %1339 = vmatpush1.msra.mxu0 0.0
    %1340 = vmatprep.subr.mxu0 0.0
    %1341 = vmatpush1.msra.mxu0 0.0
    %1342 = vmatprep.subr.mxu0 0.0
    %1343 = vmatpush1.msra.mxu0 0.0
    %1344 = vmatprep.subr.mxu0 0.0
    %1345 = vmatpush1.msra.mxu0 0.0
    %1346 = vmatprep.subr.mxu0 0.0
    %1347 = vmatpush1.msra.mxu0 0.0
    %1348 = vmatprep.subr.mxu0 0.0
    %1349 = vmatpush1.msra.mxu0 0.0
    %1350 = vmatprep.subr.mxu0 0.0
    %1351 = vmatpush1.msra.mxu0 0.0
    %1352 = vmatprep.subr.mxu0 0.0
    %1353 = vmatpush1.msra.mxu0 0.0
    %1354 = vmatprep.subr.mxu0 0.0
    %1355 = vmatpush1.msra.mxu0 0.0
    %1356 = vmatprep.subr.mxu0 0.0
    %1357 = vmatpush1.msra.mxu0 0.0
    %1358 = vmatprep.subr.mxu0 0.0
    %1359 = vmatpush1.msra.mxu0 0.0
    %1360 = vmatprep.subr.mxu0 0.0
    %1361 = vmatpush1.msra.mxu0 0.0
    %1362 = vmatprep.subr.mxu0 0.0
    %1363 = vmatpush1.msra.mxu0 0.0
    %1364 = vmatprep.subr.mxu0 0.0
    %1365 = vmatpush1.msra.mxu0 0.0
    %1366 = vmatprep.subr.mxu0 0.0
    %1367 = vmatpush1.msra.mxu0 0.0
    %1368 = vmatprep.subr.mxu0 0.0
    %1369 = vmatpush1.msra.mxu0 0.0
    %1370 = vmatprep.mubr.f32.mxu0 0.0
    %1371 = vmatmul.mubr.f32.gmra.mrb[0].mxu0 %v1301
    %v1372 = vpop.f32.mrb[0].mxu0
    %v1373 = vadd.f32 0.0, %v1372
    %v1374 = vpop.f32.mrb[0].mxu0
    %1375 = vmatprep.mubr.f32.mxu0 0.0
    %1376 = vmatmul.mubr.f32.gmra.mrb[0].mxu0 %v1304
    %v1377 = vpop.f32.mrb[0].mxu0
    %v1378 = vadd.f32 0.0, %v1377
    %v1379 = vpop.f32.mrb[0].mxu0
    %1380 = vdwg.mxu0
    %v1381 = vpack.c.bf16 %v1378, %v1373
    %s1382 = scalar_lea.vmem [#allocation2], 48
    %v1383 = vld [vmem:[%s1382] sm:$0xf]
    %v1384 = vld [vmem:[%s1382 + $0x4] sm:$0xf]
    %v1385 = vld [vmem:[%s1382 + $0x8] sm:$0xf]
    %v1386 = vld [vmem:[%s1382 + $0xc] sm:$0xf]
    %v1391 = vunpack.c.l.b16 %v1383
    %v1392 = vunpack.c.l.b16 %v1384
    %v1393 = vunpack.c.l.b16 %v1385
    %v1394 = vunpack.c.l.b16 %v1386
    %v1395 = vpack.c.b16 %v1392, %v1391
    %v1396 = vpack.c.b16 %v1394, %v1393
    %v1400 = vsel %vm400, %v1381, 0
    %1402 = vmatprep.subr.bf16.mxu0 0
    %1403 = vmatpush1.bf16.msra.mxu0 %v1395
    %1404 = vmatprep.subr.bf16.mxu0 0
    %1405 = vmatpush1.bf16.msra.mxu0 %v1396
    %1406 = vmatprep.subr.bf16.mxu0 0
    %1407 = vmatpush1.bf16.msra.mxu0 0
    %1408 = vmatprep.subr.bf16.mxu0 0
    %1409 = vmatpush1.bf16.msra.mxu0 0
    %1410 = vmatprep.subr.bf16.mxu0 0
    %1411 = vmatpush1.bf16.msra.mxu0 0
    %1412 = vmatprep.subr.bf16.mxu0 0
    %1413 = vmatpush1.bf16.msra.mxu0 0
    %1414 = vmatprep.subr.bf16.mxu0 0
    %1415 = vmatpush1.bf16.msra.mxu0 0
    %1416 = vmatprep.subr.bf16.mxu0 0
    %1417 = vmatpush1.bf16.msra.mxu0 0
    %1418 = vmatprep.subr.bf16.mxu0 0
    %1419 = vmatpush1.bf16.msra.mxu0 0
    %1420 = vmatprep.subr.bf16.mxu0 0
    %1421 = vmatpush1.bf16.msra.mxu0 0
    %1422 = vmatprep.subr.bf16.mxu0 0
    %1423 = vmatpush1.bf16.msra.mxu0 0
    %1424 = vmatprep.subr.bf16.mxu0 0
    %1425 = vmatpush1.bf16.msra.mxu0 0
    %1426 = vmatprep.subr.bf16.mxu0 0
    %1427 = vmatpush1.bf16.msra.mxu0 0
    %1428 = vmatprep.subr.bf16.mxu0 0
    %1429 = vmatpush1.bf16.msra.mxu0 0
    %1430 = vmatprep.subr.bf16.mxu0 0
    %1431 = vmatpush1.bf16.msra.mxu0 0
    %1432 = vmatprep.subr.bf16.mxu0 0
    %1433 = vmatpush1.bf16.msra.mxu0 0
    %1434 = vmatprep.mubr.bf16.mxu0 0
    %1435 = vmatmul.mubr.bf16.gmra.mrb[0].mxu0 %v1400
    %v1436 = vpop.f32.mrb[0].mxu0
    %v1437 = vadd.f32 0.0, %v1436
    %v1438 = vpop.f32.mrb[0].mxu0
    %v1439 = vpop.f32.mrb[0].mxu0
    %v1440 = vadd.f32 0.0, %v1439
    %v1441 = vpop.f32.mrb[0].mxu0
    %1442 = vdwg.mxu0
    %v1443 = vadd.f32 %v1179, %v1437
    %v1444 = vadd.f32 %v1180, %v1440
    %v1445 = vlaneseq
    %v1446 = vshrl.u32 %v1445, 7
    %v1447 = vsub.s32 0, %v1446
    %v1448 = vrot.slane %v136, %v1447
    %v1449 = vadd.f32 %v1443, %v1448
    %v1450 = vadd.f32 %v1444, %v1448
    %v1451 = vadd.f32 %v132, %v1449
    %v1452 = vadd.f32 %v133, %v1450
    %1453 = vadd.xlane.f32.xlu0 %v1451
    %v1454 = vpop.xlane.xlu0 %1453
    %1455 = vadd.xlane.f32.xlu0 %v1452
    %v1456 = vpop.xlane.xlu0 %1455
    %v1457 = vrcp.pop 128.0
    %v1458 = vmul.f32 %v1454, %v1457
    %v1459 = vmul.f32 %v1456, %v1457
    %v1460 = vsub.f32 %v1451, %v1458
    %v1461 = vsub.f32 %v1452, %v1459
    %v1462 = vmul.f32 %v1460, %v1460
    %v1463 = vmul.f32 %v1461, %v1461
    %1464 = vadd.xlane.f32.xlu0 %v1462
    %v1465 = vpop.xlane.xlu0 %1464
    %1466 = vadd.xlane.f32.xlu0 %v1463
    %v1467 = vpop.xlane.xlu0 %1466
    %v1468 = vmul.f32 %v1465, %v1457
    %v1469 = vmul.f32 %v1467, %v1457
    %v1470 = vadd.f32 %v1468, 1e-05
    %v1471 = vadd.f32 %v1469, 1e-05
    %v1472 = vrsqrt.pop %v1470
    %v1473 = vrsqrt.pop %v1471
    %v1474 = vmul.f32 %v1460, %v1472
    %v1475 = vmul.f32 %v1461, %v1473
    %v1476 = vlaneseq
    %v1477 = vshrl.u32 %v1476, 7
    %v1478 = vsub.s32 1, %v1477
    %v1479 = vrot.slane %v136, %v1478
    %v1480 = vmul.f32 %v1474, %v1479
    %v1481 = vmul.f32 %v1475, %v1479
    %v1482 = vlaneseq
    %v1483 = vshrl.u32 %v1482, 7
    %v1484 = vsub.s32 2, %v1483
    %v1485 = vrot.slane %v136, %v1484
    %v1486 = vadd.f32 %v1480, %v1485
    %v1487 = vadd.f32 %v1481, %v1485
    %v1488 = vpack.c.bf16 %v1487, %v1486
    %v1489 = vld [vmem:[#allocation4] sm:$0xff]
    %v1490 = vld [vmem:[#allocation4 + $0x8] sm:$0xff]
    %v1491 = vld [vmem:[#allocation4 + $0x10] sm:$0xff]
    %v1492 = vld [vmem:[#allocation4 + $0x18] sm:$0xff]
    %v1493 = vld [vmem:[#allocation4 + $0x20] sm:$0xff]
    %v1494 = vld [vmem:[#allocation4 + $0x28] sm:$0xff]
    %v1495 = vld [vmem:[#allocation4 + $0x30] sm:$0xff]
    %v1496 = vld [vmem:[#allocation4 + $0x38] sm:$0xff]
    %v1497 = vld [vmem:[#allocation4 + $0x40] sm:$0xff]
    %v1498 = vld [vmem:[#allocation4 + $0x48] sm:$0xff]
    %v1499 = vld [vmem:[#allocation4 + $0x50] sm:$0xff]
    %v1500 = vld [vmem:[#allocation4 + $0x58] sm:$0xff]
    %v1501 = vld [vmem:[#allocation4 + $0x60] sm:$0xff]
    %v1502 = vld [vmem:[#allocation4 + $0x68] sm:$0xff]
    %v1503 = vld [vmem:[#allocation4 + $0x70] sm:$0xff]
    %v1504 = vld [vmem:[#allocation4 + $0x78] sm:$0xff]
    %v1505 = vld [vmem:[#allocation4 + $0x80] sm:$0xff]
    %v1506 = vld [vmem:[#allocation4 + $0x88] sm:$0xff]
    %v1507 = vld [vmem:[#allocation4 + $0x90] sm:$0xff]
    %v1508 = vld [vmem:[#allocation4 + $0x98] sm:$0xff]
    %v1509 = vld [vmem:[#allocation4 + $0xa0] sm:$0xff]
    %v1510 = vld [vmem:[#allocation4 + $0xa8] sm:$0xff]
    %v1511 = vld [vmem:[#allocation4 + $0xb0] sm:$0xff]
    %v1512 = vld [vmem:[#allocation4 + $0xb8] sm:$0xff]
    %v1513 = vld [vmem:[#allocation4 + $0xc0] sm:$0xff]
    %v1514 = vld [vmem:[#allocation4 + $0xc8] sm:$0xff]
    %v1515 = vld [vmem:[#allocation4 + $0xd0] sm:$0xff]
    %v1516 = vld [vmem:[#allocation4 + $0xd8] sm:$0xff]
    %v1517 = vld [vmem:[#allocation4 + $0xe0] sm:$0xff]
    %v1518 = vld [vmem:[#allocation4 + $0xe8] sm:$0xff]
    %v1519 = vld [vmem:[#allocation4 + $0xf0] sm:$0xff]
    %v1520 = vld [vmem:[#allocation4 + $0xf8] sm:$0xff]
    %v1522 = vlaneseq
    %v1523 = vshrl.u32 %v1522, 7
    %v1524 = vsub.s32 0, %v1523
    %v1525 = vrot.slane %v137, %v1524
    %v1526 = vlaneseq
    %v1527 = vshrl.u32 %v1526, 7
    %v1528 = vsub.s32 1, %v1527
    %v1529 = vrot.slane %v137, %v1528
    %v1530 = vlaneseq
    %v1531 = vshrl.u32 %v1530, 7
    %v1532 = vsub.s32 2, %v1531
    %v1533 = vrot.slane %v137, %v1532
    %v1534 = vlaneseq
    %v1535 = vshrl.u32 %v1534, 7
    %v1536 = vsub.s32 3, %v1535
    %v1537 = vrot.slane %v137, %v1536
    %v1574 = vunpack.c.l.b16 %v1489
    %v1575 = vunpack.c.h.b16 %v1489
    %v1576 = vunpack.c.l.b16 %v1490
    %v1577 = vunpack.c.h.b16 %v1490
    %v1578 = vunpack.c.l.b16 %v1491
    %v1579 = vunpack.c.h.b16 %v1491
    %v1580 = vunpack.c.l.b16 %v1492
    %v1581 = vunpack.c.h.b16 %v1492
    %v1582 = vunpack.c.l.b16 %v1493
    %v1583 = vunpack.c.h.b16 %v1493
    %v1584 = vunpack.c.l.b16 %v1494
    %v1585 = vunpack.c.h.b16 %v1494
    %v1586 = vunpack.c.l.b16 %v1495
    %v1587 = vunpack.c.h.b16 %v1495
    %v1588 = vunpack.c.l.b16 %v1496
    %v1589 = vunpack.c.h.b16 %v1496
    %v1590 = vunpack.c.l.b16 %v1497
    %v1591 = vunpack.c.h.b16 %v1497
    %v1592 = vunpack.c.l.b16 %v1498
    %v1593 = vunpack.c.h.b16 %v1498
    %v1594 = vunpack.c.l.b16 %v1499
    %v1595 = vunpack.c.h.b16 %v1499
    %v1596 = vunpack.c.l.b16 %v1500
    %v1597 = vunpack.c.h.b16 %v1500
    %v1598 = vunpack.c.l.b16 %v1501
    %v1599 = vunpack.c.h.b16 %v1501
    %v1600 = vunpack.c.l.b16 %v1502
    %v1601 = vunpack.c.h.b16 %v1502
    %v1602 = vunpack.c.l.b16 %v1503
    %v1603 = vunpack.c.h.b16 %v1503
    %v1604 = vunpack.c.l.b16 %v1504
    %v1605 = vunpack.c.h.b16 %v1504
    %v1606 = vunpack.c.l.b16 %v1505
    %v1607 = vunpack.c.h.b16 %v1505
    %v1608 = vunpack.c.l.b16 %v1506
    %v1609 = vunpack.c.h.b16 %v1506
    %v1610 = vunpack.c.l.b16 %v1507
    %v1611 = vunpack.c.h.b16 %v1507
    %v1612 = vunpack.c.l.b16 %v1508
    %v1613 = vunpack.c.h.b16 %v1508
    %v1614 = vunpack.c.l.b16 %v1509
    %v1615 = vunpack.c.h.b16 %v1509
    %v1616 = vunpack.c.l.b16 %v1510
    %v1617 = vunpack.c.h.b16 %v1510
    %v1618 = vunpack.c.l.b16 %v1511
    %v1619 = vunpack.c.h.b16 %v1511
    %v1620 = vunpack.c.l.b16 %v1512
    %v1621 = vunpack.c.h.b16 %v1512
    %v1622 = vunpack.c.l.b16 %v1513
    %v1623 = vunpack.c.h.b16 %v1513
    %v1624 = vunpack.c.l.b16 %v1514
    %v1625 = vunpack.c.h.b16 %v1514
    %v1626 = vunpack.c.l.b16 %v1515
    %v1627 = vunpack.c.h.b16 %v1515
    %v1628 = vunpack.c.l.b16 %v1516
    %v1629 = vunpack.c.h.b16 %v1516
    %v1630 = vunpack.c.l.b16 %v1517
    %v1631 = vunpack.c.h.b16 %v1517
    %v1632 = vunpack.c.l.b16 %v1518
    %v1633 = vunpack.c.h.b16 %v1518
    %v1634 = vunpack.c.l.b16 %v1519
    %v1635 = vunpack.c.h.b16 %v1519
    %v1636 = vunpack.c.l.b16 %v1520
    %v1637 = vunpack.c.h.b16 %v1520
    %v1638 = vpack.c.b16 %v1578, %v1574
    %v1639 = vpack.c.b16 %v1579, %v1575
    %v1640 = vpack.c.b16 %v1580, %v1576
    %v1641 = vpack.c.b16 %v1581, %v1577
    %v1642 = vpack.c.b16 %v1586, %v1582
    %v1643 = vpack.c.b16 %v1587, %v1583
    %v1644 = vpack.c.b16 %v1588, %v1584
    %v1645 = vpack.c.b16 %v1589, %v1585
    %v1646 = vpack.c.b16 %v1594, %v1590
    %v1647 = vpack.c.b16 %v1595, %v1591
    %v1648 = vpack.c.b16 %v1596, %v1592
    %v1649 = vpack.c.b16 %v1597, %v1593
    %v1650 = vpack.c.b16 %v1602, %v1598
    %v1651 = vpack.c.b16 %v1603, %v1599
    %v1652 = vpack.c.b16 %v1604, %v1600
    %v1653 = vpack.c.b16 %v1605, %v1601
    %v1654 = vpack.c.b16 %v1610, %v1606
    %v1655 = vpack.c.b16 %v1611, %v1607
    %v1656 = vpack.c.b16 %v1612, %v1608
    %v1657 = vpack.c.b16 %v1613, %v1609
    %v1658 = vpack.c.b16 %v1618, %v1614
    %v1659 = vpack.c.b16 %v1619, %v1615
    %v1660 = vpack.c.b16 %v1620, %v1616
    %v1661 = vpack.c.b16 %v1621, %v1617
    %v1662 = vpack.c.b16 %v1626, %v1622
    %v1663 = vpack.c.b16 %v1627, %v1623
    %v1664 = vpack.c.b16 %v1628, %v1624
    %v1665 = vpack.c.b16 %v1629, %v1625
    %v1666 = vpack.c.b16 %v1634, %v1630
    %v1667 = vpack.c.b16 %v1635, %v1631
    %v1668 = vpack.c.b16 %v1636, %v1632
    %v1669 = vpack.c.b16 %v1637, %v1633
    %1702 = vmatprep.subr.bf16.mxu0 %v1639
    %1703 = vmatpush1.bf16.msra.mxu0 %v1638
    %1704 = vmatprep.subr.bf16.mxu0 %v1643
    %1705 = vmatpush1.bf16.msra.mxu0 %v1642
    %1706 = vmatprep.subr.bf16.mxu0 %v1647
    %1707 = vmatpush1.bf16.msra.mxu0 %v1646
    %1708 = vmatprep.subr.bf16.mxu0 %v1651
    %1709 = vmatpush1.bf16.msra.mxu0 %v1650
    %1710 = vmatprep.subr.bf16.mxu0 %v1655
    %1711 = vmatpush1.bf16.msra.mxu0 %v1654
    %1712 = vmatprep.subr.bf16.mxu0 %v1659
    %1713 = vmatpush1.bf16.msra.mxu0 %v1658
    %1714 = vmatprep.subr.bf16.mxu0 %v1663
    %1715 = vmatpush1.bf16.msra.mxu0 %v1662
    %1716 = vmatprep.subr.bf16.mxu0 %v1667
    %1717 = vmatpush1.bf16.msra.mxu0 %v1666
    %1718 = vmatprep.subr.bf16.mxu0 0
    %1719 = vmatpush1.bf16.msra.mxu0 0
    %1720 = vmatprep.subr.bf16.mxu0 0
    %1721 = vmatpush1.bf16.msra.mxu0 0
    %1722 = vmatprep.subr.bf16.mxu0 0
    %1723 = vmatpush1.bf16.msra.mxu0 0
    %1724 = vmatprep.subr.bf16.mxu0 0
    %1725 = vmatpush1.bf16.msra.mxu0 0
    %1726 = vmatprep.subr.bf16.mxu0 0
    %1727 = vmatpush1.bf16.msra.mxu0 0
    %1728 = vmatprep.subr.bf16.mxu0 0
    %1729 = vmatpush1.bf16.msra.mxu0 0
    %1730 = vmatprep.subr.bf16.mxu0 0
    %1731 = vmatpush1.bf16.msra.mxu0 0
    %1732 = vmatprep.subr.bf16.mxu0 0
    %1733 = vmatpush1.bf16.msra.mxu0 0
    %1734 = vmatprep.mubr.bf16.mxu0 0
    %1735 = vmatmul.mubr.bf16.gmra.mrb[0].mxu0 %v1488
    %v1736 = vpop.f32.mrb[0].mxu0
    %v1737 = vadd.f32 %v1525, %v1736
    %v1738 = vpop.f32.mrb[0].mxu0
    %v1739 = vadd.f32 %v1529, %v1738
    %v1740 = vpop.f32.mrb[0].mxu0
    %v1741 = vadd.f32 %v1525, %v1740
    %v1742 = vpop.f32.mrb[0].mxu0
    %v1743 = vadd.f32 %v1529, %v1742
    %1744 = vdwg.mxu0
    %1745 = vmatprep.subr.bf16.mxu0 %v1641
    %1746 = vmatpush1.bf16.msra.mxu0 %v1640
    %1747 = vmatprep.subr.bf16.mxu0 %v1645
    %1748 = vmatpush1.bf16.msra.mxu0 %v1644
    %1749 = vmatprep.subr.bf16.mxu0 %v1649
    %1750 = vmatpush1.bf16.msra.mxu0 %v1648
    %1751 = vmatprep.subr.bf16.mxu0 %v1653
    %1752 = vmatpush1.bf16.msra.mxu0 %v1652
    %1753 = vmatprep.subr.bf16.mxu0 %v1657
    %1754 = vmatpush1.bf16.msra.mxu0 %v1656
    %1755 = vmatprep.subr.bf16.mxu0 %v1661
    %1756 = vmatpush1.bf16.msra.mxu0 %v1660
    %1757 = vmatprep.subr.bf16.mxu0 %v1665
    %1758 = vmatpush1.bf16.msra.mxu0 %v1664
    %1759 = vmatprep.subr.bf16.mxu0 %v1669
    %1760 = vmatpush1.bf16.msra.mxu0 %v1668
    %1761 = vmatprep.subr.bf16.mxu0 0
    %1762 = vmatpush1.bf16.msra.mxu0 0
    %1763 = vmatprep.subr.bf16.mxu0 0
    %1764 = vmatpush1.bf16.msra.mxu0 0
    %1765 = vmatprep.subr.bf16.mxu0 0
    %1766 = vmatpush1.bf16.msra.mxu0 0
    %1767 = vmatprep.subr.bf16.mxu0 0
    %1768 = vmatpush1.bf16.msra.mxu0 0
    %1769 = vmatprep.subr.bf16.mxu0 0
    %1770 = vmatpush1.bf16.msra.mxu0 0
    %1771 = vmatprep.subr.bf16.mxu0 0
    %1772 = vmatpush1.bf16.msra.mxu0 0
    %1773 = vmatprep.subr.bf16.mxu0 0
    %1774 = vmatpush1.bf16.msra.mxu0 0
    %1775 = vmatprep.subr.bf16.mxu0 0
    %1776 = vmatpush1.bf16.msra.mxu0 0
    %1777 = vmatprep.mubr.bf16.mxu0 0
    %1778 = vmatmul.mubr.bf16.gmra.mrb[0].mxu0 %v1488
    %v1779 = vpop.f32.mrb[0].mxu0
    %v1780 = vadd.f32 %v1533, %v1779
    %v1781 = vpop.f32.mrb[0].mxu0
    %v1782 = vadd.f32 %v1537, %v1781
    %v1783 = vpop.f32.mrb[0].mxu0
    %v1784 = vadd.f32 %v1533, %v1783
    %v1785 = vpop.f32.mrb[0].mxu0
    %v1786 = vadd.f32 %v1537, %v1785
    %1787 = vdwg.mxu0
    %v1788 = vmul.f32 %v1737, %v1737
    %v1789 = vmul.f32 %v1739, %v1739
    %v1790 = vmul.f32 %v1780, %v1780
    %v1791 = vmul.f32 %v1782, %v1782
    %v1792 = vmul.f32 %v1741, %v1741
    %v1793 = vmul.f32 %v1743, %v1743
    %v1794 = vmul.f32 %v1784, %v1784
    %v1795 = vmul.f32 %v1786, %v1786
    %v1796 = vmul.f32 %v1737, %v1788
    %v1797 = vmul.f32 %v1739, %v1789
    %v1798 = vmul.f32 %v1780, %v1790
    %v1799 = vmul.f32 %v1782, %v1791
    %v1800 = vmul.f32 %v1741, %v1792
    %v1801 = vmul.f32 %v1743, %v1793
    %v1802 = vmul.f32 %v1784, %v1794
    %v1803 = vmul.f32 %v1786, %v1795
    %v1804 = vmul.f32 %v1796, 0.044715
    %v1805 = vmul.f32 %v1797, 0.044715
    %v1806 = vmul.f32 %v1798, 0.044715
    %v1807 = vmul.f32 %v1799, 0.044715
    %v1808 = vmul.f32 %v1800, 0.044715
    %v1809 = vmul.f32 %v1801, 0.044715
    %v1810 = vmul.f32 %v1802, 0.044715
    %v1811 = vmul.f32 %v1803, 0.044715
    %v1812 = vadd.f32 %v1737, %v1804
    %v1813 = vadd.f32 %v1739, %v1805
    %v1814 = vadd.f32 %v1780, %v1806
    %v1815 = vadd.f32 %v1782, %v1807
    %v1816 = vadd.f32 %v1741, %v1808
    %v1817 = vadd.f32 %v1743, %v1809
    %v1818 = vadd.f32 %v1784, %v1810
    %v1819 = vadd.f32 %v1786, %v1811
    %v1820 = vmul.f32 %v1812, 0.7978846
    %v1821 = vmul.f32 %v1813, 0.7978846
    %v1822 = vmul.f32 %v1814, 0.7978846
    %v1823 = vmul.f32 %v1815, 0.7978846
    %v1824 = vmul.f32 %v1816, 0.7978846
    %v1825 = vmul.f32 %v1817, 0.7978846
    %v1826 = vmul.f32 %v1818, 0.7978846
    %v1827 = vmul.f32 %v1819, 0.7978846
    %v1828 = vtanh.pop %v1820
    %v1829 = vtanh.pop %v1821
    %v1830 = vtanh.pop %v1822
    %v1831 = vtanh.pop %v1823
    %v1832 = vtanh.pop %v1824
    %v1833 = vtanh.pop %v1825
    %v1834 = vtanh.pop %v1826
    %v1835 = vtanh.pop %v1827
    %v1836 = vadd.f32 %v1828, 1.0
    %v1837 = vadd.f32 %v1829, 1.0
    %v1838 = vadd.f32 %v1830, 1.0
    %v1839 = vadd.f32 %v1831, 1.0
    %v1840 = vadd.f32 %v1832, 1.0
    %v1841 = vadd.f32 %v1833, 1.0
    %v1842 = vadd.f32 %v1834, 1.0
    %v1843 = vadd.f32 %v1835, 1.0
    %v1844 = vmul.f32 %v1836, 0.5
    %v1845 = vmul.f32 %v1837, 0.5
    %v1846 = vmul.f32 %v1838, 0.5
    %v1847 = vmul.f32 %v1839, 0.5
    %v1848 = vmul.f32 %v1840, 0.5
    %v1849 = vmul.f32 %v1841, 0.5
    %v1850 = vmul.f32 %v1842, 0.5
    %v1851 = vmul.f32 %v1843, 0.5
    %v1852 = vmul.f32 %v1737, %v1844
    %v1853 = vmul.f32 %v1739, %v1845
    %v1854 = vmul.f32 %v1780, %v1846
    %v1855 = vmul.f32 %v1782, %v1847
    %v1856 = vmul.f32 %v1741, %v1848
    %v1857 = vmul.f32 %v1743, %v1849
    %v1858 = vmul.f32 %v1784, %v1850
    %v1859 = vmul.f32 %v1786, %v1851
    %v1860 = vpack.c.bf16 %v1856, %v1852
    %v1861 = vpack.c.bf16 %v1857, %v1853
    %v1862 = vpack.c.bf16 %v1858, %v1854
    %v1863 = vpack.c.bf16 %v1859, %v1855
    %v1864 = vld [vmem:[#allocation6] sm:$0xf]
    %v1865 = vld [vmem:[#allocation6 + $0x4] sm:$0xf]
    %v1866 = vld [vmem:[#allocation6 + $0x8] sm:$0xf]
    %v1867 = vld [vmem:[#allocation6 + $0xc] sm:$0xf]
    %v1868 = vld [vmem:[#allocation6 + $0x10] sm:$0xf]
    %v1869 = vld [vmem:[#allocation6 + $0x14] sm:$0xf]
    %v1870 = vld [vmem:[#allocation6 + $0x18] sm:$0xf]
    %v1871 = vld [vmem:[#allocation6 + $0x1c] sm:$0xf]
    %v1872 = vld [vmem:[#allocation6 + $0x20] sm:$0xf]
    %v1873 = vld [vmem:[#allocation6 + $0x24] sm:$0xf]
    %v1874 = vld [vmem:[#allocation6 + $0x28] sm:$0xf]
    %v1875 = vld [vmem:[#allocation6 + $0x2c] sm:$0xf]
    %v1876 = vld [vmem:[#allocation6 + $0x30] sm:$0xf]
    %v1877 = vld [vmem:[#allocation6 + $0x34] sm:$0xf]
    %v1878 = vld [vmem:[#allocation6 + $0x38] sm:$0xf]
    %v1879 = vld [vmem:[#allocation6 + $0x3c] sm:$0xf]
    %v1880 = vld [vmem:[#allocation6 + $0x40] sm:$0xf]
    %v1881 = vld [vmem:[#allocation6 + $0x44] sm:$0xf]
    %v1882 = vld [vmem:[#allocation6 + $0x48] sm:$0xf]
    %v1883 = vld [vmem:[#allocation6 + $0x4c] sm:$0xf]
    %v1884 = vld [vmem:[#allocation6 + $0x50] sm:$0xf]
    %v1885 = vld [vmem:[#allocation6 + $0x54] sm:$0xf]
    %v1886 = vld [vmem:[#allocation6 + $0x58] sm:$0xf]
    %v1887 = vld [vmem:[#allocation6 + $0x5c] sm:$0xf]
    %v1888 = vld [vmem:[#allocation6 + $0x60] sm:$0xf]
    %v1889 = vld [vmem:[#allocation6 + $0x64] sm:$0xf]
    %v1890 = vld [vmem:[#allocation6 + $0x68] sm:$0xf]
    %v1891 = vld [vmem:[#allocation6 + $0x6c] sm:$0xf]
    %v1892 = vld [vmem:[#allocation6 + $0x70] sm:$0xf]
    %v1893 = vld [vmem:[#allocation6 + $0x74] sm:$0xf]
    %v1894 = vld [vmem:[#allocation6 + $0x78] sm:$0xf]
    %v1895 = vld [vmem:[#allocation6 + $0x7c] sm:$0xf]
    %v1896 = vld [vmem:[#allocation6 + $0x80] sm:$0xf]
    %v1897 = vld [vmem:[#allocation6 + $0x84] sm:$0xf]
    %v1898 = vld [vmem:[#allocation6 + $0x88] sm:$0xf]
    %v1899 = vld [vmem:[#allocation6 + $0x8c] sm:$0xf]
    %v1900 = vld [vmem:[#allocation6 + $0x90] sm:$0xf]
    %v1901 = vld [vmem:[#allocation6 + $0x94] sm:$0xf]
    %v1902 = vld [vmem:[#allocation6 + $0x98] sm:$0xf]
    %v1903 = vld [vmem:[#allocation6 + $0x9c] sm:$0xf]
    %v1904 = vld [vmem:[#allocation6 + $0xa0] sm:$0xf]
    %v1905 = vld [vmem:[#allocation6 + $0xa4] sm:$0xf]
    %v1906 = vld [vmem:[#allocation6 + $0xa8] sm:$0xf]
    %v1907 = vld [vmem:[#allocation6 + $0xac] sm:$0xf]
    %v1908 = vld [vmem:[#allocation6 + $0xb0] sm:$0xf]
    %v1909 = vld [vmem:[#allocation6 + $0xb4] sm:$0xf]
    %v1910 = vld [vmem:[#allocation6 + $0xb8] sm:$0xf]
    %v1911 = vld [vmem:[#allocation6 + $0xbc] sm:$0xf]
    %v1912 = vld [vmem:[#allocation6 + $0xc0] sm:$0xf]
    %v1913 = vld [vmem:[#allocation6 + $0xc4] sm:$0xf]
    %v1914 = vld [vmem:[#allocation6 + $0xc8] sm:$0xf]
    %v1915 = vld [vmem:[#allocation6 + $0xcc] sm:$0xf]
    %v1916 = vld [vmem:[#allocation6 + $0xd0] sm:$0xf]
    %v1917 = vld [vmem:[#allocation6 + $0xd4] sm:$0xf]
    %v1918 = vld [vmem:[#allocation6 + $0xd8] sm:$0xf]
    %v1919 = vld [vmem:[#allocation6 + $0xdc] sm:$0xf]
    %v1920 = vld [vmem:[#allocation6 + $0xe0] sm:$0xf]
    %v1921 = vld [vmem:[#allocation6 + $0xe4] sm:$0xf]
    %v1922 = vld [vmem:[#allocation6 + $0xe8] sm:$0xf]
    %v1923 = vld [vmem:[#allocation6 + $0xec] sm:$0xf]
    %v1924 = vld [vmem:[#allocation6 + $0xf0] sm:$0xf]
    %v1925 = vld [vmem:[#allocation6 + $0xf4] sm:$0xf]
    %v1926 = vld [vmem:[#allocation6 + $0xf8] sm:$0xf]
    %v1927 = vld [vmem:[#allocation6 + $0xfc] sm:$0xf]
    %v1928 = vlaneseq
    %v1929 = vshrl.u32 %v1928, 7
    %v1930 = vsub.s32 5, %v1929
    %v1931 = vrot.slane %v136, %v1930
    %v1996 = vunpack.c.l.b16 %v1864
    %v1997 = vunpack.c.l.b16 %v1865
    %v1998 = vunpack.c.l.b16 %v1866
    %v1999 = vunpack.c.l.b16 %v1867
    %v2000 = vunpack.c.l.b16 %v1868
    %v2001 = vunpack.c.l.b16 %v1869
    %v2002 = vunpack.c.l.b16 %v1870
    %v2003 = vunpack.c.l.b16 %v1871
    %v2004 = vunpack.c.l.b16 %v1872
    %v2005 = vunpack.c.l.b16 %v1873
    %v2006 = vunpack.c.l.b16 %v1874
    %v2007 = vunpack.c.l.b16 %v1875
    %v2008 = vunpack.c.l.b16 %v1876
    %v2009 = vunpack.c.l.b16 %v1877
    %v2010 = vunpack.c.l.b16 %v1878
    %v2011 = vunpack.c.l.b16 %v1879
    %v2012 = vunpack.c.l.b16 %v1880
    %v2013 = vunpack.c.l.b16 %v1881
    %v2014 = vunpack.c.l.b16 %v1882
    %v2015 = vunpack.c.l.b16 %v1883
    %v2016 = vunpack.c.l.b16 %v1884
    %v2017 = vunpack.c.l.b16 %v1885
    %v2018 = vunpack.c.l.b16 %v1886
    %v2019 = vunpack.c.l.b16 %v1887
    %v2020 = vunpack.c.l.b16 %v1888
    %v2021 = vunpack.c.l.b16 %v1889
    %v2022 = vunpack.c.l.b16 %v1890
    %v2023 = vunpack.c.l.b16 %v1891
    %v2024 = vunpack.c.l.b16 %v1892
    %v2025 = vunpack.c.l.b16 %v1893
    %v2026 = vunpack.c.l.b16 %v1894
    %v2027 = vunpack.c.l.b16 %v1895
    %v2028 = vunpack.c.l.b16 %v1896
    %v2029 = vunpack.c.l.b16 %v1897
    %v2030 = vunpack.c.l.b16 %v1898
    %v2031 = vunpack.c.l.b16 %v1899
    %v2032 = vunpack.c.l.b16 %v1900
    %v2033 = vunpack.c.l.b16 %v1901
    %v2034 = vunpack.c.l.b16 %v1902
    %v2035 = vunpack.c.l.b16 %v1903
    %v2036 = vunpack.c.l.b16 %v1904
    %v2037 = vunpack.c.l.b16 %v1905
    %v2038 = vunpack.c.l.b16 %v1906
    %v2039 = vunpack.c.l.b16 %v1907
    %v2040 = vunpack.c.l.b16 %v1908
    %v2041 = vunpack.c.l.b16 %v1909
    %v2042 = vunpack.c.l.b16 %v1910
    %v2043 = vunpack.c.l.b16 %v1911
    %v2044 = vunpack.c.l.b16 %v1912
    %v2045 = vunpack.c.l.b16 %v1913
    %v2046 = vunpack.c.l.b16 %v1914
    %v2047 = vunpack.c.l.b16 %v1915
    %v2048 = vunpack.c.l.b16 %v1916
    %v2049 = vunpack.c.l.b16 %v1917
    %v2050 = vunpack.c.l.b16 %v1918
    %v2051 = vunpack.c.l.b16 %v1919
    %v2052 = vunpack.c.l.b16 %v1920
    %v2053 = vunpack.c.l.b16 %v1921
    %v2054 = vunpack.c.l.b16 %v1922
    %v2055 = vunpack.c.l.b16 %v1923
    %v2056 = vunpack.c.l.b16 %v1924
    %v2057 = vunpack.c.l.b16 %v1925
    %v2058 = vunpack.c.l.b16 %v1926
    %v2059 = vunpack.c.l.b16 %v1927
    %v2060 = vpack.c.b16 %v1997, %v1996
    %v2061 = vpack.c.b16 %v1999, %v1998
    %v2062 = vpack.c.b16 %v2001, %v2000
    %v2063 = vpack.c.b16 %v2003, %v2002
    %v2064 = vpack.c.b16 %v2005, %v2004
    %v2065 = vpack.c.b16 %v2007, %v2006
    %v2066 = vpack.c.b16 %v2009, %v2008
    %v2067 = vpack.c.b16 %v2011, %v2010
    %v2068 = vpack.c.b16 %v2013, %v2012
    %v2069 = vpack.c.b16 %v2015, %v2014
    %v2070 = vpack.c.b16 %v2017, %v2016
    %v2071 = vpack.c.b16 %v2019, %v2018
    %v2072 = vpack.c.b16 %v2021, %v2020
    %v2073 = vpack.c.b16 %v2023, %v2022
    %v2074 = vpack.c.b16 %v2025, %v2024
    %v2075 = vpack.c.b16 %v2027, %v2026
    %v2076 = vpack.c.b16 %v2029, %v2028
    %v2077 = vpack.c.b16 %v2031, %v2030
    %v2078 = vpack.c.b16 %v2033, %v2032
    %v2079 = vpack.c.b16 %v2035, %v2034
    %v2080 = vpack.c.b16 %v2037, %v2036
    %v2081 = vpack.c.b16 %v2039, %v2038
    %v2082 = vpack.c.b16 %v2041, %v2040
    %v2083 = vpack.c.b16 %v2043, %v2042
    %v2084 = vpack.c.b16 %v2045, %v2044
    %v2085 = vpack.c.b16 %v2047, %v2046
    %v2086 = vpack.c.b16 %v2049, %v2048
    %v2087 = vpack.c.b16 %v2051, %v2050
    %v2088 = vpack.c.b16 %v2053, %v2052
    %v2089 = vpack.c.b16 %v2055, %v2054
    %v2090 = vpack.c.b16 %v2057, %v2056
    %v2091 = vpack.c.b16 %v2059, %v2058
    %2124 = vmatprep.subr.bf16.mxu0 0
    %2125 = vmatpush1.bf16.msra.mxu0 %v2060
    %2126 = vmatprep.subr.bf16.mxu0 0
    %2127 = vmatpush1.bf16.msra.mxu0 %v2061
    %2128 = vmatprep.subr.bf16.mxu0 0
    %2129 = vmatpush1.bf16.msra.mxu0 %v2062
    %2130 = vmatprep.subr.bf16.mxu0 0
    %2131 = vmatpush1.bf16.msra.mxu0 %v2063
    %2132 = vmatprep.subr.bf16.mxu0 0
    %2133 = vmatpush1.bf16.msra.mxu0 %v2064
    %2134 = vmatprep.subr.bf16.mxu0 0
    %2135 = vmatpush1.bf16.msra.mxu0 %v2065
    %2136 = vmatprep.subr.bf16.mxu0 0
    %2137 = vmatpush1.bf16.msra.mxu0 %v2066
    %2138 = vmatprep.subr.bf16.mxu0 0
    %2139 = vmatpush1.bf16.msra.mxu0 %v2067
    %2140 = vmatprep.subr.bf16.mxu0 0
    %2141 = vmatpush1.bf16.msra.mxu0 %v2068
    %2142 = vmatprep.subr.bf16.mxu0 0
    %2143 = vmatpush1.bf16.msra.mxu0 %v2069
    %2144 = vmatprep.subr.bf16.mxu0 0
    %2145 = vmatpush1.bf16.msra.mxu0 %v2070
    %2146 = vmatprep.subr.bf16.mxu0 0
    %2147 = vmatpush1.bf16.msra.mxu0 %v2071
    %2148 = vmatprep.subr.bf16.mxu0 0
    %2149 = vmatpush1.bf16.msra.mxu0 %v2072
    %2150 = vmatprep.subr.bf16.mxu0 0
    %2151 = vmatpush1.bf16.msra.mxu0 %v2073
    %2152 = vmatprep.subr.bf16.mxu0 0
    %2153 = vmatpush1.bf16.msra.mxu0 %v2074
    %2154 = vmatprep.subr.bf16.mxu0 0
    %2155 = vmatpush1.bf16.msra.mxu0 %v2075
    %2156 = vmatprep.mubr.bf16.mxu0 %v1861
    %2157 = vmatmul.mubr.bf16.gmra.mrb[0].mxu0 %v1860
    %v2158 = vpop.f32.mrb[0].mxu0
    %v2159 = vadd.f32 %v1931, %v2158
    %v2160 = vpop.f32.mrb[0].mxu0
    %v2161 = vpop.f32.mrb[0].mxu0
    %v2162 = vadd.f32 %v1931, %v2161
    %v2163 = vpop.f32.mrb[0].mxu0
    %2164 = vdwg.mxu0
    %2165 = vmatprep.subr.bf16.mxu0 0
    %2166 = vmatpush1.bf16.msra.mxu0 %v2076
    %2167 = vmatprep.subr.bf16.mxu0 0
    %2168 = vmatpush1.bf16.msra.mxu0 %v2077
    %2169 = vmatprep.subr.bf16.mxu0 0
    %2170 = vmatpush1.bf16.msra.mxu0 %v2078
    %2171 = vmatprep.subr.bf16.mxu0 0
    %2172 = vmatpush1.bf16.msra.mxu0 %v2079
    %2173 = vmatprep.subr.bf16.mxu0 0
    %2174 = vmatpush1.bf16.msra.mxu0 %v2080
    %2175 = vmatprep.subr.bf16.mxu0 0
    %2176 = vmatpush1.bf16.msra.mxu0 %v2081
    %2177 = vmatprep.subr.bf16.mxu0 0
    %2178 = vmatpush1.bf16.msra.mxu0 %v2082
    %2179 = vmatprep.subr.bf16.mxu0 0
    %2180 = vmatpush1.bf16.msra.mxu0 %v2083
    %2181 = vmatprep.subr.bf16.mxu0 0
    %2182 = vmatpush1.bf16.msra.mxu0 %v2084
    %2183 = vmatprep.subr.bf16.mxu0 0
    %2184 = vmatpush1.bf16.msra.mxu0 %v2085
    %2185 = vmatprep.subr.bf16.mxu0 0
    %2186 = vmatpush1.bf16.msra.mxu0 %v2086
    %2187 = vmatprep.subr.bf16.mxu0 0
    %2188 = vmatpush1.bf16.msra.mxu0 %v2087
    %2189 = vmatprep.subr.bf16.mxu0 0
    %2190 = vmatpush1.bf16.msra.mxu0 %v2088
    %2191 = vmatprep.subr.bf16.mxu0 0
    %2192 = vmatpush1.bf16.msra.mxu0 %v2089
    %2193 = vmatprep.subr.bf16.mxu0 0
    %2194 = vmatpush1.bf16.msra.mxu0 %v2090
    %2195 = vmatprep.subr.bf16.mxu0 0
    %2196 = vmatpush1.bf16.msra.mxu0 %v2091
    %2197 = vmatprep.mubr.bf16.mxu0 %v1863
    %2198 = vmatmul.mubr.bf16.gmra.mrb[0].mxu0 %v1862
    %v2199 = vpop.f32.mrb[0].mxu0
    %v2200 = vadd.f32 %v2159, %v2199
    %v2201 = vpop.f32.mrb[0].mxu0
    %v2202 = vpop.f32.mrb[0].mxu0
    %v2203 = vadd.f32 %v2162, %v2202
    %v2204 = vpop.f32.mrb[0].mxu0
    %2205 = vdwg.mxu0
    %v2206 = vadd.f32 %v1486, %v2200
    %v2207 = vadd.f32 %v1487, %v2203
    %2208 = vadd.xlane.f32.xlu0 %v2206
    %v2209 = vpop.xlane.xlu0 %2208
    %2210 = vadd.xlane.f32.xlu0 %v2207
    %v2211 = vpop.xlane.xlu0 %2210
    %v2212 = vmul.f32 %v2209, %v1457
    %v2213 = vmul.f32 %v2211, %v1457
    %v2214 = vsub.f32 %v2206, %v2212
    %v2215 = vsub.f32 %v2207, %v2213
    %v2216 = vmul.f32 %v2214, %v2214
    %v2217 = vmul.f32 %v2215, %v2215
    %2218 = vadd.xlane.f32.xlu0 %v2216
    %v2219 = vpop.xlane.xlu0 %2218
    %2220 = vadd.xlane.f32.xlu0 %v2217
    %v2221 = vpop.xlane.xlu0 %2220
    %v2222 = vmul.f32 %v2219, %v1457
    %v2223 = vmul.f32 %v2221, %v1457
    %v2224 = vadd.f32 %v2222, 1e-05
    %v2225 = vadd.f32 %v2223, 1e-05
    %v2226 = vrsqrt.pop %v2224
    %v2227 = vrsqrt.pop %v2225
    %v2228 = vmul.f32 %v2214, %v2226
    %v2229 = vmul.f32 %v2215, %v2227
    %v2230 = vlaneseq
    %v2231 = vshrl.u32 %v2230, 7
    %v2232 = vsub.s32 3, %v2231
    %v2233 = vrot.slane %v136, %v2232
    %v2234 = vmul.f32 %v2228, %v2233
    %v2235 = vmul.f32 %v2229, %v2233
    %v2236 = vlaneseq
    %v2237 = vshrl.u32 %v2236, 7
    %v2238 = vsub.s32 4, %v2237
    %v2239 = vrot.slane %v136, %v2238
    %v2240 = vadd.f32 %v2234, %v2239
    %v2241 = vadd.f32 %v2235, %v2239
    %s2242 = scalar_lea.vmem [#allocation7], 8
    %v2243 = vld [vmem:[%s2242] sm:$0xff]
    %s2244 = scalar_lea.vmem [#allocation9], 4
    %v2245 = vld [vmem:[%s2244] sm:$0xf]
    %s2246 = scalar_lea.vmem %s3, 3
    %v2247 = vld [vmem:[%s2246] sm:$0x7]
    %v2248 = vpack.c.bf16 %v2241, %v2240
    %s2249 = scalar_lea.vmem %s2, 192
    %v2250 = vld [vmem:[%s2249] sm:$0xff]
    %v2251 = vld [vmem:[%s2249 + $0x8] sm:$0xf]
    %v2252 = vld [vmem:[%s2249 + $0xc] sm:$0xff]
    %v2253 = vld [vmem:[%s2249 + $0x14] sm:$0xf]
    %v2254 = vld [vmem:[%s2249 + $0x18] sm:$0xff]
    %v2255 = vld [vmem:[%s2249 + $0x20] sm:$0xf]
    %v2256 = vld [vmem:[%s2249 + $0x24] sm:$0xff]
    %v2257 = vld [vmem:[%s2249 + $0x2c] sm:$0xf]
    %v2258 = vld [vmem:[%s2249 + $0x30] sm:$0xff]
    %v2259 = vld [vmem:[%s2249 + $0x38] sm:$0xf]
    %v2260 = vld [vmem:[%s2249 + $0x3c] sm:$0xff]
    %v2261 = vld [vmem:[%s2249 + $0x44] sm:$0xf]
    %v2262 = vld [vmem:[%s2249 + $0x48] sm:$0xff]
    %v2263 = vld [vmem:[%s2249 + $0x50] sm:$0xf]
    %v2264 = vld [vmem:[%s2249 + $0x54] sm:$0xff]
    %v2265 = vld [vmem:[%s2249 + $0x5c] sm:$0xf]
    %v2266 = vld [vmem:[%s2249 + $0x60] sm:$0xff]
    %v2267 = vld [vmem:[%s2249 + $0x68] sm:$0xf]
    %v2268 = vld [vmem:[%s2249 + $0x6c] sm:$0xff]
    %v2269 = vld [vmem:[%s2249 + $0x74] sm:$0xf]
    %v2270 = vld [vmem:[%s2249 + $0x78] sm:$0xff]
    %v2271 = vld [vmem:[%s2249 + $0x80] sm:$0xf]
    %v2272 = vld [vmem:[%s2249 + $0x84] sm:$0xff]
    %v2273 = vld [vmem:[%s2249 + $0x8c] sm:$0xf]
    %v2274 = vld [vmem:[%s2249 + $0x90] sm:$0xff]
    %v2275 = vld [vmem:[%s2249 + $0x98] sm:$0xf]
    %v2276 = vld [vmem:[%s2249 + $0x9c] sm:$0xff]
    %v2277 = vld [vmem:[%s2249 + $0xa4] sm:$0xf]
    %v2278 = vld [vmem:[%s2249 + $0xa8] sm:$0xff]
    %v2279 = vld [vmem:[%s2249 + $0xb0] sm:$0xf]
    %v2280 = vld [vmem:[%s2249 + $0xb4] sm:$0xff]
    %v2281 = vld [vmem:[%s2249 + $0xbc] sm:$0xf]
    %v2283 = vlaneseq
    %v2284 = vshrl.u32 %v2283, 7
    %v2285 = vsub.s32 0, %v2284
    %v2286 = vrot.slane %v2247, %v2285
    %v2287 = vlaneseq
    %v2288 = vshrl.u32 %v2287, 7
    %v2289 = vsub.s32 1, %v2288
    %v2290 = vrot.slane %v2247, %v2289
    %v2291 = vlaneseq
    %v2292 = vshrl.u32 %v2291, 7
    %v2293 = vsub.s32 2, %v2292
    %v2294 = vrot.slane %v2247, %v2293
    %v2330 = vunpack.c.l.b16 %v2250
    %v2331 = vunpack.c.h.b16 %v2250
    %v2332 = vunpack.c.l.b16 %v2251
    %v2333 = vunpack.c.l.b16 %v2252
    %v2334 = vunpack.c.h.b16 %v2252
    %v2335 = vunpack.c.l.b16 %v2253
    %v2336 = vunpack.c.l.b16 %v2254
    %v2337 = vunpack.c.h.b16 %v2254
    %v2338 = vunpack.c.l.b16 %v2255
    %v2339 = vunpack.c.l.b16 %v2256
    %v2340 = vunpack.c.h.b16 %v2256
    %v2341 = vunpack.c.l.b16 %v2257
    %v2342 = vunpack.c.l.b16 %v2258
    %v2343 = vunpack.c.h.b16 %v2258
    %v2344 = vunpack.c.l.b16 %v2259
    %v2345 = vunpack.c.l.b16 %v2260
    %v2346 = vunpack.c.h.b16 %v2260
    %v2347 = vunpack.c.l.b16 %v2261
    %v2348 = vunpack.c.l.b16 %v2262
    %v2349 = vunpack.c.h.b16 %v2262
    %v2350 = vunpack.c.l.b16 %v2263
    %v2351 = vunpack.c.l.b16 %v2264
    %v2352 = vunpack.c.h.b16 %v2264
    %v2353 = vunpack.c.l.b16 %v2265
    %v2354 = vunpack.c.l.b16 %v2266
    %v2355 = vunpack.c.h.b16 %v2266
    %v2356 = vunpack.c.l.b16 %v2267
    %v2357 = vunpack.c.l.b16 %v2268
    %v2358 = vunpack.c.h.b16 %v2268
    %v2359 = vunpack.c.l.b16 %v2269
    %v2360 = vunpack.c.l.b16 %v2270
    %v2361 = vunpack.c.h.b16 %v2270
    %v2362 = vunpack.c.l.b16 %v2271
    %v2363 = vunpack.c.l.b16 %v2272
    %v2364 = vunpack.c.h.b16 %v2272
    %v2365 = vunpack.c.l.b16 %v2273
    %v2366 = vunpack.c.l.b16 %v2274
    %v2367 = vunpack.c.h.b16 %v2274
    %v2368 = vunpack.c.l.b16 %v2275
    %v2369 = vunpack.c.l.b16 %v2276
    %v2370 = vunpack.c.h.b16 %v2276
    %v2371 = vunpack.c.l.b16 %v2277
    %v2372 = vunpack.c.l.b16 %v2278
    %v2373 = vunpack.c.h.b16 %v2278
    %v2374 = vunpack.c.l.b16 %v2279
    %v2375 = vunpack.c.l.b16 %v2280
    %v2376 = vunpack.c.h.b16 %v2280
    %v2377 = vunpack.c.l.b16 %v2281
    %v2378 = vpack.c.b16 %v2333, %v2330
    %v2379 = vpack.c.b16 %v2334, %v2331
    %v2380 = vpack.c.b16 %v2335, %v2332
    %v2381 = vpack.c.b16 %v2339, %v2336
    %v2382 = vpack.c.b16 %v2340, %v2337
    %v2383 = vpack.c.b16 %v2341, %v2338
    %v2384 = vpack.c.b16 %v2345, %v2342
    %v2385 = vpack.c.b16 %v2346, %v2343
    %v2386 = vpack.c.b16 %v2347, %v2344
    %v2387 = vpack.c.b16 %v2351, %v2348
    %v2388 = vpack.c.b16 %v2352, %v2349
    %v2389 = vpack.c.b16 %v2353, %v2350
    %v2390 = vpack.c.b16 %v2357, %v2354
    %v2391 = vpack.c.b16 %v2358, %v2355
    %v2392 = vpack.c.b16 %v2359, %v2356
    %v2393 = vpack.c.b16 %v2363, %v2360
    %v2394 = vpack.c.b16 %v2364, %v2361
    %v2395 = vpack.c.b16 %v2365, %v2362
    %v2396 = vpack.c.b16 %v2369, %v2366
    %v2397 = vpack.c.b16 %v2370, %v2367
    %v2398 = vpack.c.b16 %v2371, %v2368
    %v2399 = vpack.c.b16 %v2375, %v2372
    %v2400 = vpack.c.b16 %v2376, %v2373
    %v2401 = vpack.c.b16 %v2377, %v2374
    %2426 = vmatprep.subr.bf16.mxu0 %v2379
    %2427 = vmatpush1.bf16.msra.mxu0 %v2378
    %2428 = vmatprep.subr.bf16.mxu0 %v2382
    %2429 = vmatpush1.bf16.msra.mxu0 %v2381
    %2430 = vmatprep.subr.bf16.mxu0 %v2385
    %2431 = vmatpush1.bf16.msra.mxu0 %v2384
    %2432 = vmatprep.subr.bf16.mxu0 %v2388
    %2433 = vmatpush1.bf16.msra.mxu0 %v2387
    %2434 = vmatprep.subr.bf16.mxu0 %v2391
    %2435 = vmatpush1.bf16.msra.mxu0 %v2390
    %2436 = vmatprep.subr.bf16.mxu0 %v2394
    %2437 = vmatpush1.bf16.msra.mxu0 %v2393
    %2438 = vmatprep.subr.bf16.mxu0 %v2397
    %2439 = vmatpush1.bf16.msra.mxu0 %v2396
    %2440 = vmatprep.subr.bf16.mxu0 %v2400
    %2441 = vmatpush1.bf16.msra.mxu0 %v2399
    %2442 = vmatprep.subr.bf16.mxu0 0
    %2443 = vmatpush1.bf16.msra.mxu0 0
    %2444 = vmatprep.subr.bf16.mxu0 0
    %2445 = vmatpush1.bf16.msra.mxu0 0
    %2446 = vmatprep.subr.bf16.mxu0 0
    %2447 = vmatpush1.bf16.msra.mxu0 0
    %2448 = vmatprep.subr.bf16.mxu0 0
    %2449 = vmatpush1.bf16.msra.mxu0 0
    %2450 = vmatprep.subr.bf16.mxu0 0
    %2451 = vmatpush1.bf16.msra.mxu0 0
    %2452 = vmatprep.subr.bf16.mxu0 0
    %2453 = vmatpush1.bf16.msra.mxu0 0
    %2454 = vmatprep.subr.bf16.mxu0 0
    %2455 = vmatpush1.bf16.msra.mxu0 0
    %2456 = vmatprep.subr.bf16.mxu0 0
    %2457 = vmatpush1.bf16.msra.mxu0 0
    %2458 = vmatprep.mubr.bf16.mxu0 0
    %2459 = vmatmul.mubr.bf16.gmra.mrb[0].mxu0 %v2248
    %v2460 = vpop.f32.mrb[0].mxu0
    %v2461 = vadd.f32 %v2286, %v2460
    %v2462 = vpop.f32.mrb[0].mxu0
    %v2463 = vadd.f32 %v2290, %v2462
    %v2464 = vpop.f32.mrb[0].mxu0
    %v2465 = vadd.f32 %v2286, %v2464
    %v2466 = vpop.f32.mrb[0].mxu0
    %v2467 = vadd.f32 %v2290, %v2466
    %2468 = vdwg.mxu0
    %2469 = vmatprep.subr.bf16.mxu0 0
    %2470 = vmatpush1.bf16.msra.mxu0 %v2380
    %2471 = vmatprep.subr.bf16.mxu0 0
    %2472 = vmatpush1.bf16.msra.mxu0 %v2383
    %2473 = vmatprep.subr.bf16.mxu0 0
    %2474 = vmatpush1.bf16.msra.mxu0 %v2386
    %2475 = vmatprep.subr.bf16.mxu0 0
    %2476 = vmatpush1.bf16.msra.mxu0 %v2389
    %2477 = vmatprep.subr.bf16.mxu0 0
    %2478 = vmatpush1.bf16.msra.mxu0 %v2392
    %2479 = vmatprep.subr.bf16.mxu0 0
    %2480 = vmatpush1.bf16.msra.mxu0 %v2395
    %2481 = vmatprep.subr.bf16.mxu0 0
    %2482 = vmatpush1.bf16.msra.mxu0 %v2398
    %2483 = vmatprep.subr.bf16.mxu0 0
    %2484 = vmatpush1.bf16.msra.mxu0 %v2401
    %2485 = vmatprep.subr.bf16.mxu0 0
    %2486 = vmatpush1.bf16.msra.mxu0 0
    %2487 = vmatprep.subr.bf16.mxu0 0
    %2488 = vmatpush1.bf16.msra.mxu0 0
    %2489 = vmatprep.subr.bf16.mxu0 0
    %2490 = vmatpush1.bf16.msra.mxu0 0
    %2491 = vmatprep.subr.bf16.mxu0 0
    %2492 = vmatpush1.bf16.msra.mxu0 0
    %2493 = vmatprep.subr.bf16.mxu0 0
    %2494 = vmatpush1.bf16.msra.mxu0 0
    %2495 = vmatprep.subr.bf16.mxu0 0
    %2496 = vmatpush1.bf16.msra.mxu0 0
    %2497 = vmatprep.subr.bf16.mxu0 0
    %2498 = vmatpush1.bf16.msra.mxu0 0
    %2499 = vmatprep.subr.bf16.mxu0 0
    %2500 = vmatpush1.bf16.msra.mxu0 0
    %2501 = vmatprep.mubr.bf16.mxu0 0
    %2502 = vmatmul.mubr.bf16.gmra.mrb[0].mxu0 %v2248
    %v2503 = vpop.f32.mrb[0].mxu0
    %v2504 = vadd.f32 %v2294, %v2503
    %v2505 = vpop.f32.mrb[0].mxu0
    %v2506 = vpop.f32.mrb[0].mxu0
    %v2507 = vadd.f32 %v2294, %v2506
    %v2508 = vpop.f32.mrb[0].mxu0
    %2509 = vdwg.mxu0
    %v2511 = vsel %vm400, %v2461, 0
    %v2514 = vsel %vm400, %v2465, 0
    %v2517 = vsel %vm400, %v2463, 0
    %v2520 = vsel %vm400, %v2467, 0
    %2522 = vmatprep.subr.mxu0 0.0
    %2523 = vmatpush1.xpose.msra.mxu0 %v2517
    %2524 = vmatprep.subr.mxu0 0.0
    %2525 = vmatpush1.xpose.msra.mxu0 %v2520
    %2526 = vmatprep.subr.mxu0 0.0
    %2527 = vmatpush1.xpose.msra.mxu0 0.0
    %2528 = vmatprep.subr.mxu0 0.0
    %2529 = vmatpush1.xpose.msra.mxu0 0.0
    %2530 = vmatprep.subr.mxu0 0.0
    %2531 = vmatpush1.xpose.msra.mxu0 0.0
    %2532 = vmatprep.subr.mxu0 0.0
    %2533 = vmatpush1.xpose.msra.mxu0 0.0
    %2534 = vmatprep.subr.mxu0 0.0
    %2535 = vmatpush1.xpose.msra.mxu0 0.0
    %2536 = vmatprep.subr.mxu0 0.0
    %2537 = vmatpush1.xpose.msra.mxu0 0.0
    %2538 = vmatprep.subr.mxu0 0.0
    %2539 = vmatpush1.xpose.msra.mxu0 0.0
    %2540 = vmatprep.subr.mxu0 0.0
    %2541 = vmatpush1.xpose.msra.mxu0 0.0
    %2542 = vmatprep.subr.mxu0 0.0
    %2543 = vmatpush1.xpose.msra.mxu0 0.0
    %2544 = vmatprep.subr.mxu0 0.0
    %2545 = vmatpush1.xpose.msra.mxu0 0.0
    %2546 = vmatprep.subr.mxu0 0.0
    %2547 = vmatpush1.xpose.msra.mxu0 0.0
    %2548 = vmatprep.subr.mxu0 0.0
    %2549 = vmatpush1.xpose.msra.mxu0 0.0
    %2550 = vmatprep.subr.mxu0 0.0
    %2551 = vmatpush1.xpose.msra.mxu0 0.0
    %2552 = vmatprep.subr.mxu0 0.0
    %2553 = vmatpush1.xpose.msra.mxu0 0.0
    %2554 = vmatprep.subr.mxu0 0.0
    %2555 = vmatpush1.xpose.msra.mxu0 0.0
    %2556 = vmatprep.subr.mxu0 0.0
    %2557 = vmatpush1.xpose.msra.mxu0 0.0
    %2558 = vmatprep.subr.mxu0 0.0
    %2559 = vmatpush1.xpose.msra.mxu0 0.0
    %2560 = vmatprep.subr.mxu0 0.0
    %2561 = vmatpush1.xpose.msra.mxu0 0.0
    %2562 = vmatprep.subr.mxu0 0.0
    %2563 = vmatpush1.xpose.msra.mxu0 0.0
    %2564 = vmatprep.subr.mxu0 0.0
    %2565 = vmatpush1.xpose.msra.mxu0 0.0
    %2566 = vmatprep.subr.mxu0 0.0
    %2567 = vmatpush1.xpose.msra.mxu0 0.0
    %2568 = vmatprep.subr.mxu0 0.0
    %2569 = vmatpush1.xpose.msra.mxu0 0.0
    %2570 = vmatprep.subr.mxu0 0.0
    %2571 = vmatpush1.xpose.msra.mxu0 0.0
    %2572 = vmatprep.subr.mxu0 0.0
    %2573 = vmatpush1.xpose.msra.mxu0 0.0
    %2574 = vmatprep.subr.mxu0 0.0
    %2575 = vmatpush1.xpose.msra.mxu0 0.0
    %2576 = vmatprep.subr.mxu0 0.0
    %2577 = vmatpush1.xpose.msra.mxu0 0.0
    %2578 = vmatprep.subr.mxu0 0.0
    %2579 = vmatpush1.xpose.msra.mxu0 0.0
    %2580 = vmatprep.subr.mxu0 0.0
    %2581 = vmatpush1.xpose.msra.mxu0 0.0
    %2582 = vmatprep.subr.mxu0 0.0
    %2583 = vmatpush1.xpose.msra.mxu0 0.0
    %2584 = vmatprep.subr.mxu0 0.0
    %2585 = vmatpush1.xpose.msra.mxu0 0.0
    %2586 = vmatprep.mubr.f32.mxu0 0.0
    %2587 = vmatmul.mubr.f32.gmra.mrb[0].mxu0 %v2511
    %v2588 = vpop.f32.mrb[0].mxu0
    %v2589 = vadd.f32 %v134, %v2588
    %v2590 = vpop.f32.mrb[0].mxu0
    %2591 = vmatprep.mubr.f32.mxu0 0.0
    %2592 = vmatmul.mubr.f32.gmra.mrb[0].mxu0 %v2514
    %v2593 = vpop.f32.mrb[0].mxu0
    %v2594 = vadd.f32 %v135, %v2593
    %v2595 = vpop.f32.mrb[0].mxu0
    %2596 = vdwg.mxu0
    %v2597 = vsel %vm488, %v2589, -inf
    %2598 = vmax.xlane.f32.xlu0 %v2597
    %v2599 = vpop.xlane.xlu0 %2598
    %v2600 = vsel %vm488, %v2594, -inf
    %2601 = vmax.xlane.f32.xlu0 %v2600
    %v2602 = vpop.xlane.xlu0 %2601
    %v2603 = vsub.f32 %v2589, %v2599
    %v2604 = vsub.f32 %v2594, %v2602
    %v2605 = vmul.f32 %v2603, 1.442695
    %v2606 = vpow.pop %v2605
    %v2607 = vmul.f32 %v2604, 1.442695
    %v2608 = vpow.pop %v2607
    %v2609 = vsel %vm488, %v2606, 0.0
    %2610 = vadd.xlane.f32.xlu0 %v2609
    %v2611 = vpop.xlane.xlu0 %2610
    %v2612 = vsel %vm488, %v2608, 0.0
    %2613 = vadd.xlane.f32.xlu0 %v2612
    %v2614 = vpop.xlane.xlu0 %2613
    %v2615 = vrcp.pop %v2611
    %v2616 = vrcp.pop %v2614
    %v2617 = vmul.f32 %v2606, %v2615
    %v2618 = vmul.f32 %v2608, %v2616
    %v2620 = vsel %vm488, %v2617, 0
    %v2623 = vsel %vm488, %v2618, 0
    %2625 = vmatprep.subr.mxu0 0.0
    %2626 = vmatpush1.msra.mxu0 %v2504
    %2627 = vmatprep.subr.mxu0 0.0
    %2628 = vmatpush1.msra.mxu0 %v2507
    %2629 = vmatprep.subr.mxu0 0.0
    %2630 = vmatpush1.msra.mxu0 0.0
    %2631 = vmatprep.subr.mxu0 0.0
    %2632 = vmatpush1.msra.mxu0 0.0
    %2633 = vmatprep.subr.mxu0 0.0
    %2634 = vmatpush1.msra.mxu0 0.0
    %2635 = vmatprep.subr.mxu0 0.0
    %2636 = vmatpush1.msra.mxu0 0.0
    %2637 = vmatprep.subr.mxu0 0.0
    %2638 = vmatpush1.msra.mxu0 0.0
    %2639 = vmatprep.subr.mxu0 0.0
    %2640 = vmatpush1.msra.mxu0 0.0
    %2641 = vmatprep.subr.mxu0 0.0
    %2642 = vmatpush1.msra.mxu0 0.0
    %2643 = vmatprep.subr.mxu0 0.0
    %2644 = vmatpush1.msra.mxu0 0.0
    %2645 = vmatprep.subr.mxu0 0.0
    %2646 = vmatpush1.msra.mxu0 0.0
    %2647 = vmatprep.subr.mxu0 0.0
    %2648 = vmatpush1.msra.mxu0 0.0
    %2649 = vmatprep.subr.mxu0 0.0
    %2650 = vmatpush1.msra.mxu0 0.0
    %2651 = vmatprep.subr.mxu0 0.0
    %2652 = vmatpush1.msra.mxu0 0.0
    %2653 = vmatprep.subr.mxu0 0.0
    %2654 = vmatpush1.msra.mxu0 0.0
    %2655 = vmatprep.subr.mxu0 0.0
    %2656 = vmatpush1.msra.mxu0 0.0
    %2657 = vmatprep.subr.mxu0 0.0
    %2658 = vmatpush1.msra.mxu0 0.0
    %2659 = vmatprep.subr.mxu0 0.0
    %2660 = vmatpush1.msra.mxu0 0.0
    %2661 = vmatprep.subr.mxu0 0.0
    %2662 = vmatpush1.msra.mxu0 0.0
    %2663 = vmatprep.subr.mxu0 0.0
    %2664 = vmatpush1.msra.mxu0 0.0
    %2665 = vmatprep.subr.mxu0 0.0
    %2666 = vmatpush1.msra.mxu0 0.0
    %2667 = vmatprep.subr.mxu0 0.0
    %2668 = vmatpush1.msra.mxu0 0.0
    %2669 = vmatprep.subr.mxu0 0.0
    %2670 = vmatpush1.msra.mxu0 0.0
    %2671 = vmatprep.subr.mxu0 0.0
    %2672 = vmatpush1.msra.mxu0 0.0
    %2673 = vmatprep.subr.mxu0 0.0
    %2674 = vmatpush1.msra.mxu0 0.0
    %2675 = vmatprep.subr.mxu0 0.0
    %2676 = vmatpush1.msra.mxu0 0.0
    %2677 = vmatprep.subr.mxu0 0.0
    %2678 = vmatpush1.msra.mxu0 0.0
    %2679 = vmatprep.subr.mxu0 0.0
    %2680 = vmatpush1.msra.mxu0 0.0
    %2681 = vmatprep.subr.mxu0 0.0
    %2682 = vmatpush1.msra.mxu0 0.0
    %2683 = vmatprep.subr.mxu0 0.0
    %2684 = vmatpush1.msra.mxu0 0.0
    %2685 = vmatprep.subr.mxu0 0.0
    %2686 = vmatpush1.msra.mxu0 0.0
    %2687 = vmatprep.subr.mxu0 0.0
    %2688 = vmatpush1.msra.mxu0 0.0
    %2689 = vmatprep.mubr.f32.mxu0 0.0
    %2690 = vmatmul.mubr.f32.gmra.mrb[0].mxu0 %v2620
    %v2691 = vpop.f32.mrb[0].mxu0
    %v2692 = vadd.f32 0.0, %v2691
    %v2693 = vpop.f32.mrb[0].mxu0
    %2694 = vmatprep.mubr.f32.mxu0 0.0
    %2695 = vmatmul.mubr.f32.gmra.mrb[0].mxu0 %v2623
    %v2696 = vpop.f32.mrb[0].mxu0
    %v2697 = vadd.f32 0.0, %v2696
    %v2698 = vpop.f32.mrb[0].mxu0
    %2699 = vdwg.mxu0
    %v2700 = vpack.c.bf16 %v2697, %v2692
    %s2701 = scalar_lea.vmem [#allocation2], 64
    %v2702 = vld [vmem:[%s2701] sm:$0xf]
    %v2703 = vld [vmem:[%s2701 + $0x4] sm:$0xf]
    %v2704 = vld [vmem:[%s2701 + $0x8] sm:$0xf]
    %v2705 = vld [vmem:[%s2701 + $0xc] sm:$0xf]
    %2706 = vrot.lane.b32.xlu0 %v2461, 96
    %v2707 = vpop.permute.xlu0 %2706
    %2708 = vrot.lane.b32.xlu0 %v2465, 96
    %v2709 = vpop.permute.xlu0 %2708
    %2710 = vrot.lane.b32.xlu0 %v2463, 96
    %v2711 = vpop.permute.xlu0 %2710
    %2712 = vrot.lane.b32.xlu0 %v2467, 96
    %v2713 = vpop.permute.xlu0 %2712
    %v2714 = vsel %vm400, %v2707, 0
    %v2716 = vsel %vm400, %v2709, 0
    %v2718 = vsel %vm400, %v2711, 0
    %v2720 = vsel %vm400, %v2713, 0
    %2722 = vmatprep.subr.mxu0 0.0
    %2723 = vmatpush1.xpose.msra.mxu0 %v2718
    %2724 = vmatprep.subr.mxu0 0.0
    %2725 = vmatpush1.xpose.msra.mxu0 %v2720
    %2726 = vmatprep.subr.mxu0 0.0
    %2727 = vmatpush1.xpose.msra.mxu0 0.0
    %2728 = vmatprep.subr.mxu0 0.0
    %2729 = vmatpush1.xpose.msra.mxu0 0.0
    %2730 = vmatprep.subr.mxu0 0.0
    %2731 = vmatpush1.xpose.msra.mxu0 0.0
    %2732 = vmatprep.subr.mxu0 0.0
    %2733 = vmatpush1.xpose.msra.mxu0 0.0
    %2734 = vmatprep.subr.mxu0 0.0
    %2735 = vmatpush1.xpose.msra.mxu0 0.0
    %2736 = vmatprep.subr.mxu0 0.0
    %2737 = vmatpush1.xpose.msra.mxu0 0.0
    %2738 = vmatprep.subr.mxu0 0.0
    %2739 = vmatpush1.xpose.msra.mxu0 0.0
    %2740 = vmatprep.subr.mxu0 0.0
    %2741 = vmatpush1.xpose.msra.mxu0 0.0
    %2742 = vmatprep.subr.mxu0 0.0
    %2743 = vmatpush1.xpose.msra.mxu0 0.0
    %2744 = vmatprep.subr.mxu0 0.0
    %2745 = vmatpush1.xpose.msra.mxu0 0.0
    %2746 = vmatprep.subr.mxu0 0.0
    %2747 = vmatpush1.xpose.msra.mxu0 0.0
    %2748 = vmatprep.subr.mxu0 0.0
    %2749 = vmatpush1.xpose.msra.mxu0 0.0
    %2750 = vmatprep.subr.mxu0 0.0
    %2751 = vmatpush1.xpose.msra.mxu0 0.0
    %2752 = vmatprep.subr.mxu0 0.0
    %2753 = vmatpush1.xpose.msra.mxu0 0.0
    %2754 = vmatprep.subr.mxu0 0.0
    %2755 = vmatpush1.xpose.msra.mxu0 0.0
    %2756 = vmatprep.subr.mxu0 0.0
    %2757 = vmatpush1.xpose.msra.mxu0 0.0
    %2758 = vmatprep.subr.mxu0 0.0
    %2759 = vmatpush1.xpose.msra.mxu0 0.0
    %2760 = vmatprep.subr.mxu0 0.0
    %2761 = vmatpush1.xpose.msra.mxu0 0.0
    %2762 = vmatprep.subr.mxu0 0.0
    %2763 = vmatpush1.xpose.msra.mxu0 0.0
    %2764 = vmatprep.subr.mxu0 0.0
    %2765 = vmatpush1.xpose.msra.mxu0 0.0
    %2766 = vmatprep.subr.mxu0 0.0
    %2767 = vmatpush1.xpose.msra.mxu0 0.0
    %2768 = vmatprep.subr.mxu0 0.0
    %2769 = vmatpush1.xpose.msra.mxu0 0.0
    %2770 = vmatprep.subr.mxu0 0.0
    %2771 = vmatpush1.xpose.msra.mxu0 0.0
    %2772 = vmatprep.subr.mxu0 0.0
    %2773 = vmatpush1.xpose.msra.mxu0 0.0
    %2774 = vmatprep.subr.mxu0 0.0
    %2775 = vmatpush1.xpose.msra.mxu0 0.0
    %2776 = vmatprep.subr.mxu0 0.0
    %2777 = vmatpush1.xpose.msra.mxu0 0.0
    %2778 = vmatprep.subr.mxu0 0.0
    %2779 = vmatpush1.xpose.msra.mxu0 0.0
    %2780 = vmatprep.subr.mxu0 0.0
    %2781 = vmatpush1.xpose.msra.mxu0 0.0
    %2782 = vmatprep.subr.mxu0 0.0
    %2783 = vmatpush1.xpose.msra.mxu0 0.0
    %2784 = vmatprep.subr.mxu0 0.0
    %2785 = vmatpush1.xpose.msra.mxu0 0.0
    %2786 = vmatprep.mubr.f32.mxu0 0.0
    %2787 = vmatmul.mubr.f32.gmra.mrb[0].mxu0 %v2714
    %v2788 = vpop.f32.mrb[0].mxu0
    %v2789 = vadd.f32 %v134, %v2788
    %v2790 = vpop.f32.mrb[0].mxu0
    %2791 = vmatprep.mubr.f32.mxu0 0.0
    %2792 = vmatmul.mubr.f32.gmra.mrb[0].mxu0 %v2716
    %v2793 = vpop.f32.mrb[0].mxu0
    %v2794 = vadd.f32 %v135, %v2793
    %v2795 = vpop.f32.mrb[0].mxu0
    %2796 = vdwg.mxu0
    %v2797 = vsel %vm488, %v2789, -inf
    %2798 = vmax.xlane.f32.xlu0 %v2797
    %v2799 = vpop.xlane.xlu0 %2798
    %v2800 = vsel %vm488, %v2794, -inf
    %2801 = vmax.xlane.f32.xlu0 %v2800
    %v2802 = vpop.xlane.xlu0 %2801
    %v2803 = vsub.f32 %v2789, %v2799
    %v2804 = vsub.f32 %v2794, %v2802
    %v2805 = vmul.f32 %v2803, 1.442695
    %v2806 = vpow.pop %v2805
    %v2807 = vmul.f32 %v2804, 1.442695
    %v2808 = vpow.pop %v2807
    %v2809 = vsel %vm488, %v2806, 0.0
    %2810 = vadd.xlane.f32.xlu0 %v2809
    %v2811 = vpop.xlane.xlu0 %2810
    %v2812 = vsel %vm488, %v2808, 0.0
    %2813 = vadd.xlane.f32.xlu0 %v2812
    %v2814 = vpop.xlane.xlu0 %2813
    %v2815 = vrcp.pop %v2811
    %v2816 = vrcp.pop %v2814
    %v2817 = vmul.f32 %v2806, %v2815
    %v2818 = vmul.f32 %v2808, %v2816
    %2821 = vrot.lane.b32.xlu0 %v2504, 96
    %v2822 = vpop.permute.xlu0 %2821
    %2823 = vrot.lane.b32.xlu0 %v2507, 96
    %v2824 = vpop.permute.xlu0 %2823
    %v2828 = vsel %vm488, %v2817, 0
    %v2831 = vsel %vm488, %v2818, 0
    %2833 = vmatprep.subr.mxu0 0.0
    %2834 = vmatpush1.msra.mxu0 %v2822
    %2835 = vmatprep.subr.mxu0 0.0
    %2836 = vmatpush1.msra.mxu0 %v2824
    %2837 = vmatprep.subr.mxu0 0.0
    %2838 = vmatpush1.msra.mxu0 0.0
    %2839 = vmatprep.subr.mxu0 0.0
    %2840 = vmatpush1.msra.mxu0 0.0
    %2841 = vmatprep.subr.mxu0 0.0
    %2842 = vmatpush1.msra.mxu0 0.0
    %2843 = vmatprep.subr.mxu0 0.0
    %2844 = vmatpush1.msra.mxu0 0.0
    %2845 = vmatprep.subr.mxu0 0.0
    %2846 = vmatpush1.msra.mxu0 0.0
    %2847 = vmatprep.subr.mxu0 0.0
    %2848 = vmatpush1.msra.mxu0 0.0
    %2849 = vmatprep.subr.mxu0 0.0
    %2850 = vmatpush1.msra.mxu0 0.0
    %2851 = vmatprep.subr.mxu0 0.0
    %2852 = vmatpush1.msra.mxu0 0.0
    %2853 = vmatprep.subr.mxu0 0.0
    %2854 = vmatpush1.msra.mxu0 0.0
    %2855 = vmatprep.subr.mxu0 0.0
    %2856 = vmatpush1.msra.mxu0 0.0
    %2857 = vmatprep.subr.mxu0 0.0
    %2858 = vmatpush1.msra.mxu0 0.0
    %2859 = vmatprep.subr.mxu0 0.0
    %2860 = vmatpush1.msra.mxu0 0.0
    %2861 = vmatprep.subr.mxu0 0.0
    %2862 = vmatpush1.msra.mxu0 0.0
    %2863 = vmatprep.subr.mxu0 0.0
    %2864 = vmatpush1.msra.mxu0 0.0
    %2865 = vmatprep.subr.mxu0 0.0
    %2866 = vmatpush1.msra.mxu0 0.0
    %2867 = vmatprep.subr.mxu0 0.0
    %2868 = vmatpush1.msra.mxu0 0.0
    %2869 = vmatprep.subr.mxu0 0.0
    %2870 = vmatpush1.msra.mxu0 0.0
    %2871 = vmatprep.subr.mxu0 0.0
    %2872 = vmatpush1.msra.mxu0 0.0
    %2873 = vmatprep.subr.mxu0 0.0
    %2874 = vmatpush1.msra.mxu0 0.0
    %2875 = vmatprep.subr.mxu0 0.0
    %2876 = vmatpush1.msra.mxu0 0.0
    %2877 = vmatprep.subr.mxu0 0.0
    %2878 = vmatpush1.msra.mxu0 0.0
    %2879 = vmatprep.subr.mxu0 0.0
    %2880 = vmatpush1.msra.mxu0 0.0
    %2881 = vmatprep.subr.mxu0 0.0
    %2882 = vmatpush1.msra.mxu0 0.0
    %2883 = vmatprep.subr.mxu0 0.0
    %2884 = vmatpush1.msra.mxu0 0.0
    %2885 = vmatprep.subr.mxu0 0.0
    %2886 = vmatpush1.msra.mxu0 0.0
    %2887 = vmatprep.subr.mxu0 0.0
    %2888 = vmatpush1.msra.mxu0 0.0
    %2889 = vmatprep.subr.mxu0 0.0
    %2890 = vmatpush1.msra.mxu0 0.0
    %2891 = vmatprep.subr.mxu0 0.0
    %2892 = vmatpush1.msra.mxu0 0.0
    %2893 = vmatprep.subr.mxu0 0.0
    %2894 = vmatpush1.msra.mxu0 0.0
    %2895 = vmatprep.subr.mxu0 0.0
    %2896 = vmatpush1.msra.mxu0 0.0
    %2897 = vmatprep.mubr.f32.mxu0 0.0
    %2898 = vmatmul.mubr.f32.gmra.mrb[0].mxu0 %v2828
    %v2899 = vpop.f32.mrb[0].mxu0
    %v2900 = vadd.f32 0.0, %v2899
    %v2901 = vpop.f32.mrb[0].mxu0
    %2902 = vmatprep.mubr.f32.mxu0 0.0
    %2903 = vmatmul.mubr.f32.gmra.mrb[0].mxu0 %v2831
    %v2904 = vpop.f32.mrb[0].mxu0
    %v2905 = vadd.f32 0.0, %v2904
    %v2906 = vpop.f32.mrb[0].mxu0
    %2907 = vdwg.mxu0
    %v2908 = vpack.c.bf16 %v2905, %v2900
    %s2909 = scalar_lea.vmem [#allocation2], 80
    %v2910 = vld [vmem:[%s2909] sm:$0xf]
    %v2911 = vld [vmem:[%s2909 + $0x4] sm:$0xf]
    %v2912 = vld [vmem:[%s2909 + $0x8] sm:$0xf]
    %v2913 = vld [vmem:[%s2909 + $0xc] sm:$0xf]
    %v2918 = vunpack.c.l.b16 %v2910
    %v2919 = vunpack.c.l.b16 %v2911
    %v2920 = vunpack.c.l.b16 %v2912
    %v2921 = vunpack.c.l.b16 %v2913
    %v2922 = vpack.c.b16 %v2919, %v2918
    %v2923 = vpack.c.b16 %v2921, %v2920
    %v2927 = vsel %vm400, %v2908, 0
    %2929 = vmatprep.subr.bf16.mxu0 0
    %2930 = vmatpush1.bf16.msra.mxu0 %v2922
    %2931 = vmatprep.subr.bf16.mxu0 0
    %2932 = vmatpush1.bf16.msra.mxu0 %v2923
    %2933 = vmatprep.subr.bf16.mxu0 0
    %2934 = vmatpush1.bf16.msra.mxu0 0
    %2935 = vmatprep.subr.bf16.mxu0 0
    %2936 = vmatpush1.bf16.msra.mxu0 0
    %2937 = vmatprep.subr.bf16.mxu0 0
    %2938 = vmatpush1.bf16.msra.mxu0 0
    %2939 = vmatprep.subr.bf16.mxu0 0
    %2940 = vmatpush1.bf16.msra.mxu0 0
    %2941 = vmatprep.subr.bf16.mxu0 0
    %2942 = vmatpush1.bf16.msra.mxu0 0
    %2943 = vmatprep.subr.bf16.mxu0 0
    %2944 = vmatpush1.bf16.msra.mxu0 0
    %2945 = vmatprep.subr.bf16.mxu0 0
    %2946 = vmatpush1.bf16.msra.mxu0 0
    %2947 = vmatprep.subr.bf16.mxu0 0
    %2948 = vmatpush1.bf16.msra.mxu0 0
    %2949 = vmatprep.subr.bf16.mxu0 0
    %2950 = vmatpush1.bf16.msra.mxu0 0
    %2951 = vmatprep.subr.bf16.mxu0 0
    %2952 = vmatpush1.bf16.msra.mxu0 0
    %2953 = vmatprep.subr.bf16.mxu0 0
    %2954 = vmatpush1.bf16.msra.mxu0 0
    %2955 = vmatprep.subr.bf16.mxu0 0
    %2956 = vmatpush1.bf16.msra.mxu0 0
    %2957 = vmatprep.subr.bf16.mxu0 0
    %2958 = vmatpush1.bf16.msra.mxu0 0
    %2959 = vmatprep.subr.bf16.mxu0 0
    %2960 = vmatpush1.bf16.msra.mxu0 0
    %2961 = vmatprep.mubr.bf16.mxu0 0
    %2962 = vmatmul.mubr.bf16.gmra.mrb[0].mxu0 %v2927
    %v2963 = vpop.f32.mrb[0].mxu0
    %v2964 = vadd.f32 0.0, %v2963
    %v2965 = vpop.f32.mrb[0].mxu0
    %v2966 = vpop.f32.mrb[0].mxu0
    %v2967 = vadd.f32 0.0, %v2966
    %v2968 = vpop.f32.mrb[0].mxu0
    %2969 = vdwg.mxu0
    %v2974 = vunpack.c.l.b16 %v2702
    %v2975 = vunpack.c.l.b16 %v2703
    %v2976 = vunpack.c.l.b16 %v2704
    %v2977 = vunpack.c.l.b16 %v2705
    %v2978 = vpack.c.b16 %v2975, %v2974
    %v2979 = vpack.c.b16 %v2977, %v2976
    %v2983 = vsel %vm400, %v2700, 0
    %2985 = vmatprep.subr.bf16.mxu0 0
    %2986 = vmatpush1.bf16.msra.mxu0 %v2978
    %2987 = vmatprep.subr.bf16.mxu0 0
    %2988 = vmatpush1.bf16.msra.mxu0 %v2979
    %2989 = vmatprep.subr.bf16.mxu0 0
    %2990 = vmatpush1.bf16.msra.mxu0 0
    %2991 = vmatprep.subr.bf16.mxu0 0
    %2992 = vmatpush1.bf16.msra.mxu0 0
    %2993 = vmatprep.subr.bf16.mxu0 0
    %2994 = vmatpush1.bf16.msra.mxu0 0
    %2995 = vmatprep.subr.bf16.mxu0 0
    %2996 = vmatpush1.bf16.msra.mxu0 0
    %2997 = vmatprep.subr.bf16.mxu0 0
    %2998 = vmatpush1.bf16.msra.mxu0 0
    %2999 = vmatprep.subr.bf16.mxu0 0
    %3000 = vmatpush1.bf16.msra.mxu0 0
    %3001 = vmatprep.subr.bf16.mxu0 0
    %3002 = vmatpush1.bf16.msra.mxu0 0
    %3003 = vmatprep.subr.bf16.mxu0 0
    %3004 = vmatpush1.bf16.msra.mxu0 0
    %3005 = vmatprep.subr.bf16.mxu0 0
    %3006 = vmatpush1.bf16.msra.mxu0 0
    %3007 = vmatprep.subr.bf16.mxu0 0
    %3008 = vmatpush1.bf16.msra.mxu0 0
    %3009 = vmatprep.subr.bf16.mxu0 0
    %3010 = vmatpush1.bf16.msra.mxu0 0
    %3011 = vmatprep.subr.bf16.mxu0 0
    %3012 = vmatpush1.bf16.msra.mxu0 0
    %3013 = vmatprep.subr.bf16.mxu0 0
    %3014 = vmatpush1.bf16.msra.mxu0 0
    %3015 = vmatprep.subr.bf16.mxu0 0
    %3016 = vmatpush1.bf16.msra.mxu0 0
    %3017 = vmatprep.mubr.bf16.mxu0 0
    %3018 = vmatmul.mubr.bf16.gmra.mrb[0].mxu0 %v2983
    %v3019 = vpop.f32.mrb[0].mxu0
    %v3020 = vadd.f32 %v2964, %v3019
    %v3021 = vpop.f32.mrb[0].mxu0
    %v3022 = vpop.f32.mrb[0].mxu0
    %v3023 = vadd.f32 %v2967, %v3022
    %v3024 = vpop.f32.mrb[0].mxu0
    %3025 = vdwg.mxu0
    %3026 = vrot.lane.b32.xlu0 %v2461, 64
    %v3027 = vpop.permute.xlu0 %3026
    %3028 = vrot.lane.b32.xlu0 %v2465, 64
    %v3029 = vpop.permute.xlu0 %3028
    %3030 = vrot.lane.b32.xlu0 %v2463, 64
    %v3031 = vpop.permute.xlu0 %3030
    %3032 = vrot.lane.b32.xlu0 %v2467, 64
    %v3033 = vpop.permute.xlu0 %3032
    %v3034 = vsel %vm400, %v3027, 0
    %v3036 = vsel %vm400, %v3029, 0
    %v3038 = vsel %vm400, %v3031, 0
    %v3040 = vsel %vm400, %v3033, 0
    %3042 = vmatprep.subr.mxu0 0.0
    %3043 = vmatpush1.xpose.msra.mxu0 %v3038
    %3044 = vmatprep.subr.mxu0 0.0
    %3045 = vmatpush1.xpose.msra.mxu0 %v3040
    %3046 = vmatprep.subr.mxu0 0.0
    %3047 = vmatpush1.xpose.msra.mxu0 0.0
    %3048 = vmatprep.subr.mxu0 0.0
    %3049 = vmatpush1.xpose.msra.mxu0 0.0
    %3050 = vmatprep.subr.mxu0 0.0
    %3051 = vmatpush1.xpose.msra.mxu0 0.0
    %3052 = vmatprep.subr.mxu0 0.0
    %3053 = vmatpush1.xpose.msra.mxu0 0.0
    %3054 = vmatprep.subr.mxu0 0.0
    %3055 = vmatpush1.xpose.msra.mxu0 0.0
    %3056 = vmatprep.subr.mxu0 0.0
    %3057 = vmatpush1.xpose.msra.mxu0 0.0
    %3058 = vmatprep.subr.mxu0 0.0
    %3059 = vmatpush1.xpose.msra.mxu0 0.0
    %3060 = vmatprep.subr.mxu0 0.0
    %3061 = vmatpush1.xpose.msra.mxu0 0.0
    %3062 = vmatprep.subr.mxu0 0.0
    %3063 = vmatpush1.xpose.msra.mxu0 0.0
    %3064 = vmatprep.subr.mxu0 0.0
    %3065 = vmatpush1.xpose.msra.mxu0 0.0
    %3066 = vmatprep.subr.mxu0 0.0
    %3067 = vmatpush1.xpose.msra.mxu0 0.0
    %3068 = vmatprep.subr.mxu0 0.0
    %3069 = vmatpush1.xpose.msra.mxu0 0.0
    %3070 = vmatprep.subr.mxu0 0.0
    %3071 = vmatpush1.xpose.msra.mxu0 0.0
    %3072 = vmatprep.subr.mxu0 0.0
    %3073 = vmatpush1.xpose.msra.mxu0 0.0
    %3074 = vmatprep.subr.mxu0 0.0
    %3075 = vmatpush1.xpose.msra.mxu0 0.0
    %3076 = vmatprep.subr.mxu0 0.0
    %3077 = vmatpush1.xpose.msra.mxu0 0.0
    %3078 = vmatprep.subr.mxu0 0.0
    %3079 = vmatpush1.xpose.msra.mxu0 0.0
    %3080 = vmatprep.subr.mxu0 0.0
    %3081 = vmatpush1.xpose.msra.mxu0 0.0
    %3082 = vmatprep.subr.mxu0 0.0
    %3083 = vmatpush1.xpose.msra.mxu0 0.0
    %3084 = vmatprep.subr.mxu0 0.0
    %3085 = vmatpush1.xpose.msra.mxu0 0.0
    %3086 = vmatprep.subr.mxu0 0.0
    %3087 = vmatpush1.xpose.msra.mxu0 0.0
    %3088 = vmatprep.subr.mxu0 0.0
    %3089 = vmatpush1.xpose.msra.mxu0 0.0
    %3090 = vmatprep.subr.mxu0 0.0
    %3091 = vmatpush1.xpose.msra.mxu0 0.0
    %3092 = vmatprep.subr.mxu0 0.0
    %3093 = vmatpush1.xpose.msra.mxu0 0.0
    %3094 = vmatprep.subr.mxu0 0.0
    %3095 = vmatpush1.xpose.msra.mxu0 0.0
    %3096 = vmatprep.subr.mxu0 0.0
    %3097 = vmatpush1.xpose.msra.mxu0 0.0
    %3098 = vmatprep.subr.mxu0 0.0
    %3099 = vmatpush1.xpose.msra.mxu0 0.0
    %3100 = vmatprep.subr.mxu0 0.0
    %3101 = vmatpush1.xpose.msra.mxu0 0.0
    %3102 = vmatprep.subr.mxu0 0.0
    %3103 = vmatpush1.xpose.msra.mxu0 0.0
    %3104 = vmatprep.subr.mxu0 0.0
    %3105 = vmatpush1.xpose.msra.mxu0 0.0
    %3106 = vmatprep.mubr.f32.mxu0 0.0
    %3107 = vmatmul.mubr.f32.gmra.mrb[0].mxu0 %v3034
    %v3108 = vpop.f32.mrb[0].mxu0
    %v3109 = vadd.f32 %v134, %v3108
    %v3110 = vpop.f32.mrb[0].mxu0
    %3111 = vmatprep.mubr.f32.mxu0 0.0
    %3112 = vmatmul.mubr.f32.gmra.mrb[0].mxu0 %v3036
    %v3113 = vpop.f32.mrb[0].mxu0
    %v3114 = vadd.f32 %v135, %v3113
    %v3115 = vpop.f32.mrb[0].mxu0
    %3116 = vdwg.mxu0
    %v3117 = vsel %vm488, %v3109, -inf
    %3118 = vmax.xlane.f32.xlu0 %v3117
    %v3119 = vpop.xlane.xlu0 %3118
    %v3120 = vsel %vm488, %v3114, -inf
    %3121 = vmax.xlane.f32.xlu0 %v3120
    %v3122 = vpop.xlane.xlu0 %3121
    %v3123 = vsub.f32 %v3109, %v3119
    %v3124 = vsub.f32 %v3114, %v3122
    %v3125 = vmul.f32 %v3123, 1.442695
    %v3126 = vpow.pop %v3125
    %v3127 = vmul.f32 %v3124, 1.442695
    %v3128 = vpow.pop %v3127
    %v3129 = vsel %vm488, %v3126, 0.0
    %3130 = vadd.xlane.f32.xlu0 %v3129
    %v3131 = vpop.xlane.xlu0 %3130
    %v3132 = vsel %vm488, %v3128, 0.0
    %3133 = vadd.xlane.f32.xlu0 %v3132
    %v3134 = vpop.xlane.xlu0 %3133
    %v3135 = vrcp.pop %v3131
    %v3136 = vrcp.pop %v3134
    %v3137 = vmul.f32 %v3126, %v3135
    %v3138 = vmul.f32 %v3128, %v3136
    %3139 = vrot.lane.b32.xlu0 %v2504, 64
    %v3140 = vpop.permute.xlu0 %3139
    %3141 = vrot.lane.b32.xlu0 %v2507, 64
    %v3142 = vpop.permute.xlu0 %3141
    %v3146 = vsel %vm488, %v3137, 0
    %v3149 = vsel %vm488, %v3138, 0
    %3151 = vmatprep.subr.mxu0 0.0
    %3152 = vmatpush1.msra.mxu0 %v3140
    %3153 = vmatprep.subr.mxu0 0.0
    %3154 = vmatpush1.msra.mxu0 %v3142
    %3155 = vmatprep.subr.mxu0 0.0
    %3156 = vmatpush1.msra.mxu0 0.0
    %3157 = vmatprep.subr.mxu0 0.0
    %3158 = vmatpush1.msra.mxu0 0.0
    %3159 = vmatprep.subr.mxu0 0.0
    %3160 = vmatpush1.msra.mxu0 0.0
    %3161 = vmatprep.subr.mxu0 0.0
    %3162 = vmatpush1.msra.mxu0 0.0
    %3163 = vmatprep.subr.mxu0 0.0
    %3164 = vmatpush1.msra.mxu0 0.0
    %3165 = vmatprep.subr.mxu0 0.0
    %3166 = vmatpush1.msra.mxu0 0.0
    %3167 = vmatprep.subr.mxu0 0.0
    %3168 = vmatpush1.msra.mxu0 0.0
    %3169 = vmatprep.subr.mxu0 0.0
    %3170 = vmatpush1.msra.mxu0 0.0
    %3171 = vmatprep.subr.mxu0 0.0
    %3172 = vmatpush1.msra.mxu0 0.0
    %3173 = vmatprep.subr.mxu0 0.0
    %3174 = vmatpush1.msra.mxu0 0.0
    %3175 = vmatprep.subr.mxu0 0.0
    %3176 = vmatpush1.msra.mxu0 0.0
    %3177 = vmatprep.subr.mxu0 0.0
    %3178 = vmatpush1.msra.mxu0 0.0
    %3179 = vmatprep.subr.mxu0 0.0
    %3180 = vmatpush1.msra.mxu0 0.0
    %3181 = vmatprep.subr.mxu0 0.0
    %3182 = vmatpush1.msra.mxu0 0.0
    %3183 = vmatprep.subr.mxu0 0.0
    %3184 = vmatpush1.msra.mxu0 0.0
    %3185 = vmatprep.subr.mxu0 0.0
    %3186 = vmatpush1.msra.mxu0 0.0
    %3187 = vmatprep.subr.mxu0 0.0
    %3188 = vmatpush1.msra.mxu0 0.0
    %3189 = vmatprep.subr.mxu0 0.0
    %3190 = vmatpush1.msra.mxu0 0.0
    %3191 = vmatprep.subr.mxu0 0.0
    %3192 = vmatpush1.msra.mxu0 0.0
    %3193 = vmatprep.subr.mxu0 0.0
    %3194 = vmatpush1.msra.mxu0 0.0
    %3195 = vmatprep.subr.mxu0 0.0
    %3196 = vmatpush1.msra.mxu0 0.0
    %3197 = vmatprep.subr.mxu0 0.0
    %3198 = vmatpush1.msra.mxu0 0.0
    %3199 = vmatprep.subr.mxu0 0.0
    %3200 = vmatpush1.msra.mxu0 0.0
    %3201 = vmatprep.subr.mxu0 0.0
    %3202 = vmatpush1.msra.mxu0 0.0
    %3203 = vmatprep.subr.mxu0 0.0
    %3204 = vmatpush1.msra.mxu0 0.0
    %3205 = vmatprep.subr.mxu0 0.0
    %3206 = vmatpush1.msra.mxu0 0.0
    %3207 = vmatprep.subr.mxu0 0.0
    %3208 = vmatpush1.msra.mxu0 0.0
    %3209 = vmatprep.subr.mxu0 0.0
    %3210 = vmatpush1.msra.mxu0 0.0
    %3211 = vmatprep.subr.mxu0 0.0
    %3212 = vmatpush1.msra.mxu0 0.0
    %3213 = vmatprep.subr.mxu0 0.0
    %3214 = vmatpush1.msra.mxu0 0.0
    %3215 = vmatprep.mubr.f32.mxu0 0.0
    %3216 = vmatmul.mubr.f32.gmra.mrb[0].mxu0 %v3146
    %v3217 = vpop.f32.mrb[0].mxu0
    %v3218 = vadd.f32 0.0, %v3217
    %v3219 = vpop.f32.mrb[0].mxu0
    %3220 = vmatprep.mubr.f32.mxu0 0.0
    %3221 = vmatmul.mubr.f32.gmra.mrb[0].mxu0 %v3149
    %v3222 = vpop.f32.mrb[0].mxu0
    %v3223 = vadd.f32 0.0, %v3222
    %v3224 = vpop.f32.mrb[0].mxu0
    %3225 = vdwg.mxu0
    %v3226 = vpack.c.bf16 %v3223, %v3218
    %s3227 = scalar_lea.vmem [#allocation2], 96
    %v3228 = vld [vmem:[%s3227] sm:$0xf]
    %v3229 = vld [vmem:[%s3227 + $0x4] sm:$0xf]
    %v3230 = vld [vmem:[%s3227 + $0x8] sm:$0xf]
    %v3231 = vld [vmem:[%s3227 + $0xc] sm:$0xf]
    %v3236 = vunpack.c.l.b16 %v3228
    %v3237 = vunpack.c.l.b16 %v3229
    %v3238 = vunpack.c.l.b16 %v3230
    %v3239 = vunpack.c.l.b16 %v3231
    %v3240 = vpack.c.b16 %v3237, %v3236
    %v3241 = vpack.c.b16 %v3239, %v3238
    %v3245 = vsel %vm400, %v3226, 0
    %3247 = vmatprep.subr.bf16.mxu0 0
    %3248 = vmatpush1.bf16.msra.mxu0 %v3240
    %3249 = vmatprep.subr.bf16.mxu0 0
    %3250 = vmatpush1.bf16.msra.mxu0 %v3241
    %3251 = vmatprep.subr.bf16.mxu0 0
    %3252 = vmatpush1.bf16.msra.mxu0 0
    %3253 = vmatprep.subr.bf16.mxu0 0
    %3254 = vmatpush1.bf16.msra.mxu0 0
    %3255 = vmatprep.subr.bf16.mxu0 0
    %3256 = vmatpush1.bf16.msra.mxu0 0
    %3257 = vmatprep.subr.bf16.mxu0 0
    %3258 = vmatpush1.bf16.msra.mxu0 0
    %3259 = vmatprep.subr.bf16.mxu0 0
    %3260 = vmatpush1.bf16.msra.mxu0 0
    %3261 = vmatprep.subr.bf16.mxu0 0
    %3262 = vmatpush1.bf16.msra.mxu0 0
    %3263 = vmatprep.subr.bf16.mxu0 0
    %3264 = vmatpush1.bf16.msra.mxu0 0
    %3265 = vmatprep.subr.bf16.mxu0 0
    %3266 = vmatpush1.bf16.msra.mxu0 0
    %3267 = vmatprep.subr.bf16.mxu0 0
    %3268 = vmatpush1.bf16.msra.mxu0 0
    %3269 = vmatprep.subr.bf16.mxu0 0
    %3270 = vmatpush1.bf16.msra.mxu0 0
    %3271 = vmatprep.subr.bf16.mxu0 0
    %3272 = vmatpush1.bf16.msra.mxu0 0
    %3273 = vmatprep.subr.bf16.mxu0 0
    %3274 = vmatpush1.bf16.msra.mxu0 0
    %3275 = vmatprep.subr.bf16.mxu0 0
    %3276 = vmatpush1.bf16.msra.mxu0 0
    %3277 = vmatprep.subr.bf16.mxu0 0
    %3278 = vmatpush1.bf16.msra.mxu0 0
    %3279 = vmatprep.mubr.bf16.mxu0 0
    %3280 = vmatmul.mubr.bf16.gmra.mrb[0].mxu0 %v3245
    %v3281 = vpop.f32.mrb[0].mxu0
    %v3282 = vadd.f32 0.0, %v3281
    %v3283 = vpop.f32.mrb[0].mxu0
    %v3284 = vpop.f32.mrb[0].mxu0
    %v3285 = vadd.f32 0.0, %v3284
    %v3286 = vpop.f32.mrb[0].mxu0
    %3287 = vdwg.mxu0
    %v3288 = vadd.f32 %v3020, %v3282
    %v3289 = vadd.f32 %v3023, %v3285
    %3290 = vrot.lane.b32.xlu0 %v2461, 32
    %v3291 = vpop.permute.xlu0 %3290
    %3292 = vrot.lane.b32.xlu0 %v2465, 32
    %v3293 = vpop.permute.xlu0 %3292
    %3294 = vrot.lane.b32.xlu0 %v2463, 32
    %v3295 = vpop.permute.xlu0 %3294
    %3296 = vrot.lane.b32.xlu0 %v2467, 32
    %v3297 = vpop.permute.xlu0 %3296
    %v3298 = vsel %vm400, %v3291, 0
    %v3300 = vsel %vm400, %v3293, 0
    %v3302 = vsel %vm400, %v3295, 0
    %v3304 = vsel %vm400, %v3297, 0
    %3306 = vmatprep.subr.mxu0 0.0
    %3307 = vmatpush1.xpose.msra.mxu0 %v3302
    %3308 = vmatprep.subr.mxu0 0.0
    %3309 = vmatpush1.xpose.msra.mxu0 %v3304
    %3310 = vmatprep.subr.mxu0 0.0
    %3311 = vmatpush1.xpose.msra.mxu0 0.0
    %3312 = vmatprep.subr.mxu0 0.0
    %3313 = vmatpush1.xpose.msra.mxu0 0.0
    %3314 = vmatprep.subr.mxu0 0.0
    %3315 = vmatpush1.xpose.msra.mxu0 0.0
    %3316 = vmatprep.subr.mxu0 0.0
    %3317 = vmatpush1.xpose.msra.mxu0 0.0
    %3318 = vmatprep.subr.mxu0 0.0
    %3319 = vmatpush1.xpose.msra.mxu0 0.0
    %3320 = vmatprep.subr.mxu0 0.0
    %3321 = vmatpush1.xpose.msra.mxu0 0.0
    %3322 = vmatprep.subr.mxu0 0.0
    %3323 = vmatpush1.xpose.msra.mxu0 0.0
    %3324 = vmatprep.subr.mxu0 0.0
    %3325 = vmatpush1.xpose.msra.mxu0 0.0
    %3326 = vmatprep.subr.mxu0 0.0
    %3327 = vmatpush1.xpose.msra.mxu0 0.0
    %3328 = vmatprep.subr.mxu0 0.0
    %3329 = vmatpush1.xpose.msra.mxu0 0.0
    %3330 = vmatprep.subr.mxu0 0.0
    %3331 = vmatpush1.xpose.msra.mxu0 0.0
    %3332 = vmatprep.subr.mxu0 0.0
    %3333 = vmatpush1.xpose.msra.mxu0 0.0
    %3334 = vmatprep.subr.mxu0 0.0
    %3335 = vmatpush1.xpose.msra.mxu0 0.0
    %3336 = vmatprep.subr.mxu0 0.0
    %3337 = vmatpush1.xpose.msra.mxu0 0.0
    %3338 = vmatprep.subr.mxu0 0.0
    %3339 = vmatpush1.xpose.msra.mxu0 0.0
    %3340 = vmatprep.subr.mxu0 0.0
    %3341 = vmatpush1.xpose.msra.mxu0 0.0
    %3342 = vmatprep.subr.mxu0 0.0
    %3343 = vmatpush1.xpose.msra.mxu0 0.0
    %3344 = vmatprep.subr.mxu0 0.0
    %3345 = vmatpush1.xpose.msra.mxu0 0.0
    %3346 = vmatprep.subr.mxu0 0.0
    %3347 = vmatpush1.xpose.msra.mxu0 0.0
    %3348 = vmatprep.subr.mxu0 0.0
    %3349 = vmatpush1.xpose.msra.mxu0 0.0
    %3350 = vmatprep.subr.mxu0 0.0
    %3351 = vmatpush1.xpose.msra.mxu0 0.0
    %3352 = vmatprep.subr.mxu0 0.0
    %3353 = vmatpush1.xpose.msra.mxu0 0.0
    %3354 = vmatprep.subr.mxu0 0.0
    %3355 = vmatpush1.xpose.msra.mxu0 0.0
    %3356 = vmatprep.subr.mxu0 0.0
    %3357 = vmatpush1.xpose.msra.mxu0 0.0
    %3358 = vmatprep.subr.mxu0 0.0
    %3359 = vmatpush1.xpose.msra.mxu0 0.0
    %3360 = vmatprep.subr.mxu0 0.0
    %3361 = vmatpush1.xpose.msra.mxu0 0.0
    %3362 = vmatprep.subr.mxu0 0.0
    %3363 = vmatpush1.xpose.msra.mxu0 0.0
    %3364 = vmatprep.subr.mxu0 0.0
    %3365 = vmatpush1.xpose.msra.mxu0 0.0
    %3366 = vmatprep.subr.mxu0 0.0
    %3367 = vmatpush1.xpose.msra.mxu0 0.0
    %3368 = vmatprep.subr.mxu0 0.0
    %3369 = vmatpush1.xpose.msra.mxu0 0.0
    %3370 = vmatprep.mubr.f32.mxu0 0.0
    %3371 = vmatmul.mubr.f32.gmra.mrb[0].mxu0 %v3298
    %v3372 = vpop.f32.mrb[0].mxu0
    %v3373 = vadd.f32 %v134, %v3372
    %v3374 = vpop.f32.mrb[0].mxu0
    %3375 = vmatprep.mubr.f32.mxu0 0.0
    %3376 = vmatmul.mubr.f32.gmra.mrb[0].mxu0 %v3300
    %v3377 = vpop.f32.mrb[0].mxu0
    %v3378 = vadd.f32 %v135, %v3377
    %v3379 = vpop.f32.mrb[0].mxu0
    %3380 = vdwg.mxu0
    %v3381 = vsel %vm488, %v3373, -inf
    %3382 = vmax.xlane.f32.xlu0 %v3381
    %v3383 = vpop.xlane.xlu0 %3382
    %v3384 = vsel %vm488, %v3378, -inf
    %3385 = vmax.xlane.f32.xlu0 %v3384
    %v3386 = vpop.xlane.xlu0 %3385
    %v3387 = vsub.f32 %v3373, %v3383
    %v3388 = vsub.f32 %v3378, %v3386
    %v3389 = vmul.f32 %v3387, 1.442695
    %v3390 = vpow.pop %v3389
    %v3391 = vmul.f32 %v3388, 1.442695
    %v3392 = vpow.pop %v3391
    %v3393 = vsel %vm488, %v3390, 0.0
    %3394 = vadd.xlane.f32.xlu0 %v3393
    %v3395 = vpop.xlane.xlu0 %3394
    %v3396 = vsel %vm488, %v3392, 0.0
    %3397 = vadd.xlane.f32.xlu0 %v3396
    %v3398 = vpop.xlane.xlu0 %3397
    %v3399 = vrcp.pop %v3395
    %v3400 = vrcp.pop %v3398
    %v3401 = vmul.f32 %v3390, %v3399
    %v3402 = vmul.f32 %v3392, %v3400
    %3403 = vrot.lane.b32.xlu0 %v2504, 32
    %v3404 = vpop.permute.xlu0 %3403
    %3405 = vrot.lane.b32.xlu0 %v2507, 32
    %v3406 = vpop.permute.xlu0 %3405
    %v3410 = vsel %vm488, %v3401, 0
    %v3413 = vsel %vm488, %v3402, 0
    %3415 = vmatprep.subr.mxu0 0.0
    %3416 = vmatpush1.msra.mxu0 %v3404
    %3417 = vmatprep.subr.mxu0 0.0
    %3418 = vmatpush1.msra.mxu0 %v3406
    %3419 = vmatprep.subr.mxu0 0.0
    %3420 = vmatpush1.msra.mxu0 0.0
    %3421 = vmatprep.subr.mxu0 0.0
    %3422 = vmatpush1.msra.mxu0 0.0
    %3423 = vmatprep.subr.mxu0 0.0
    %3424 = vmatpush1.msra.mxu0 0.0
    %3425 = vmatprep.subr.mxu0 0.0
    %3426 = vmatpush1.msra.mxu0 0.0
    %3427 = vmatprep.subr.mxu0 0.0
    %3428 = vmatpush1.msra.mxu0 0.0
    %3429 = vmatprep.subr.mxu0 0.0
    %3430 = vmatpush1.msra.mxu0 0.0
    %3431 = vmatprep.subr.mxu0 0.0
    %3432 = vmatpush1.msra.mxu0 0.0
    %3433 = vmatprep.subr.mxu0 0.0
    %3434 = vmatpush1.msra.mxu0 0.0
    %3435 = vmatprep.subr.mxu0 0.0
    %3436 = vmatpush1.msra.mxu0 0.0
    %3437 = vmatprep.subr.mxu0 0.0
    %3438 = vmatpush1.msra.mxu0 0.0
    %3439 = vmatprep.subr.mxu0 0.0
    %3440 = vmatpush1.msra.mxu0 0.0
    %3441 = vmatprep.subr.mxu0 0.0
    %3442 = vmatpush1.msra.mxu0 0.0
    %3443 = vmatprep.subr.mxu0 0.0
    %3444 = vmatpush1.msra.mxu0 0.0
    %3445 = vmatprep.subr.mxu0 0.0
    %3446 = vmatpush1.msra.mxu0 0.0
    %3447 = vmatprep.subr.mxu0 0.0
    %3448 = vmatpush1.msra.mxu0 0.0
    %3449 = vmatprep.subr.mxu0 0.0
    %3450 = vmatpush1.msra.mxu0 0.0
    %3451 = vmatprep.subr.mxu0 0.0
    %3452 = vmatpush1.msra.mxu0 0.0
    %3453 = vmatprep.subr.mxu0 0.0
    %3454 = vmatpush1.msra.mxu0 0.0
    %3455 = vmatprep.subr.mxu0 0.0
    %3456 = vmatpush1.msra.mxu0 0.0
    %3457 = vmatprep.subr.mxu0 0.0
    %3458 = vmatpush1.msra.mxu0 0.0
    %3459 = vmatprep.subr.mxu0 0.0
    %3460 = vmatpush1.msra.mxu0 0.0
    %3461 = vmatprep.subr.mxu0 0.0
    %3462 = vmatpush1.msra.mxu0 0.0
    %3463 = vmatprep.subr.mxu0 0.0
    %3464 = vmatpush1.msra.mxu0 0.0
    %3465 = vmatprep.subr.mxu0 0.0
    %3466 = vmatpush1.msra.mxu0 0.0
    %3467 = vmatprep.subr.mxu0 0.0
    %3468 = vmatpush1.msra.mxu0 0.0
    %3469 = vmatprep.subr.mxu0 0.0
    %3470 = vmatpush1.msra.mxu0 0.0
    %3471 = vmatprep.subr.mxu0 0.0
    %3472 = vmatpush1.msra.mxu0 0.0
    %3473 = vmatprep.subr.mxu0 0.0
    %3474 = vmatpush1.msra.mxu0 0.0
    %3475 = vmatprep.subr.mxu0 0.0
    %3476 = vmatpush1.msra.mxu0 0.0
    %3477 = vmatprep.subr.mxu0 0.0
    %3478 = vmatpush1.msra.mxu0 0.0
    %3479 = vmatprep.mubr.f32.mxu0 0.0
    %3480 = vmatmul.mubr.f32.gmra.mrb[0].mxu0 %v3410
    %v3481 = vpop.f32.mrb[0].mxu0
    %v3482 = vadd.f32 0.0, %v3481
    %v3483 = vpop.f32.mrb[0].mxu0
    %3484 = vmatprep.mubr.f32.mxu0 0.0
    %3485 = vmatmul.mubr.f32.gmra.mrb[0].mxu0 %v3413
    %v3486 = vpop.f32.mrb[0].mxu0
    %v3487 = vadd.f32 0.0, %v3486
    %v3488 = vpop.f32.mrb[0].mxu0
    %3489 = vdwg.mxu0
    %v3490 = vpack.c.bf16 %v3487, %v3482
    %s3491 = scalar_lea.vmem [#allocation2], 112
    %v3492 = vld [vmem:[%s3491] sm:$0xf]
    %v3493 = vld [vmem:[%s3491 + $0x4] sm:$0xf]
    %v3494 = vld [vmem:[%s3491 + $0x8] sm:$0xf]
    %v3495 = vld [vmem:[%s3491 + $0xc] sm:$0xf]
    %v3500 = vunpack.c.l.b16 %v3492
    %v3501 = vunpack.c.l.b16 %v3493
    %v3502 = vunpack.c.l.b16 %v3494
    %v3503 = vunpack.c.l.b16 %v3495
    %v3504 = vpack.c.b16 %v3501, %v3500
    %v3505 = vpack.c.b16 %v3503, %v3502
    %v3509 = vsel %vm400, %v3490, 0
    %3511 = vmatprep.subr.bf16.mxu0 0
    %3512 = vmatpush1.bf16.msra.mxu0 %v3504
    %3513 = vmatprep.subr.bf16.mxu0 0
    %3514 = vmatpush1.bf16.msra.mxu0 %v3505
    %3515 = vmatprep.subr.bf16.mxu0 0
    %3516 = vmatpush1.bf16.msra.mxu0 0
    %3517 = vmatprep.subr.bf16.mxu0 0
    %3518 = vmatpush1.bf16.msra.mxu0 0
    %3519 = vmatprep.subr.bf16.mxu0 0
    %3520 = vmatpush1.bf16.msra.mxu0 0
    %3521 = vmatprep.subr.bf16.mxu0 0
    %3522 = vmatpush1.bf16.msra.mxu0 0
    %3523 = vmatprep.subr.bf16.mxu0 0
    %3524 = vmatpush1.bf16.msra.mxu0 0
    %3525 = vmatprep.subr.bf16.mxu0 0
    %3526 = vmatpush1.bf16.msra.mxu0 0
    %3527 = vmatprep.subr.bf16.mxu0 0
    %3528 = vmatpush1.bf16.msra.mxu0 0
    %3529 = vmatprep.subr.bf16.mxu0 0
    %3530 = vmatpush1.bf16.msra.mxu0 0
    %3531 = vmatprep.subr.bf16.mxu0 0
    %3532 = vmatpush1.bf16.msra.mxu0 0
    %3533 = vmatprep.subr.bf16.mxu0 0
    %3534 = vmatpush1.bf16.msra.mxu0 0
    %3535 = vmatprep.subr.bf16.mxu0 0
    %3536 = vmatpush1.bf16.msra.mxu0 0
    %3537 = vmatprep.subr.bf16.mxu0 0
    %3538 = vmatpush1.bf16.msra.mxu0 0
    %3539 = vmatprep.subr.bf16.mxu0 0
    %3540 = vmatpush1.bf16.msra.mxu0 0
    %3541 = vmatprep.subr.bf16.mxu0 0
    %3542 = vmatpush1.bf16.msra.mxu0 0
    %3543 = vmatprep.mubr.bf16.mxu0 0
    %3544 = vmatmul.mubr.bf16.gmra.mrb[0].mxu0 %v3509
    %v3545 = vpop.f32.mrb[0].mxu0
    %v3546 = vadd.f32 0.0, %v3545
    %v3547 = vpop.f32.mrb[0].mxu0
    %v3548 = vpop.f32.mrb[0].mxu0
    %v3549 = vadd.f32 0.0, %v3548
    %v3550 = vpop.f32.mrb[0].mxu0
    %3551 = vdwg.mxu0
    %v3552 = vadd.f32 %v3288, %v3546
    %v3553 = vadd.f32 %v3289, %v3549
    %v3554 = vlaneseq
    %v3555 = vshrl.u32 %v3554, 7
    %v3556 = vsub.s32 0, %v3555
    %v3557 = vrot.slane %v2243, %v3556
    %v3558 = vadd.f32 %v3552, %v3557
    %v3559 = vadd.f32 %v3553, %v3557
    %v3560 = vadd.f32 %v2240, %v3558
    %v3561 = vadd.f32 %v2241, %v3559
    %3562 = vadd.xlane.f32.xlu0 %v3560
    %v3563 = vpop.xlane.xlu0 %3562
    %3564 = vadd.xlane.f32.xlu0 %v3561
    %v3565 = vpop.xlane.xlu0 %3564
    %v3566 = vmul.f32 %v3563, %v1457
    %v3567 = vmul.f32 %v3565, %v1457
    %v3568 = vsub.f32 %v3560, %v3566
    %v3569 = vsub.f32 %v3561, %v3567
    %v3570 = vmul.f32 %v3568, %v3568
    %v3571 = vmul.f32 %v3569, %v3569
    %3572 = vadd.xlane.f32.xlu0 %v3570
    %v3573 = vpop.xlane.xlu0 %3572
    %3574 = vadd.xlane.f32.xlu0 %v3571
    %v3575 = vpop.xlane.xlu0 %3574
    %v3576 = vmul.f32 %v3573, %v1457
    %v3577 = vmul.f32 %v3575, %v1457
    %v3578 = vadd.f32 %v3576, 1e-05
    %v3579 = vadd.f32 %v3577, 1e-05
    %v3580 = vrsqrt.pop %v3578
    %v3581 = vrsqrt.pop %v3579
    %v3582 = vmul.f32 %v3568, %v3580
    %v3583 = vmul.f32 %v3569, %v3581
    %v3584 = vlaneseq
    %v3585 = vshrl.u32 %v3584, 7
    %v3586 = vsub.s32 1, %v3585
    %v3587 = vrot.slane %v2243, %v3586
    %v3588 = vmul.f32 %v3582, %v3587
    %v3589 = vmul.f32 %v3583, %v3587
    %v3590 = vlaneseq
    %v3591 = vshrl.u32 %v3590, 7
    %v3592 = vsub.s32 2, %v3591
    %v3593 = vrot.slane %v2243, %v3592
    %v3594 = vadd.f32 %v3588, %v3593
    %v3595 = vadd.f32 %v3589, %v3593
    %v3596 = vpack.c.bf16 %v3595, %v3594
    %s3597 = scalar_lea.vmem [#allocation4], 256
    %v3598 = vld [vmem:[%s3597] sm:$0xff]
    %v3599 = vld [vmem:[%s3597 + $0x8] sm:$0xff]
    %v3600 = vld [vmem:[%s3597 + $0x10] sm:$0xff]
    %v3601 = vld [vmem:[%s3597 + $0x18] sm:$0xff]
    %v3602 = vld [vmem:[%s3597 + $0x20] sm:$0xff]
    %v3603 = vld [vmem:[%s3597 + $0x28] sm:$0xff]
    %v3604 = vld [vmem:[%s3597 + $0x30] sm:$0xff]
    %v3605 = vld [vmem:[%s3597 + $0x38] sm:$0xff]
    %v3606 = vld [vmem:[%s3597 + $0x40] sm:$0xff]
    %v3607 = vld [vmem:[%s3597 + $0x48] sm:$0xff]
    %v3608 = vld [vmem:[%s3597 + $0x50] sm:$0xff]
    %v3609 = vld [vmem:[%s3597 + $0x58] sm:$0xff]
    %v3610 = vld [vmem:[%s3597 + $0x60] sm:$0xff]
    %v3611 = vld [vmem:[%s3597 + $0x68] sm:$0xff]
    %v3612 = vld [vmem:[%s3597 + $0x70] sm:$0xff]
    %v3613 = vld [vmem:[%s3597 + $0x78] sm:$0xff]
    %v3614 = vld [vmem:[%s3597 + $0x80] sm:$0xff]
    %v3615 = vld [vmem:[%s3597 + $0x88] sm:$0xff]
    %v3616 = vld [vmem:[%s3597 + $0x90] sm:$0xff]
    %v3617 = vld [vmem:[%s3597 + $0x98] sm:$0xff]
    %v3618 = vld [vmem:[%s3597 + $0xa0] sm:$0xff]
    %v3619 = vld [vmem:[%s3597 + $0xa8] sm:$0xff]
    %v3620 = vld [vmem:[%s3597 + $0xb0] sm:$0xff]
    %v3621 = vld [vmem:[%s3597 + $0xb8] sm:$0xff]
    %v3622 = vld [vmem:[%s3597 + $0xc0] sm:$0xff]
    %v3623 = vld [vmem:[%s3597 + $0xc8] sm:$0xff]
    %v3624 = vld [vmem:[%s3597 + $0xd0] sm:$0xff]
    %v3625 = vld [vmem:[%s3597 + $0xd8] sm:$0xff]
    %v3626 = vld [vmem:[%s3597 + $0xe0] sm:$0xff]
    %v3627 = vld [vmem:[%s3597 + $0xe8] sm:$0xff]
    %v3628 = vld [vmem:[%s3597 + $0xf0] sm:$0xff]
    %v3629 = vld [vmem:[%s3597 + $0xf8] sm:$0xff]
    %v3631 = vlaneseq
    %v3632 = vshrl.u32 %v3631, 7
    %v3633 = vsub.s32 0, %v3632
    %v3634 = vrot.slane %v2245, %v3633
    %v3635 = vlaneseq
    %v3636 = vshrl.u32 %v3635, 7
    %v3637 = vsub.s32 1, %v3636
    %v3638 = vrot.slane %v2245, %v3637
    %v3639 = vlaneseq
    %v3640 = vshrl.u32 %v3639, 7
    %v3641 = vsub.s32 2, %v3640
    %v3642 = vrot.slane %v2245, %v3641
    %v3643 = vlaneseq
    %v3644 = vshrl.u32 %v3643, 7
    %v3645 = vsub.s32 3, %v3644
    %v3646 = vrot.slane %v2245, %v3645
    %v3683 = vunpack.c.l.b16 %v3598
    %v3684 = vunpack.c.h.b16 %v3598
    %v3685 = vunpack.c.l.b16 %v3599
    %v3686 = vunpack.c.h.b16 %v3599
    %v3687 = vunpack.c.l.b16 %v3600
    %v3688 = vunpack.c.h.b16 %v3600
    %v3689 = vunpack.c.l.b16 %v3601
    %v3690 = vunpack.c.h.b16 %v3601
    %v3691 = vunpack.c.l.b16 %v3602
    %v3692 = vunpack.c.h.b16 %v3602
    %v3693 = vunpack.c.l.b16 %v3603
    %v3694 = vunpack.c.h.b16 %v3603
    %v3695 = vunpack.c.l.b16 %v3604
    %v3696 = vunpack.c.h.b16 %v3604
    %v3697 = vunpack.c.l.b16 %v3605
    %v3698 = vunpack.c.h.b16 %v3605
    %v3699 = vunpack.c.l.b16 %v3606
    %v3700 = vunpack.c.h.b16 %v3606
    %v3701 = vunpack.c.l.b16 %v3607
    %v3702 = vunpack.c.h.b16 %v3607
    %v3703 = vunpack.c.l.b16 %v3608
    %v3704 = vunpack.c.h.b16 %v3608
    %v3705 = vunpack.c.l.b16 %v3609
    %v3706 = vunpack.c.h.b16 %v3609
    %v3707 = vunpack.c.l.b16 %v3610
    %v3708 = vunpack.c.h.b16 %v3610
    %v3709 = vunpack.c.l.b16 %v3611
    %v3710 = vunpack.c.h.b16 %v3611
    %v3711 = vunpack.c.l.b16 %v3612
    %v3712 = vunpack.c.h.b16 %v3612
    %v3713 = vunpack.c.l.b16 %v3613
    %v3714 = vunpack.c.h.b16 %v3613
    %v3715 = vunpack.c.l.b16 %v3614
    %v3716 = vunpack.c.h.b16 %v3614
    %v3717 = vunpack.c.l.b16 %v3615
    %v3718 = vunpack.c.h.b16 %v3615
    %v3719 = vunpack.c.l.b16 %v3616
    %v3720 = vunpack.c.h.b16 %v3616
    %v3721 = vunpack.c.l.b16 %v3617
    %v3722 = vunpack.c.h.b16 %v3617
    %v3723 = vunpack.c.l.b16 %v3618
    %v3724 = vunpack.c.h.b16 %v3618
    %v3725 = vunpack.c.l.b16 %v3619
    %v3726 = vunpack.c.h.b16 %v3619
    %v3727 = vunpack.c.l.b16 %v3620
    %v3728 = vunpack.c.h.b16 %v3620
    %v3729 = vunpack.c.l.b16 %v3621
    %v3730 = vunpack.c.h.b16 %v3621
    %v3731 = vunpack.c.l.b16 %v3622
    %v3732 = vunpack.c.h.b16 %v3622
    %v3733 = vunpack.c.l.b16 %v3623
    %v3734 = vunpack.c.h.b16 %v3623
    %v3735 = vunpack.c.l.b16 %v3624
    %v3736 = vunpack.c.h.b16 %v3624
    %v3737 = vunpack.c.l.b16 %v3625
    %v3738 = vunpack.c.h.b16 %v3625
    %v3739 = vunpack.c.l.b16 %v3626
    %v3740 = vunpack.c.h.b16 %v3626
    %v3741 = vunpack.c.l.b16 %v3627
    %v3742 = vunpack.c.h.b16 %v3627
    %v3743 = vunpack.c.l.b16 %v3628
    %v3744 = vunpack.c.h.b16 %v3628
    %v3745 = vunpack.c.l.b16 %v3629
    %v3746 = vunpack.c.h.b16 %v3629
    %v3747 = vpack.c.b16 %v3687, %v3683
    %v3748 = vpack.c.b16 %v3688, %v3684
    %v3749 = vpack.c.b16 %v3689, %v3685
    %v3750 = vpack.c.b16 %v3690, %v3686
    %v3751 = vpack.c.b16 %v3695, %v3691
    %v3752 = vpack.c.b16 %v3696, %v3692
    %v3753 = vpack.c.b16 %v3697, %v3693
    %v3754 = vpack.c.b16 %v3698, %v3694
    %v3755 = vpack.c.b16 %v3703, %v3699
    %v3756 = vpack.c.b16 %v3704, %v3700
    %v3757 = vpack.c.b16 %v3705, %v3701
    %v3758 = vpack.c.b16 %v3706, %v3702
    %v3759 = vpack.c.b16 %v3711, %v3707
    %v3760 = vpack.c.b16 %v3712, %v3708
    %v3761 = vpack.c.b16 %v3713, %v3709
    %v3762 = vpack.c.b16 %v3714, %v3710
    %v3763 = vpack.c.b16 %v3719, %v3715
    %v3764 = vpack.c.b16 %v3720, %v3716
    %v3765 = vpack.c.b16 %v3721, %v3717
    %v3766 = vpack.c.b16 %v3722, %v3718
    %v3767 = vpack.c.b16 %v3727, %v3723
    %v3768 = vpack.c.b16 %v3728, %v3724
    %v3769 = vpack.c.b16 %v3729, %v3725
    %v3770 = vpack.c.b16 %v3730, %v3726
    %v3771 = vpack.c.b16 %v3735, %v3731
    %v3772 = vpack.c.b16 %v3736, %v3732
    %v3773 = vpack.c.b16 %v3737, %v3733
    %v3774 = vpack.c.b16 %v3738, %v3734
    %v3775 = vpack.c.b16 %v3743, %v3739
    %v3776 = vpack.c.b16 %v3744, %v3740
    %v3777 = vpack.c.b16 %v3745, %v3741
    %v3778 = vpack.c.b16 %v3746, %v3742
    %3811 = vmatprep.subr.bf16.mxu0 %v3748
    %3812 = vmatpush1.bf16.msra.mxu0 %v3747
    %3813 = vmatprep.subr.bf16.mxu0 %v3752
    %3814 = vmatpush1.bf16.msra.mxu0 %v3751
    %3815 = vmatprep.subr.bf16.mxu0 %v3756
    %3816 = vmatpush1.bf16.msra.mxu0 %v3755
    %3817 = vmatprep.subr.bf16.mxu0 %v3760
    %3818 = vmatpush1.bf16.msra.mxu0 %v3759
    %3819 = vmatprep.subr.bf16.mxu0 %v3764
    %3820 = vmatpush1.bf16.msra.mxu0 %v3763
    %3821 = vmatprep.subr.bf16.mxu0 %v3768
    %3822 = vmatpush1.bf16.msra.mxu0 %v3767
    %3823 = vmatprep.subr.bf16.mxu0 %v3772
    %3824 = vmatpush1.bf16.msra.mxu0 %v3771
    %3825 = vmatprep.subr.bf16.mxu0 %v3776
    %3826 = vmatpush1.bf16.msra.mxu0 %v3775
    %3827 = vmatprep.subr.bf16.mxu0 0
    %3828 = vmatpush1.bf16.msra.mxu0 0
    %3829 = vmatprep.subr.bf16.mxu0 0
    %3830 = vmatpush1.bf16.msra.mxu0 0
    %3831 = vmatprep.subr.bf16.mxu0 0
    %3832 = vmatpush1.bf16.msra.mxu0 0
    %3833 = vmatprep.subr.bf16.mxu0 0
    %3834 = vmatpush1.bf16.msra.mxu0 0
    %3835 = vmatprep.subr.bf16.mxu0 0
    %3836 = vmatpush1.bf16.msra.mxu0 0
    %3837 = vmatprep.subr.bf16.mxu0 0
    %3838 = vmatpush1.bf16.msra.mxu0 0
    %3839 = vmatprep.subr.bf16.mxu0 0
    %3840 = vmatpush1.bf16.msra.mxu0 0
    %3841 = vmatprep.subr.bf16.mxu0 0
    %3842 = vmatpush1.bf16.msra.mxu0 0
    %3843 = vmatprep.mubr.bf16.mxu0 0
    %3844 = vmatmul.mubr.bf16.gmra.mrb[0].mxu0 %v3596
    %v3845 = vpop.f32.mrb[0].mxu0
    %v3846 = vadd.f32 %v3634, %v3845
    %v3847 = vpop.f32.mrb[0].mxu0
    %v3848 = vadd.f32 %v3638, %v3847
    %v3849 = vpop.f32.mrb[0].mxu0
    %v3850 = vadd.f32 %v3634, %v3849
    %v3851 = vpop.f32.mrb[0].mxu0
    %v3852 = vadd.f32 %v3638, %v3851
    %3853 = vdwg.mxu0
    %3854 = vmatprep.subr.bf16.mxu0 %v3750
    %3855 = vmatpush1.bf16.msra.mxu0 %v3749
    %3856 = vmatprep.subr.bf16.mxu0 %v3754
    %3857 = vmatpush1.bf16.msra.mxu0 %v3753
    %3858 = vmatprep.subr.bf16.mxu0 %v3758
    %3859 = vmatpush1.bf16.msra.mxu0 %v3757
    %3860 = vmatprep.subr.bf16.mxu0 %v3762
    %3861 = vmatpush1.bf16.msra.mxu0 %v3761
    %3862 = vmatprep.subr.bf16.mxu0 %v3766
    %3863 = vmatpush1.bf16.msra.mxu0 %v3765
    %3864 = vmatprep.subr.bf16.mxu0 %v3770
    %3865 = vmatpush1.bf16.msra.mxu0 %v3769
    %3866 = vmatprep.subr.bf16.mxu0 %v3774
    %3867 = vmatpush1.bf16.msra.mxu0 %v3773
    %3868 = vmatprep.subr.bf16.mxu0 %v3778
    %3869 = vmatpush1.bf16.msra.mxu0 %v3777
    %3870 = vmatprep.subr.bf16.mxu0 0
    %3871 = vmatpush1.bf16.msra.mxu0 0
    %3872 = vmatprep.subr.bf16.mxu0 0
    %3873 = vmatpush1.bf16.msra.mxu0 0
    %3874 = vmatprep.subr.bf16.mxu0 0
    %3875 = vmatpush1.bf16.msra.mxu0 0
    %3876 = vmatprep.subr.bf16.mxu0 0
    %3877 = vmatpush1.bf16.msra.mxu0 0
    %3878 = vmatprep.subr.bf16.mxu0 0
    %3879 = vmatpush1.bf16.msra.mxu0 0
    %3880 = vmatprep.subr.bf16.mxu0 0
    %3881 = vmatpush1.bf16.msra.mxu0 0
    %3882 = vmatprep.subr.bf16.mxu0 0
    %3883 = vmatpush1.bf16.msra.mxu0 0
    %3884 = vmatprep.subr.bf16.mxu0 0
    %3885 = vmatpush1.bf16.msra.mxu0 0
    %3886 = vmatprep.mubr.bf16.mxu0 0
    %3887 = vmatmul.mubr.bf16.gmra.mrb[0].mxu0 %v3596
    %v3888 = vpop.f32.mrb[0].mxu0
    %v3889 = vadd.f32 %v3642, %v3888
    %v3890 = vpop.f32.mrb[0].mxu0
    %v3891 = vadd.f32 %v3646, %v3890
    %v3892 = vpop.f32.mrb[0].mxu0
    %v3893 = vadd.f32 %v3642, %v3892
    %v3894 = vpop.f32.mrb[0].mxu0
    %v3895 = vadd.f32 %v3646, %v3894
    %3896 = vdwg.mxu0
    %v3897 = vmul.f32 %v3846, %v3846
    %v3898 = vmul.f32 %v3848, %v3848
    %v3899 = vmul.f32 %v3889, %v3889
    %v3900 = vmul.f32 %v3891, %v3891
    %v3901 = vmul.f32 %v3850, %v3850
    %v3902 = vmul.f32 %v3852, %v3852
    %v3903 = vmul.f32 %v3893, %v3893
    %v3904 = vmul.f32 %v3895, %v3895
    %v3905 = vmul.f32 %v3846, %v3897
    %v3906 = vmul.f32 %v3848, %v3898
    %v3907 = vmul.f32 %v3889, %v3899
    %v3908 = vmul.f32 %v3891, %v3900
    %v3909 = vmul.f32 %v3850, %v3901
    %v3910 = vmul.f32 %v3852, %v3902
    %v3911 = vmul.f32 %v3893, %v3903
    %v3912 = vmul.f32 %v3895, %v3904
    %v3913 = vmul.f32 %v3905, 0.044715
    %v3914 = vmul.f32 %v3906, 0.044715
    %v3915 = vmul.f32 %v3907, 0.044715
    %v3916 = vmul.f32 %v3908, 0.044715
    %v3917 = vmul.f32 %v3909, 0.044715
    %v3918 = vmul.f32 %v3910, 0.044715
    %v3919 = vmul.f32 %v3911, 0.044715
    %v3920 = vmul.f32 %v3912, 0.044715
    %v3921 = vadd.f32 %v3846, %v3913
    %v3922 = vadd.f32 %v3848, %v3914
    %v3923 = vadd.f32 %v3889, %v3915
    %v3924 = vadd.f32 %v3891, %v3916
    %v3925 = vadd.f32 %v3850, %v3917
    %v3926 = vadd.f32 %v3852, %v3918
    %v3927 = vadd.f32 %v3893, %v3919
    %v3928 = vadd.f32 %v3895, %v3920
    %v3929 = vmul.f32 %v3921, 0.7978846
    %v3930 = vmul.f32 %v3922, 0.7978846
    %v3931 = vmul.f32 %v3923, 0.7978846
    %v3932 = vmul.f32 %v3924, 0.7978846
    %v3933 = vmul.f32 %v3925, 0.7978846
    %v3934 = vmul.f32 %v3926, 0.7978846
    %v3935 = vmul.f32 %v3927, 0.7978846
    %v3936 = vmul.f32 %v3928, 0.7978846
    %v3937 = vtanh.pop %v3929
    %v3938 = vtanh.pop %v3930
    %v3939 = vtanh.pop %v3931
    %v3940 = vtanh.pop %v3932
    %v3941 = vtanh.pop %v3933
    %v3942 = vtanh.pop %v3934
    %v3943 = vtanh.pop %v3935
    %v3944 = vtanh.pop %v3936
    %v3945 = vadd.f32 %v3937, 1.0
    %v3946 = vadd.f32 %v3938, 1.0
    %v3947 = vadd.f32 %v3939, 1.0
    %v3948 = vadd.f32 %v3940, 1.0
    %v3949 = vadd.f32 %v3941, 1.0
    %v3950 = vadd.f32 %v3942, 1.0
    %v3951 = vadd.f32 %v3943, 1.0
    %v3952 = vadd.f32 %v3944, 1.0
    %v3953 = vmul.f32 %v3945, 0.5
    %v3954 = vmul.f32 %v3946, 0.5
    %v3955 = vmul.f32 %v3947, 0.5
    %v3956 = vmul.f32 %v3948, 0.5
    %v3957 = vmul.f32 %v3949, 0.5
    %v3958 = vmul.f32 %v3950, 0.5
    %v3959 = vmul.f32 %v3951, 0.5
    %v3960 = vmul.f32 %v3952, 0.5
    %v3961 = vmul.f32 %v3846, %v3953
    %v3962 = vmul.f32 %v3848, %v3954
    %v3963 = vmul.f32 %v3889, %v3955
    %v3964 = vmul.f32 %v3891, %v3956
    %v3965 = vmul.f32 %v3850, %v3957
    %v3966 = vmul.f32 %v3852, %v3958
    %v3967 = vmul.f32 %v3893, %v3959
    %v3968 = vmul.f32 %v3895, %v3960
    %v3969 = vpack.c.bf16 %v3965, %v3961
    %v3970 = vpack.c.bf16 %v3966, %v3962
    %v3971 = vpack.c.bf16 %v3967, %v3963
    %v3972 = vpack.c.bf16 %v3968, %v3964
    %s3973 = scalar_lea.vmem [#allocation6], 256
    %v3974 = vld [vmem:[%s3973] sm:$0xf]
    %v3975 = vld [vmem:[%s3973 + $0x4] sm:$0xf]
    %v3976 = vld [vmem:[%s3973 + $0x8] sm:$0xf]
    %v3977 = vld [vmem:[%s3973 + $0xc] sm:$0xf]
    %v3978 = vld [vmem:[%s3973 + $0x10] sm:$0xf]
    %v3979 = vld [vmem:[%s3973 + $0x14] sm:$0xf]
    %v3980 = vld [vmem:[%s3973 + $0x18] sm:$0xf]
    %v3981 = vld [vmem:[%s3973 + $0x1c] sm:$0xf]
    %v3982 = vld [vmem:[%s3973 + $0x20] sm:$0xf]
    %v3983 = vld [vmem:[%s3973 + $0x24] sm:$0xf]
    %v3984 = vld [vmem:[%s3973 + $0x28] sm:$0xf]
    %v3985 = vld [vmem:[%s3973 + $0x2c] sm:$0xf]
    %v3986 = vld [vmem:[%s3973 + $0x30] sm:$0xf]
    %v3987 = vld [vmem:[%s3973 + $0x34] sm:$0xf]
    %v3988 = vld [vmem:[%s3973 + $0x38] sm:$0xf]
    %v3989 = vld [vmem:[%s3973 + $0x3c] sm:$0xf]
    %v3990 = vld [vmem:[%s3973 + $0x40] sm:$0xf]
    %v3991 = vld [vmem:[%s3973 + $0x44] sm:$0xf]
    %v3992 = vld [vmem:[%s3973 + $0x48] sm:$0xf]
    %v3993 = vld [vmem:[%s3973 + $0x4c] sm:$0xf]
    %v3994 = vld [vmem:[%s3973 + $0x50] sm:$0xf]
    %v3995 = vld [vmem:[%s3973 + $0x54] sm:$0xf]
    %v3996 = vld [vmem:[%s3973 + $0x58] sm:$0xf]
    %v3997 = vld [vmem:[%s3973 + $0x5c] sm:$0xf]
    %v3998 = vld [vmem:[%s3973 + $0x60] sm:$0xf]
    %v3999 = vld [vmem:[%s3973 + $0x64] sm:$0xf]
    %v4000 = vld [vmem:[%s3973 + $0x68] sm:$0xf]
    %v4001 = vld [vmem:[%s3973 + $0x6c] sm:$0xf]
    %v4002 = vld [vmem:[%s3973 + $0x70] sm:$0xf]
    %v4003 = vld [vmem:[%s3973 + $0x74] sm:$0xf]
    %v4004 = vld [vmem:[%s3973 + $0x78] sm:$0xf]
    %v4005 = vld [vmem:[%s3973 + $0x7c] sm:$0xf]
    %v4006 = vld [vmem:[%s3973 + $0x80] sm:$0xf]
    %v4007 = vld [vmem:[%s3973 + $0x84] sm:$0xf]
    %v4008 = vld [vmem:[%s3973 + $0x88] sm:$0xf]
    %v4009 = vld [vmem:[%s3973 + $0x8c] sm:$0xf]
    %v4010 = vld [vmem:[%s3973 + $0x90] sm:$0xf]
    %v4011 = vld [vmem:[%s3973 + $0x94] sm:$0xf]
    %v4012 = vld [vmem:[%s3973 + $0x98] sm:$0xf]
    %v4013 = vld [vmem:[%s3973 + $0x9c] sm:$0xf]
    %v4014 = vld [vmem:[%s3973 + $0xa0] sm:$0xf]
    %v4015 = vld [vmem:[%s3973 + $0xa4] sm:$0xf]
    %v4016 = vld [vmem:[%s3973 + $0xa8] sm:$0xf]
    %v4017 = vld [vmem:[%s3973 + $0xac] sm:$0xf]
    %v4018 = vld [vmem:[%s3973 + $0xb0] sm:$0xf]
    %v4019 = vld [vmem:[%s3973 + $0xb4] sm:$0xf]
    %v4020 = vld [vmem:[%s3973 + $0xb8] sm:$0xf]
    %v4021 = vld [vmem:[%s3973 + $0xbc] sm:$0xf]
    %v4022 = vld [vmem:[%s3973 + $0xc0] sm:$0xf]
    %v4023 = vld [vmem:[%s3973 + $0xc4] sm:$0xf]
    %v4024 = vld [vmem:[%s3973 + $0xc8] sm:$0xf]
    %v4025 = vld [vmem:[%s3973 + $0xcc] sm:$0xf]
    %v4026 = vld [vmem:[%s3973 + $0xd0] sm:$0xf]
    %v4027 = vld [vmem:[%s3973 + $0xd4] sm:$0xf]
    %v4028 = vld [vmem:[%s3973 + $0xd8] sm:$0xf]
    %v4029 = vld [vmem:[%s3973 + $0xdc] sm:$0xf]
    %v4030 = vld [vmem:[%s3973 + $0xe0] sm:$0xf]
    %v4031 = vld [vmem:[%s3973 + $0xe4] sm:$0xf]
    %v4032 = vld [vmem:[%s3973 + $0xe8] sm:$0xf]
    %v4033 = vld [vmem:[%s3973 + $0xec] sm:$0xf]
    %v4034 = vld [vmem:[%s3973 + $0xf0] sm:$0xf]
    %v4035 = vld [vmem:[%s3973 + $0xf4] sm:$0xf]
    %v4036 = vld [vmem:[%s3973 + $0xf8] sm:$0xf]
    %v4037 = vld [vmem:[%s3973 + $0xfc] sm:$0xf]
    %v4038 = vlaneseq
    %v4039 = vshrl.u32 %v4038, 7
    %v4040 = vsub.s32 5, %v4039
    %v4041 = vrot.slane %v2243, %v4040
    %v4106 = vunpack.c.l.b16 %v3974
    %v4107 = vunpack.c.l.b16 %v3975
    %v4108 = vunpack.c.l.b16 %v3976
    %v4109 = vunpack.c.l.b16 %v3977
    %v4110 = vunpack.c.l.b16 %v3978
    %v4111 = vunpack.c.l.b16 %v3979
    %v4112 = vunpack.c.l.b16 %v3980
    %v4113 = vunpack.c.l.b16 %v3981
    %v4114 = vunpack.c.l.b16 %v3982
    %v4115 = vunpack.c.l.b16 %v3983
    %v4116 = vunpack.c.l.b16 %v3984
    %v4117 = vunpack.c.l.b16 %v3985
    %v4118 = vunpack.c.l.b16 %v3986
    %v4119 = vunpack.c.l.b16 %v3987
    %v4120 = vunpack.c.l.b16 %v3988
    %v4121 = vunpack.c.l.b16 %v3989
    %v4122 = vunpack.c.l.b16 %v3990
    %v4123 = vunpack.c.l.b16 %v3991
    %v4124 = vunpack.c.l.b16 %v3992
    %v4125 = vunpack.c.l.b16 %v3993
    %v4126 = vunpack.c.l.b16 %v3994
    %v4127 = vunpack.c.l.b16 %v3995
    %v4128 = vunpack.c.l.b16 %v3996
    %v4129 = vunpack.c.l.b16 %v3997
    %v4130 = vunpack.c.l.b16 %v3998
    %v4131 = vunpack.c.l.b16 %v3999
    %v4132 = vunpack.c.l.b16 %v4000
    %v4133 = vunpack.c.l.b16 %v4001
    %v4134 = vunpack.c.l.b16 %v4002
    %v4135 = vunpack.c.l.b16 %v4003
    %v4136 = vunpack.c.l.b16 %v4004
    %v4137 = vunpack.c.l.b16 %v4005
    %v4138 = vunpack.c.l.b16 %v4006
    %v4139 = vunpack.c.l.b16 %v4007
    %v4140 = vunpack.c.l.b16 %v4008
    %v4141 = vunpack.c.l.b16 %v4009
    %v4142 = vunpack.c.l.b16 %v4010
    %v4143 = vunpack.c.l.b16 %v4011
    %v4144 = vunpack.c.l.b16 %v4012
    %v4145 = vunpack.c.l.b16 %v4013
    %v4146 = vunpack.c.l.b16 %v4014
    %v4147 = vunpack.c.l.b16 %v4015
    %v4148 = vunpack.c.l.b16 %v4016
    %v4149 = vunpack.c.l.b16 %v4017
    %v4150 = vunpack.c.l.b16 %v4018
    %v4151 = vunpack.c.l.b16 %v4019
    %v4152 = vunpack.c.l.b16 %v4020
    %v4153 = vunpack.c.l.b16 %v4021
    %v4154 = vunpack.c.l.b16 %v4022
    %v4155 = vunpack.c.l.b16 %v4023
    %v4156 = vunpack.c.l.b16 %v4024
    %v4157 = vunpack.c.l.b16 %v4025
    %v4158 = vunpack.c.l.b16 %v4026
    %v4159 = vunpack.c.l.b16 %v4027
    %v4160 = vunpack.c.l.b16 %v4028
    %v4161 = vunpack.c.l.b16 %v4029
    %v4162 = vunpack.c.l.b16 %v4030
    %v4163 = vunpack.c.l.b16 %v4031
    %v4164 = vunpack.c.l.b16 %v4032
    %v4165 = vunpack.c.l.b16 %v4033
    %v4166 = vunpack.c.l.b16 %v4034
    %v4167 = vunpack.c.l.b16 %v4035
    %v4168 = vunpack.c.l.b16 %v4036
    %v4169 = vunpack.c.l.b16 %v4037
    %v4170 = vpack.c.b16 %v4107, %v4106
    %v4171 = vpack.c.b16 %v4109, %v4108
    %v4172 = vpack.c.b16 %v4111, %v4110
    %v4173 = vpack.c.b16 %v4113, %v4112
    %v4174 = vpack.c.b16 %v4115, %v4114
    %v4175 = vpack.c.b16 %v4117, %v4116
    %v4176 = vpack.c.b16 %v4119, %v4118
    %v4177 = vpack.c.b16 %v4121, %v4120
    %v4178 = vpack.c.b16 %v4123, %v4122
    %v4179 = vpack.c.b16 %v4125, %v4124
    %v4180 = vpack.c.b16 %v4127, %v4126
    %v4181 = vpack.c.b16 %v4129, %v4128
    %v4182 = vpack.c.b16 %v4131, %v4130
    %v4183 = vpack.c.b16 %v4133, %v4132
    %v4184 = vpack.c.b16 %v4135, %v4134
    %v4185 = vpack.c.b16 %v4137, %v4136
    %v4186 = vpack.c.b16 %v4139, %v4138
    %v4187 = vpack.c.b16 %v4141, %v4140
    %v4188 = vpack.c.b16 %v4143, %v4142
    %v4189 = vpack.c.b16 %v4145, %v4144
    %v4190 = vpack.c.b16 %v4147, %v4146
    %v4191 = vpack.c.b16 %v4149, %v4148
    %v4192 = vpack.c.b16 %v4151, %v4150
    %v4193 = vpack.c.b16 %v4153, %v4152
    %v4194 = vpack.c.b16 %v4155, %v4154
    %v4195 = vpack.c.b16 %v4157, %v4156
    %v4196 = vpack.c.b16 %v4159, %v4158
    %v4197 = vpack.c.b16 %v4161, %v4160
    %v4198 = vpack.c.b16 %v4163, %v4162
    %v4199 = vpack.c.b16 %v4165, %v4164
    %v4200 = vpack.c.b16 %v4167, %v4166
    %v4201 = vpack.c.b16 %v4169, %v4168
    %4234 = vmatprep.subr.bf16.mxu0 0
    %4235 = vmatpush1.bf16.msra.mxu0 %v4170
    %4236 = vmatprep.subr.bf16.mxu0 0
    %4237 = vmatpush1.bf16.msra.mxu0 %v4171
    %4238 = vmatprep.subr.bf16.mxu0 0
    %4239 = vmatpush1.bf16.msra.mxu0 %v4172
    %4240 = vmatprep.subr.bf16.mxu0 0
    %4241 = vmatpush1.bf16.msra.mxu0 %v4173
    %4242 = vmatprep.subr.bf16.mxu0 0
    %4243 = vmatpush1.bf16.msra.mxu0 %v4174
    %4244 = vmatprep.subr.bf16.mxu0 0
    %4245 = vmatpush1.bf16.msra.mxu0 %v4175
    %4246 = vmatprep.subr.bf16.mxu0 0
    %4247 = vmatpush1.bf16.msra.mxu0 %v4176
    %4248 = vmatprep.subr.bf16.mxu0 0
    %4249 = vmatpush1.bf16.msra.mxu0 %v4177
    %4250 = vmatprep.subr.bf16.mxu0 0
    %4251 = vmatpush1.bf16.msra.mxu0 %v4178
    %4252 = vmatprep.subr.bf16.mxu0 0
    %4253 = vmatpush1.bf16.msra.mxu0 %v4179
    %4254 = vmatprep.subr.bf16.mxu0 0
    %4255 = vmatpush1.bf16.msra.mxu0 %v4180
    %4256 = vmatprep.subr.bf16.mxu0 0
    %4257 = vmatpush1.bf16.msra.mxu0 %v4181
    %4258 = vmatprep.subr.bf16.mxu0 0
    %4259 = vmatpush1.bf16.msra.mxu0 %v4182
    %4260 = vmatprep.subr.bf16.mxu0 0
    %4261 = vmatpush1.bf16.msra.mxu0 %v4183
    %4262 = vmatprep.subr.bf16.mxu0 0
    %4263 = vmatpush1.bf16.msra.mxu0 %v4184
    %4264 = vmatprep.subr.bf16.mxu0 0
    %4265 = vmatpush1.bf16.msra.mxu0 %v4185
    %4266 = vmatprep.mubr.bf16.mxu0 %v3970
    %4267 = vmatmul.mubr.bf16.gmra.mrb[0].mxu0 %v3969
    %v4268 = vpop.f32.mrb[0].mxu0
    %v4269 = vadd.f32 %v4041, %v4268
    %v4270 = vpop.f32.mrb[0].mxu0
    %v4271 = vpop.f32.mrb[0].mxu0
    %v4272 = vadd.f32 %v4041, %v4271
    %v4273 = vpop.f32.mrb[0].mxu0
    %4274 = vdwg.mxu0
    %4275 = vmatprep.subr.bf16.mxu0 0
    %4276 = vmatpush1.bf16.msra.mxu0 %v4186
    %4277 = vmatprep.subr.bf16.mxu0 0
    %4278 = vmatpush1.bf16.msra.mxu0 %v4187
    %4279 = vmatprep.subr.bf16.mxu0 0
    %4280 = vmatpush1.bf16.msra.mxu0 %v4188
    %4281 = vmatprep.subr.bf16.mxu0 0
    %4282 = vmatpush1.bf16.msra.mxu0 %v4189
    %4283 = vmatprep.subr.bf16.mxu0 0
    %4284 = vmatpush1.bf16.msra.mxu0 %v4190
    %4285 = vmatprep.subr.bf16.mxu0 0
    %4286 = vmatpush1.bf16.msra.mxu0 %v4191
    %4287 = vmatprep.subr.bf16.mxu0 0
    %4288 = vmatpush1.bf16.msra.mxu0 %v4192
    %4289 = vmatprep.subr.bf16.mxu0 0
    %4290 = vmatpush1.bf16.msra.mxu0 %v4193
    %4291 = vmatprep.subr.bf16.mxu0 0
    %4292 = vmatpush1.bf16.msra.mxu0 %v4194
    %4293 = vmatprep.subr.bf16.mxu0 0
    %4294 = vmatpush1.bf16.msra.mxu0 %v4195
    %4295 = vmatprep.subr.bf16.mxu0 0
    %4296 = vmatpush1.bf16.msra.mxu0 %v4196
    %4297 = vmatprep.subr.bf16.mxu0 0
    %4298 = vmatpush1.bf16.msra.mxu0 %v4197
    %4299 = vmatprep.subr.bf16.mxu0 0
    %4300 = vmatpush1.bf16.msra.mxu0 %v4198
    %4301 = vmatprep.subr.bf16.mxu0 0
    %4302 = vmatpush1.bf16.msra.mxu0 %v4199
    %4303 = vmatprep.subr.bf16.mxu0 0
    %4304 = vmatpush1.bf16.msra.mxu0 %v4200
    %4305 = vmatprep.subr.bf16.mxu0 0
    %4306 = vmatpush1.bf16.msra.mxu0 %v4201
    %4307 = vmatprep.mubr.bf16.mxu0 %v3972
    %4308 = vmatmul.mubr.bf16.gmra.mrb[0].mxu0 %v3971
    %v4309 = vpop.f32.mrb[0].mxu0
    %v4310 = vadd.f32 %v4269, %v4309
    %v4311 = vpop.f32.mrb[0].mxu0
    %v4312 = vpop.f32.mrb[0].mxu0
    %v4313 = vadd.f32 %v4272, %v4312
    %v4314 = vpop.f32.mrb[0].mxu0
    %4315 = vdwg.mxu0
    %v4316 = vadd.f32 %v3594, %v4310
    %v4317 = vadd.f32 %v3595, %v4313
    %4318 = vadd.xlane.f32.xlu0 %v4316
    %v4319 = vpop.xlane.xlu0 %4318
    %4320 = vadd.xlane.f32.xlu0 %v4317
    %v4321 = vpop.xlane.xlu0 %4320
    %v4322 = vmul.f32 %v4319, %v1457
    %v4323 = vmul.f32 %v4321, %v1457
    %v4324 = vsub.f32 %v4316, %v4322
    %v4325 = vsub.f32 %v4317, %v4323
    %v4326 = vmul.f32 %v4324, %v4324
    %v4327 = vmul.f32 %v4325, %v4325
    %4328 = vadd.xlane.f32.xlu0 %v4326
    %v4329 = vpop.xlane.xlu0 %4328
    %4330 = vadd.xlane.f32.xlu0 %v4327
    %v4331 = vpop.xlane.xlu0 %4330
    %v4332 = vmul.f32 %v4329, %v1457
    %v4333 = vmul.f32 %v4331, %v1457
    %v4334 = vadd.f32 %v4332, 1e-05
    %v4335 = vadd.f32 %v4333, 1e-05
    %v4336 = vrsqrt.pop %v4334
    %v4337 = vrsqrt.pop %v4335
    %v4338 = vmul.f32 %v4324, %v4336
    %v4339 = vmul.f32 %v4325, %v4337
    %v4340 = vlaneseq
    %v4341 = vshrl.u32 %v4340, 7
    %v4342 = vsub.s32 3, %v4341
    %v4343 = vrot.slane %v2243, %v4342
    %v4344 = vmul.f32 %v4338, %v4343
    %v4345 = vmul.f32 %v4339, %v4343
    %v4346 = vlaneseq
    %v4347 = vshrl.u32 %v4346, 7
    %v4348 = vsub.s32 4, %v4347
    %v4349 = vrot.slane %v2243, %v4348
    %v4350 = vadd.f32 %v4344, %v4349
    %v4351 = vadd.f32 %v4345, %v4349
    %v4352 = vpack.c.bf16 %v4351, %v4350
    %v4353 = vld [vmem:[#allocation10] sm:$0xf]
    %v4354 = vld [vmem:[#allocation10 + $0x4] sm:$0xf]
    %v4355 = vld [vmem:[#allocation10 + $0x8] sm:$0xf]
    %v4356 = vld [vmem:[#allocation10 + $0xc] sm:$0xf]
    %v4357 = vld [vmem:[#allocation10 + $0x10] sm:$0xf]
    %v4358 = vld [vmem:[#allocation10 + $0x14] sm:$0xf]
    %v4359 = vld [vmem:[#allocation10 + $0x18] sm:$0xf]
    %v4360 = vld [vmem:[#allocation10 + $0x1c] sm:$0xf]
    %v4361 = vld [vmem:[#allocation10 + $0x20] sm:$0xf]
    %v4362 = vld [vmem:[#allocation10 + $0x24] sm:$0xf]
    %v4363 = vld [vmem:[#allocation10 + $0x28] sm:$0xf]
    %v4364 = vld [vmem:[#allocation10 + $0x2c] sm:$0xf]
    %v4365 = vld [vmem:[#allocation10 + $0x30] sm:$0xf]
    %v4366 = vld [vmem:[#allocation10 + $0x34] sm:$0xf]
    %v4367 = vld [vmem:[#allocation10 + $0x38] sm:$0xf]
    %v4368 = vld [vmem:[#allocation10 + $0x3c] sm:$0xf]
    %v4369 = vld [vmem:[#allocation12] sm:$0x1]
    %v4371 = vlaneseq
    %v4372 = vshrl.u32 %v4371, 7
    %v4373 = vsub.s32 0, %v4372
    %v4374 = vrot.slane %v4369, %v4373
    %v4392 = vunpack.c.l.b16 %v4353
    %v4393 = vunpack.c.l.b16 %v4354
    %v4394 = vunpack.c.l.b16 %v4355
    %v4395 = vunpack.c.l.b16 %v4356
    %v4396 = vunpack.c.l.b16 %v4357
    %v4397 = vunpack.c.l.b16 %v4358
    %v4398 = vunpack.c.l.b16 %v4359
    %v4399 = vunpack.c.l.b16 %v4360
    %v4400 = vunpack.c.l.b16 %v4361
    %v4401 = vunpack.c.l.b16 %v4362
    %v4402 = vunpack.c.l.b16 %v4363
    %v4403 = vunpack.c.l.b16 %v4364
    %v4404 = vunpack.c.l.b16 %v4365
    %v4405 = vunpack.c.l.b16 %v4366
    %v4406 = vunpack.c.l.b16 %v4367
    %v4407 = vunpack.c.l.b16 %v4368
    %v4408 = vpack.c.b16 %v4393, %v4392
    %v4409 = vpack.c.b16 %v4395, %v4394
    %v4410 = vpack.c.b16 %v4397, %v4396
    %v4411 = vpack.c.b16 %v4399, %v4398
    %v4412 = vpack.c.b16 %v4401, %v4400
    %v4413 = vpack.c.b16 %v4403, %v4402
    %v4414 = vpack.c.b16 %v4405, %v4404
    %v4415 = vpack.c.b16 %v4407, %v4406
    %4424 = vmatprep.subr.bf16.mxu0 0
    %4425 = vmatpush1.bf16.msra.mxu0 %v4408
    %4426 = vmatprep.subr.bf16.mxu0 0
    %4427 = vmatpush1.bf16.msra.mxu0 %v4409
    %4428 = vmatprep.subr.bf16.mxu0 0
    %4429 = vmatpush1.bf16.msra.mxu0 %v4410
    %4430 = vmatprep.subr.bf16.mxu0 0
    %4431 = vmatpush1.bf16.msra.mxu0 %v4411
    %4432 = vmatprep.subr.bf16.mxu0 0
    %4433 = vmatpush1.bf16.msra.mxu0 %v4412
    %4434 = vmatprep.subr.bf16.mxu0 0
    %4435 = vmatpush1.bf16.msra.mxu0 %v4413
    %4436 = vmatprep.subr.bf16.mxu0 0
    %4437 = vmatpush1.bf16.msra.mxu0 %v4414
    %4438 = vmatprep.subr.bf16.mxu0 0
    %4439 = vmatpush1.bf16.msra.mxu0 %v4415
    %4440 = vmatprep.subr.bf16.mxu0 0
    %4441 = vmatpush1.bf16.msra.mxu0 0
    %4442 = vmatprep.subr.bf16.mxu0 0
    %4443 = vmatpush1.bf16.msra.mxu0 0
    %4444 = vmatprep.subr.bf16.mxu0 0
    %4445 = vmatpush1.bf16.msra.mxu0 0
    %4446 = vmatprep.subr.bf16.mxu0 0
    %4447 = vmatpush1.bf16.msra.mxu0 0
    %4448 = vmatprep.subr.bf16.mxu0 0
    %4449 = vmatpush1.bf16.msra.mxu0 0
    %4450 = vmatprep.subr.bf16.mxu0 0
    %4451 = vmatpush1.bf16.msra.mxu0 0
    %4452 = vmatprep.subr.bf16.mxu0 0
    %4453 = vmatpush1.bf16.msra.mxu0 0
    %4454 = vmatprep.subr.bf16.mxu0 0
    %4455 = vmatpush1.bf16.msra.mxu0 0
    %4456 = vmatprep.mubr.bf16.mxu0 0
    %4457 = vmatmul.mubr.bf16.gmra.mrb[0].mxu0 %v4352
    %v4458 = vpop.f32.mrb[0].mxu0
    %v4459 = vadd.f32 %v4374, %v4458
    %v4460 = vpop.f32.mrb[0].mxu0
    %v4461 = vpop.f32.mrb[0].mxu0
    %v4462 = vadd.f32 %v4374, %v4461
    %v4463 = vpop.f32.mrb[0].mxu0
    %4464 = vdwg.mxu0
    %4465 = vst [vmem:[%s11] sm:$0xff] %v4459
    %4466 = vst [vmem:[%s11 + $0x8] sm:$0xff] %v4462
    // Predicated region
    $region74: #{chrombert_lm_forward.1} parent=1 // pred_check
      _
    $region75: #{chrombert_lm_forward.1} parent=1 // pred_check_branch
      %4468 = sbr.rel (0) target = $region77
    $region76: #{chrombert_lm_forward.1} parent=1 // pred_region
      _
    $region77: #{chrombert_lm_forward.1} parent=1 // pred_fallthru
      _
    // Predicated region
    $region78: #{chrombert_lm_forward.1} parent=1 // pred_check
      _
    $region79: #{chrombert_lm_forward.1} parent=1 // pred_check_branch
      %4470 = sbr.rel (0) target = $region81
    $region80: #{chrombert_lm_forward.1} parent=1 // pred_region
      _
    $region81: #{chrombert_lm_forward.1} parent=1 // pred_fallthru
      _
    %4471 = vsyncpa [#allocation3], 1
    %4472 = vsyncpa [#allocation5], 1
    %4473 = vsyncpa [#allocation8], 1
    %4474 = vsyncpa [#allocation11], 1

</llo_original>
